<compile_context>
chip_gen: v7x
topology: tpu7x:2x2x1
jax: 0.10.0
libtpu: 0.0.40
codegen_flags: <defaults>
</compile_context>

<pallas_src>
import functools

import jax
import jax.numpy as jnp
from jax import lax
from jax.experimental import pallas as pl
from jax.experimental.pallas import tpu as pltpu


def _round_up(x, m):
    return (x + m - 1) // m * m


def _vmem_capacity_bytes():
    """Physical per-core VMEM; conservative 64 MiB (v7x per-TC) fallback."""
    try:
        cap = int(pltpu.get_tpu_info().vmem_capacity_bytes)
        if cap > 0:
            return cap
    except Exception:
        pass
    return 64 << 20


def _mxu_k_width():
    """MXU K width: 128 on v5e, 256 on v6e/v7x (drives the fuse_taps choice)."""
    try:
        info = pltpu.get_tpu_info()
        s = ""
        for attr in ("chip_version", "chip_name", "version", "name"):
            v = getattr(info, attr, None)
            if v is not None:
                s += " " + str(v).lower()
        if ("v5" in s) or ("5e" in s) or ("5p" in s):
            return 128
    except Exception:
        pass
    return 256


def _ffn_kernel(x_ref, w1_ref, b1_ref, w2_ref, b2_ref, gamma_ref, beta_ref,
                out_ref, *scratch, TT, W_load, k1, k2, p1, p2, L1, NC,
                fuse_taps, mxu_dtype, eps):
    """One (batch, time-tile, hid-chunk) step.

    x_ref    : (1, T_ext, d_in)  zero-padded input; constant along tile/chunk axes
    w1_ref   : (k1*d_in, CH)  if fuse_taps else (k1, d_in, CH)
    b1_ref   : (1, CH)
    w2_ref   : (k2, CH, d_in)
    b2/gamma/beta_ref : (1, d_in)
    out_ref  : (1, TT, d_in)
    scratch  : optional (TT, d_in) f32 accumulator (only when NC > 1)
    """
    acc_ref = scratch[0] if scratch else None
    c = pl.program_id(2)
    H = TT + k2 - 1                                   # hidden rows for this tile
    t0 = pl.multiple_of(pl.program_id(1) * TT, 8)     # sublane-aligned tile start

    # Halo window for this time tile (input precision kept for the residual).
    win = x_ref[0, pl.ds(t0, W_load), :]              # (W_load, d_in)
    win_c = win.astype(mxu_dtype)                     # MXU input precision

    # ---- Conv1d #1 (d_in -> d_hid chunk) + bias + ReLU ----------------------
    if fuse_taps:
        # im2col along lanes: one K = k1*d_in matmul instead of k1 skinny ones.
        lhs = jnp.concatenate([win_c[j:j + H, :] for j in range(k1)], axis=-1)
        acc1 = jnp.dot(lhs, w1_ref[...], preferred_element_type=jnp.float32)
    else:
        acc1 = jnp.dot(win_c[0:H, :], w1_ref[0],
                       preferred_element_type=jnp.float32)
        for j in range(1, k1):
            acc1 += jnp.dot(win_c[j:j + H, :], w1_ref[j],
                            preferred_element_type=jnp.float32)
    h = jnp.maximum(acc1 + b1_ref[...].astype(jnp.float32), 0.0)  # (H, CH) f32

    if p2 > 0:
        # Rows of h outside the valid conv-#1 output range act as conv-#2's
        # zero padding (PyTorch pads the hidden signal, not recomputed values).
        s = lax.broadcasted_iota(jnp.int32, (H, 1), 0) + (t0 - p2)
        h = jnp.where((s >= 0) & (s < L1), h, 0.0)

    # ---- Conv1d #2 (d_hid chunk -> d_in), partial over the chunk axis -------
    h_c = h.astype(mxu_dtype)
    part = jnp.dot(h_c[0:TT, :], w2_ref[0], preferred_element_type=jnp.float32)
    for j in range(1, k2):
        part += jnp.dot(h_c[j:j + TT, :], w2_ref[j],
                        preferred_element_type=jnp.float32)

    # ---- dropout (eval => identity) + residual + LayerNorm epilogue ---------
    # TODO(synk): training-mode dropout (random mask) intentionally omitted.
    def epilogue(y):
        y = y + b2_ref[...].astype(jnp.float32)
        res = y + win[p1 + p2:p1 + p2 + TT, :].astype(jnp.float32)
        mean = jnp.mean(res, axis=-1, keepdims=True)
        cen = res - mean
        var = jnp.mean(cen * cen, axis=-1, keepdims=True)   # two-pass variance
        norm = cen * lax.rsqrt(var + eps)
        out = (norm * gamma_ref[...].astype(jnp.float32)
               + beta_ref[...].astype(jnp.float32))
        out_ref[0] = out.astype(out_ref.dtype)

    if NC == 1:
        epilogue(part)                       # no scratch round-trip needed
    else:
        @pl.when(c == 0)
        def _():
            acc_ref[...] = part              # init from first chunk (no zero fill)

        @pl.when(c != 0)
        def _():
            acc_ref[...] += part

        @pl.when(c == NC - 1)
        def _():
            epilogue(acc_ref[...])


def positionwise_ffn(x, w1, b1, w2, b2, gamma, beta,
                     fft_conv1d_kernel=(9, 1), fft_conv1d_padding=(4, 0),
                     eps=1e-5, tile_t=512, mxu_dtype=jnp.bfloat16,
                     fuse_taps=None, hid_chunk=None, single_buffer_weights=True):
    """x: (B, T, d_in); w1: (d_hid, d_in, k1), w2: (d_in, d_hid, k2) (PyTorch)."""
    B, T, d_in = x.shape
    d_hid = w1.shape[0]
    k1, k2 = fft_conv1d_kernel
    p1, p2 = fft_conv1d_padding
    if 2 * (p1 + p2) != k1 + k2 - 2:
        raise ValueError("kernel/padding must preserve the sequence length "
                         "(the residual add requires it).")
    if fuse_taps is None:
        # Generation-aware: K-fusion only pays off if d_in underfills the MXU K.
        fuse_taps = (k1 > 1) and (d_in < _mxu_k_width())

    x_size = jnp.dtype(x.dtype).itemsize
    mxu_size = jnp.dtype(mxu_dtype).itemsize
    halo = k1 + k2 - 2                            # == 2 * (p1 + p2)

    def footprint(tt, ch):
        """Conservative VMEM bytes for a (tt, ch) tiling (2 bufs for weights)."""
        w_load = _round_up(tt + halo, 8)
        nt = -(-T // tt)
        t_ext = (nt - 1) * tt + w_load
        hh = tt + k2 - 1
        x_blk = 2 * t_ext * d_in * x_size
        w_blk = 2 * (k1 * d_in + k2 * d_in) * ch * mxu_size
        small = 2 * (ch + 3 * d_in) * 4
        out_blk = 2 * tt * d_in * x_size
        acc = tt * d_in * 4
        interm = (hh * ch * (4 + mxu_size)                        # h f32 + h_c
                  + (hh * k1 * d_in * mxu_size if fuse_taps else 0)  # im2col lhs
                  + w_load * d_in * (x_size + mxu_size)           # win + win_c
                  + 2 * tt * d_in * 4)                            # y / LN temps
        return x_blk + w_blk + small + out_blk + acc + interm

    cap = _vmem_capacity_bytes()
    budget = int(0.75 * cap)

    # ---- VMEM-budget-driven tiling ------------------------------------------
    TT = _round_up(max(8, min(tile_t, T)), 8)     # rows per grid step (mult of 8)
    if hid_chunk is not None and hid_chunk < d_hid:
        CH = min(d_hid, _round_up(hid_chunk, 128))
    else:
        CH = d_hid
        # Chunk d_hid first (keeps MXU M large), then shrink TT if still over.
        while footprint(TT, CH) > budget and CH > 512:
            CH = max(512, _round_up((CH + 1) // 2, 128))
    while footprint(TT, CH) > budget and TT > 64:
        TT = max(64, _round_up(TT // 2, 8))

    d_hid_pad = _round_up(d_hid, CH)
    NC = d_hid_pad // CH
    vmem_limit = int(min(int(0.9 * cap),
                         max(footprint(TT, CH) + (8 << 20), 32 << 20)))

    NT = -(-T // TT)
    T_round = NT * TT
    W_load = _round_up(TT + halo, 8)              # sublane-aligned halo window
    left = p1 + p2
    T_ext = (NT - 1) * TT + W_load
    # NOTE: this pad is one extra pass over the thin (B, T, d_in) activation —
    # negligible next to the FFN matmuls, kept for simplicity.
    x_ext = jnp.pad(x, ((0, 0), (left, T_ext - left - T), (0, 0)))

    # ---- weights: pad d_hid (zeros contribute nothing), tap-major, MXU dtype -
    if d_hid_pad != d_hid:
        w1 = jnp.pad(w1, ((0, d_hid_pad - d_hid), (0, 0), (0, 0)))
        b1 = jnp.pad(b1, ((0, d_hid_pad - d_hid),))
        w2 = jnp.pad(w2, ((0, 0), (0, d_hid_pad - d_hid), (0, 0)))
    w1_t = jnp.transpose(w1, (2, 1, 0)).astype(mxu_dtype)   # (k1, d_in, d_hid_pad)
    w1_in = w1_t.reshape(k1 * d_in, d_hid_pad) if fuse_taps else w1_t
    w2_in = jnp.transpose(w2, (2, 1, 0)).astype(mxu_dtype)  # (k2, d_hid_pad, d_in)
    b1_r = b1.reshape(1, d_hid_pad)
    b2_r = b2.reshape(1, d_in)
    gamma_r = gamma.reshape(1, d_in)
    beta_r = beta.reshape(1, d_in)

    L1 = T + 2 * p1 - k1 + 1                      # valid conv-#1 output length

    kernel = functools.partial(
        _ffn_kernel, TT=TT, W_load=W_load, k1=k1, k2=k2, p1=p1, p2=p2, L1=L1,
        NC=NC, fuse_taps=fuse_taps, mxu_dtype=mxu_dtype, eps=eps)

    can_single = single_buffer_weights and hasattr(pl, "Buffered")

    def build(single_buffer):
        def spec(shape, index_map, invariant):
            # Grid-invariant blocks don't need double-buffering; dropping to one
            # buffer halves their VMEM footprint.
            if single_buffer and invariant:
                return pl.BlockSpec(shape, index_map, pipeline_mode=pl.Buffered(1))
            return pl.BlockSpec(shape, index_map)

        # w1/b1/w2 are grid-invariant only when d_hid isn't chunked; when
        # chunked they vary along c and keep double-buffering so the next
        # chunk's weights prefetch under the current matmuls.
        w_inv = (NC == 1)
        if fuse_taps:
            w1_spec = spec((k1 * d_in, CH), lambda b, i, c: (0, c), w_inv)
        else:
            w1_spec = spec((k1, d_in, CH), lambda b, i, c: (0, 0, c), w_inv)

        in_specs = [
            # Constant block index along tile/chunk axes => DMA'd once per batch
            # element; per-tile halo windows are sliced in-kernel via pl.ds.
            pl.BlockSpec((1, T_ext, d_in), lambda b, i, c: (b, 0, 0)),
            w1_spec,
            spec((1, CH), lambda b, i, c: (0, c), w_inv),
            spec((k2, CH, d_in), lambda b, i, c: (0, c, 0), w_inv),
            spec((1, d_in), lambda b, i, c: (0, 0), True),
            spec((1, d_in), lambda b, i, c: (0, 0), True),
            spec((1, d_in), lambda b, i, c: (0, 0), True),
        ]
        out_spec = pl.BlockSpec((1, TT, d_in), lambda b, i, c: (b, i, 0))
        scratch = [pltpu.VMEM((TT, d_in), jnp.float32)] if NC > 1 else []
        return pl.pallas_call(
            kernel,
            out_shape=jax.ShapeDtypeStruct((B, T_round, d_in), x.dtype),
            grid=(B, NT, NC),
            in_specs=in_specs,
            out_specs=out_spec,
            scratch_shapes=scratch,
            compiler_params=pltpu.CompilerParams(
                dimension_semantics=("parallel", "parallel", "arbitrary"),
                vmem_limit_bytes=vmem_limit),
        )

    args = (x_ext, w1_in, b1_r, w2_in, b2_r, gamma_r, beta_r)
    if can_single:
        try:
            out = build(True)(*args)
        except Exception:
            # Fallback if this Pallas build rejects buffer_count=1 specs.
            out = build(False)(*args)
    else:
        out = build(False)(*args)

    # Tail tiles beyond T hold LayerNorm of all-zero rows; sliced off here.
    return out[:, :T, :] if T_round != T else out


def reference_ffn(x, w1, b1, w2, b2, gamma, beta, pads=(4, 0), eps=1e-5):
    """Pure-JAX reference matching PyTorch Conv1d / LayerNorm (eval mode)."""
    p1, p2 = pads
    xt = jnp.transpose(x, (0, 2, 1))                                 # (B, d_in, T)
    h = lax.conv_general_dilated(xt, w1, (1,), [(p1, p1)],
                                 dimension_numbers=("NCH", "OIH", "NCH")) + b1[:, None]
    h = jnp.maximum(h, 0.0)
    y = lax.conv_general_dilated(h, w2, (1,), [(p2, p2)],
                                 dimension_numbers=("NCH", "OIH", "NCH")) + b2[:, None]
    y = jnp.transpose(y, (0, 2, 1))
    res = y + x
    mean = res.mean(-1, keepdims=True)
    var = ((res - mean) ** 2).mean(-1, keepdims=True)
    return (res - mean) / jnp.sqrt(var + eps) * gamma + beta


if __name__ == "__main__":
    # FastSpeech-style conv kernels [9, 1] with padding [4, 0], small shapes.
    B, T, d_in, d_hid = 2, 16, 32, 64
    k1, k2 = 9, 1
    p1, p2 = 4, 0

    key = jax.random.PRNGKey(0)
    (kx, kx2, kw1, kb1, kw2, kb2,
     kw1b, kw2b, kw1c, kb1c, kw2c) = jax.random.split(key, 11)

    x = jax.random.normal(kx, (B, T, d_in), dtype=jnp.float32)
    # PyTorch Conv1d weight layout: (out_channels, in_channels, kernel_size).
    w1 = 0.1 * jax.random.normal(kw1, (d_hid, d_in, k1), dtype=jnp.float32)
    b1 = 0.1 * jax.random.normal(kb1, (d_hid,), dtype=jnp.float32)
    w2 = 0.1 * jax.random.normal(kw2, (d_in, d_hid, k2), dtype=jnp.float32)
    b2 = 0.1 * jax.random.normal(kb2, (d_in,), dtype=jnp.float32)
    gamma = jnp.ones((d_in,), dtype=jnp.float32)
    beta = jnp.zeros((d_in,), dtype=jnp.float32)

    ref = reference_ffn(x, w1, b1, w2, b2, gamma, beta, pads=(p1, p2))

    # 1) exact-precision path (f32 MXU operands, per-tap conv) — tight check.
    out_f32 = positionwise_ffn(x, w1, b1, w2, b2, gamma, beta,
                               fft_conv1d_kernel=(k1, k2),
                               fft_conv1d_padding=(p1, p2),
                               mxu_dtype=jnp.float32, fuse_taps=False)
    out_f32 = jax.block_until_ready(out_f32)
    assert out_f32.shape == (B, T, d_in)
    assert jnp.allclose(out_f32, ref, atol=1e-4, rtol=1e-4), "f32 path mismatch"

    # 2) fast path (bf16 MXU, fused-tap im2col matmul, time axis tiled in two).
    out_fast = positionwise_ffn(x, w1, b1, w2, b2, gamma, beta,
                                fft_conv1d_kernel=(k1, k2),
                                fft_conv1d_padding=(p1, p2),
                                tile_t=8)     # grid = (B, 2, 1)
    out_fast = jax.block_until_ready(out_fast)
    assert out_fast.shape == (B, T, d_in)
    assert jnp.allclose(out_fast, ref, atol=5e-2, rtol=5e-2), "bf16 path mismatch"

    # 3) ragged sequence length (T not a multiple of the tile) — f32, fused.
    T2 = 20
    x2 = jax.random.normal(kx2, (B, T2, d_in), dtype=jnp.float32)
    ref2 = reference_ffn(x2, w1, b1, w2, b2, gamma, beta, pads=(p1, p2))
    out2 = positionwise_ffn(x2, w1, b1, w2, b2, gamma, beta,
                            fft_conv1d_kernel=(k1, k2),
                            fft_conv1d_padding=(p1, p2),
                            mxu_dtype=jnp.float32, tile_t=8)  # grid = (B, 3, 1)
    out2 = jax.block_until_ready(out2)
    assert out2.shape == (B, T2, d_in)
    assert jnp.allclose(out2, ref2, atol=1e-4, rtol=1e-4), "ragged-T mismatch"

    # 4) p2 > 0 path (conv #2 zero-padding of the hidden signal): k=(3,3), p=(1,1).
    w1b = 0.1 * jax.random.normal(kw1b, (d_hid, d_in, 3), dtype=jnp.float32)
    w2b = 0.1 * jax.random.normal(kw2b, (d_in, d_hid, 3), dtype=jnp.float32)
    refb = reference_ffn(x, w1b, b1, w2b, b2, gamma, beta, pads=(1, 1))
    outb = positionwise_ffn(x, w1b, b1, w2b, b2, gamma, beta,
                            fft_conv1d_kernel=(3, 3), fft_conv1d_padding=(1, 1),
                            mxu_dtype=jnp.float32, tile_t=8)  # grid = (B, 2, 1)
    outb = jax.block_until_ready(outb)
    assert outb.shape == (B, T, d_in)
    assert jnp.allclose(outb, refb, atol=1e-3, rtol=1e-3), "p2>0 path mismatch"

    # 5) d_hid-chunked accumulator path (NC = 2), f32, fused taps.
    d_hid2 = 256
    w1c = 0.1 * jax.random.normal(kw1c, (d_hid2, d_in, k1), dtype=jnp.float32)
    b1c = 0.1 * jax.random.normal(kb1c, (d_hid2,), dtype=jnp.float32)
    w2c = 0.1 * jax.random.normal(kw2c, (d_in, d_hid2, k2), dtype=jnp.float32)
    refc = reference_ffn(x, w1c, b1c, w2c, b2, gamma, beta, pads=(p1, p2))
    outc = positionwise_ffn(x, w1c, b1c, w2c, b2, gamma, beta,
                            fft_conv1d_kernel=(k1, k2),
                            fft_conv1d_padding=(p1, p2),
                            mxu_dtype=jnp.float32, tile_t=8,
                            hid_chunk=128)    # grid = (B, 2, 2)
    outc = jax.block_until_ready(outc)
    assert outc.shape == (B, T, d_in)
    assert jnp.allclose(outc, refc, atol=1e-3, rtol=1e-3), "chunked-d_hid mismatch"

    print("KERNEL_OK")
</pallas_src>

<mosaic_0001>
module attributes {stable_mosaic.version = 11 : i64} {
  func.func @_ffn_kernel(%arg0: i32, %arg1: i32, %arg2: i32, %arg3: memref<1x24x32xf32, #tpu.memory_space<vmem>>, %arg4: memref<9x32x64xf32, #tpu.memory_space<vmem>>, %arg5: memref<1x64xf32, #tpu.memory_space<vmem>>, %arg6: memref<1x64x32xf32, #tpu.memory_space<vmem>>, %arg7: memref<1x32xf32, #tpu.memory_space<vmem>>, %arg8: memref<1x32xf32, #tpu.memory_space<vmem>>, %arg9: memref<1x32xf32, #tpu.memory_space<vmem>>, %arg10: memref<1x16x32xf32, #tpu.memory_space<vmem>>) attributes {dimension_semantics = [#tpu.dimension_semantics<parallel>, #tpu.dimension_semantics<parallel>, #tpu.dimension_semantics<arbitrary>], iteration_bounds = array<i64: 2, 1, 1>, scalar_prefetch = 0 : i64, scratch_operands = 0 : i64, tpu.core_type = #tpu.core_type<tc>, window_params = [{transform_indices = @transform_0, window_bounds = array<i64: 1, 24, 32>}, {pipeline_mode = #tpu.pipeline_mode<synchronous>, transform_indices = @transform_1, window_bounds = array<i64: 9, 32, 64>}, {pipeline_mode = #tpu.pipeline_mode<synchronous>, transform_indices = @transform_2, window_bounds = array<i64: 1, 64>}, {pipeline_mode = #tpu.pipeline_mode<synchronous>, transform_indices = @transform_3, window_bounds = array<i64: 1, 64, 32>}, {pipeline_mode = #tpu.pipeline_mode<synchronous>, transform_indices = @transform_4, window_bounds = array<i64: 1, 32>}, {pipeline_mode = #tpu.pipeline_mode<synchronous>, transform_indices = @transform_5, window_bounds = array<i64: 1, 32>}, {pipeline_mode = #tpu.pipeline_mode<synchronous>, transform_indices = @transform_6, window_bounds = array<i64: 1, 32>}, {transform_indices = @transform_7, window_bounds = array<i64: 1, 16, 32>}]} {
    %c16_i32 = arith.constant 16 : i32
    %0 = arith.muli %arg1, %c16_i32 : i32
    %1 = tpu.assume_multiple %0, 8 : i32
    %c0 = arith.constant 0 : index
    %2 = arith.index_cast %1 : i32 to index
    %c0_0 = arith.constant 0 : index
    %3 = vector.load %arg3[%c0, %2, %c0_0] : memref<1x24x32xf32, #tpu.memory_space<vmem>>, vector<1x24x32xf32>
    %4 = vector.shape_cast %3 : vector<1x24x32xf32> to vector<24x32xf32>
    %5 = vector.extract_strided_slice %4 {offsets = [0, 0], sizes = [16, 32], strides = [1, 1]} : vector<24x32xf32> to vector<16x32xf32>
    %c0_1 = arith.constant 0 : index
    %c0_2 = arith.constant 0 : index
    %c0_3 = arith.constant 0 : index
    %6 = vector.load %arg4[%c0_1, %c0_2, %c0_3] : memref<9x32x64xf32, #tpu.memory_space<vmem>>, vector<1x32x64xf32>
    %7 = vector.shape_cast %6 : vector<1x32x64xf32> to vector<32x64xf32>
    %cst = arith.constant dense<0.000000e+00> : vector<16x64xf32>
    %8 = tpu.matmul %5, %7, %cst {dimension_numbers = #tpu.dot_dimension_numbers<[1], [0], [0], [1], [0, 0, 1, 1], [], []>} : vector<16x32xf32>, vector<32x64xf32>, vector<16x64xf32> -> vector<16x64xf32>
    %9 = vector.extract_strided_slice %4 {offsets = [1, 0], sizes = [16, 32], strides = [1, 1]} : vector<24x32xf32> to vector<16x32xf32>
    %c1 = arith.constant 1 : index
    %c0_4 = arith.constant 0 : index
    %c0_5 = arith.constant 0 : index
    %10 = vector.load %arg4[%c1, %c0_4, %c0_5] : memref<9x32x64xf32, #tpu.memory_space<vmem>>, vector<1x32x64xf32>
    %11 = vector.shape_cast %10 : vector<1x32x64xf32> to vector<32x64xf32>
    %cst_6 = arith.constant dense<0.000000e+00> : vector<16x64xf32>
    %12 = tpu.matmul %9, %11, %cst_6 {dimension_numbers = #tpu.dot_dimension_numbers<[1], [0], [0], [1], [0, 0, 1, 1], [], []>} : vector<16x32xf32>, vector<32x64xf32>, vector<16x64xf32> -> vector<16x64xf32>
    %13 = arith.addf %8, %12 : vector<16x64xf32>
    %14 = vector.extract_strided_slice %4 {offsets = [2, 0], sizes = [16, 32], strides = [1, 1]} : vector<24x32xf32> to vector<16x32xf32>
    %c2 = arith.constant 2 : index
    %c0_7 = arith.constant 0 : index
    %c0_8 = arith.constant 0 : index
    %15 = vector.load %arg4[%c2, %c0_7, %c0_8] : memref<9x32x64xf32, #tpu.memory_space<vmem>>, vector<1x32x64xf32>
    %16 = vector.shape_cast %15 : vector<1x32x64xf32> to vector<32x64xf32>
    %cst_9 = arith.constant dense<0.000000e+00> : vector<16x64xf32>
    %17 = tpu.matmul %14, %16, %cst_9 {dimension_numbers = #tpu.dot_dimension_numbers<[1], [0], [0], [1], [0, 0, 1, 1], [], []>} : vector<16x32xf32>, vector<32x64xf32>, vector<16x64xf32> -> vector<16x64xf32>
    %18 = arith.addf %13, %17 : vector<16x64xf32>
    %19 = vector.extract_strided_slice %4 {offsets = [3, 0], sizes = [16, 32], strides = [1, 1]} : vector<24x32xf32> to vector<16x32xf32>
    %c3 = arith.constant 3 : index
    %c0_10 = arith.constant 0 : index
    %c0_11 = arith.constant 0 : index
    %20 = vector.load %arg4[%c3, %c0_10, %c0_11] : memref<9x32x64xf32, #tpu.memory_space<vmem>>, vector<1x32x64xf32>
    %21 = vector.shape_cast %20 : vector<1x32x64xf32> to vector<32x64xf32>
    %cst_12 = arith.constant dense<0.000000e+00> : vector<16x64xf32>
    %22 = tpu.matmul %19, %21, %cst_12 {dimension_numbers = #tpu.dot_dimension_numbers<[1], [0], [0], [1], [0, 0, 1, 1], [], []>} : vector<16x32xf32>, vector<32x64xf32>, vector<16x64xf32> -> vector<16x64xf32>
    %23 = arith.addf %18, %22 : vector<16x64xf32>
    %24 = vector.extract_strided_slice %4 {offsets = [4, 0], sizes = [16, 32], strides = [1, 1]} : vector<24x32xf32> to vector<16x32xf32>
    %c4 = arith.constant 4 : index
    %c0_13 = arith.constant 0 : index
    %c0_14 = arith.constant 0 : index
    %25 = vector.load %arg4[%c4, %c0_13, %c0_14] : memref<9x32x64xf32, #tpu.memory_space<vmem>>, vector<1x32x64xf32>
    %26 = vector.shape_cast %25 : vector<1x32x64xf32> to vector<32x64xf32>
    %cst_15 = arith.constant dense<0.000000e+00> : vector<16x64xf32>
    %27 = tpu.matmul %24, %26, %cst_15 {dimension_numbers = #tpu.dot_dimension_numbers<[1], [0], [0], [1], [0, 0, 1, 1], [], []>} : vector<16x32xf32>, vector<32x64xf32>, vector<16x64xf32> -> vector<16x64xf32>
    %28 = arith.addf %23, %27 : vector<16x64xf32>
    %29 = vector.extract_strided_slice %4 {offsets = [5, 0], sizes = [16, 32], strides = [1, 1]} : vector<24x32xf32> to vector<16x32xf32>
    %c5 = arith.constant 5 : index
    %c0_16 = arith.constant 0 : index
    %c0_17 = arith.constant 0 : index
    %30 = vector.load %arg4[%c5, %c0_16, %c0_17] : memref<9x32x64xf32, #tpu.memory_space<vmem>>, vector<1x32x64xf32>
    %31 = vector.shape_cast %30 : vector<1x32x64xf32> to vector<32x64xf32>
    %cst_18 = arith.constant dense<0.000000e+00> : vector<16x64xf32>
    %32 = tpu.matmul %29, %31, %cst_18 {dimension_numbers = #tpu.dot_dimension_numbers<[1], [0], [0], [1], [0, 0, 1, 1], [], []>} : vector<16x32xf32>, vector<32x64xf32>, vector<16x64xf32> -> vector<16x64xf32>
    %33 = arith.addf %28, %32 : vector<16x64xf32>
    %34 = vector.extract_strided_slice %4 {offsets = [6, 0], sizes = [16, 32], strides = [1, 1]} : vector<24x32xf32> to vector<16x32xf32>
    %c6 = arith.constant 6 : index
    %c0_19 = arith.constant 0 : index
    %c0_20 = arith.constant 0 : index
    %35 = vector.load %arg4[%c6, %c0_19, %c0_20] : memref<9x32x64xf32, #tpu.memory_space<vmem>>, vector<1x32x64xf32>
    %36 = vector.shape_cast %35 : vector<1x32x64xf32> to vector<32x64xf32>
    %cst_21 = arith.constant dense<0.000000e+00> : vector<16x64xf32>
    %37 = tpu.matmul %34, %36, %cst_21 {dimension_numbers = #tpu.dot_dimension_numbers<[1], [0], [0], [1], [0, 0, 1, 1], [], []>} : vector<16x32xf32>, vector<32x64xf32>, vector<16x64xf32> -> vector<16x64xf32>
    %38 = arith.addf %33, %37 : vector<16x64xf32>
    %39 = vector.extract_strided_slice %4 {offsets = [7, 0], sizes = [16, 32], strides = [1, 1]} : vector<24x32xf32> to vector<16x32xf32>
    %c7 = arith.constant 7 : index
    %c0_22 = arith.constant 0 : index
    %c0_23 = arith.constant 0 : index
    %40 = vector.load %arg4[%c7, %c0_22, %c0_23] : memref<9x32x64xf32, #tpu.memory_space<vmem>>, vector<1x32x64xf32>
    %41 = vector.shape_cast %40 : vector<1x32x64xf32> to vector<32x64xf32>
    %cst_24 = arith.constant dense<0.000000e+00> : vector<16x64xf32>
    %42 = tpu.matmul %39, %41, %cst_24 {dimension_numbers = #tpu.dot_dimension_numbers<[1], [0], [0], [1], [0, 0, 1, 1], [], []>} : vector<16x32xf32>, vector<32x64xf32>, vector<16x64xf32> -> vector<16x64xf32>
    %43 = arith.addf %38, %42 : vector<16x64xf32>
    %44 = vector.extract_strided_slice %4 {offsets = [8, 0], sizes = [16, 32], strides = [1, 1]} : vector<24x32xf32> to vector<16x32xf32>
    %c8 = arith.constant 8 : index
    %c0_25 = arith.constant 0 : index
    %c0_26 = arith.constant 0 : index
    %45 = vector.load %arg4[%c8, %c0_25, %c0_26] : memref<9x32x64xf32, #tpu.memory_space<vmem>>, vector<1x32x64xf32>
    %46 = vector.shape_cast %45 : vector<1x32x64xf32> to vector<32x64xf32>
    %cst_27 = arith.constant dense<0.000000e+00> : vector<16x64xf32>
    %47 = tpu.matmul %44, %46, %cst_27 {dimension_numbers = #tpu.dot_dimension_numbers<[1], [0], [0], [1], [0, 0, 1, 1], [], []>} : vector<16x32xf32>, vector<32x64xf32>, vector<16x64xf32> -> vector<16x64xf32>
    %48 = arith.addf %43, %47 : vector<16x64xf32>
    %c0_28 = arith.constant 0 : index
    %c0_29 = arith.constant 0 : index
    %49 = vector.load %arg5[%c0_28, %c0_29] : memref<1x64xf32, #tpu.memory_space<vmem>>, vector<1x64xf32>
    %50 = vector.broadcast %49 : vector<1x64xf32> to vector<16x64xf32>
    %51 = arith.addf %48, %50 : vector<16x64xf32>
    %cst_30 = arith.constant 0.000000e+00 : f32
    %52 = vector.broadcast %cst_30 : f32 to vector<16x64xf32>
    %53 = arith.maximumf %51, %52 : vector<16x64xf32>
    %c0_31 = arith.constant 0 : index
    %c0_32 = arith.constant 0 : index
    %c0_33 = arith.constant 0 : index
    %54 = vector.load %arg6[%c0_31, %c0_32, %c0_33] : memref<1x64x32xf32, #tpu.memory_space<vmem>>, vector<1x64x32xf32>
    %55 = vector.shape_cast %54 : vector<1x64x32xf32> to vector<64x32xf32>
    %cst_34 = arith.constant dense<0.000000e+00> : vector<16x32xf32>
    %56 = tpu.matmul %53, %55, %cst_34 {dimension_numbers = #tpu.dot_dimension_numbers<[1], [0], [0], [1], [0, 0, 1, 1], [], []>} : vector<16x64xf32>, vector<64x32xf32>, vector<16x32xf32> -> vector<16x32xf32>
    %c0_35 = arith.constant 0 : index
    %c0_36 = arith.constant 0 : index
    %57 = vector.load %arg7[%c0_35, %c0_36] : memref<1x32xf32, #tpu.memory_space<vmem>>, vector<1x32xf32>
    %58 = vector.broadcast %57 : vector<1x32xf32> to vector<16x32xf32>
    %59 = arith.addf %56, %58 : vector<16x32xf32>
    %60 = vector.extract_strided_slice %4 {offsets = [4, 0], sizes = [16, 32], strides = [1, 1]} : vector<24x32xf32> to vector<16x32xf32>
    %61 = arith.addf %59, %60 : vector<16x32xf32>
    %cst_37 = arith.constant dense<0.000000e+00> : vector<16xf32>
    %62 = vector.multi_reduction <add>, %61, %cst_37 [1] : vector<16x32xf32> to vector<16xf32>
    %63 = vector.shape_cast %62 : vector<16xf32> to vector<16x1xf32>
    %cst_38 = arith.constant 3.200000e+01 : f32
    %64 = vector.broadcast %cst_38 : f32 to vector<16x1xf32>
    %65 = arith.divf %63, %64 : vector<16x1xf32>
    %66 = vector.broadcast %65 : vector<16x1xf32> to vector<16x32xf32>
    %67 = arith.subf %61, %66 : vector<16x32xf32>
    %68 = arith.mulf %67, %67 : vector<16x32xf32>
    %cst_39 = arith.constant dense<0.000000e+00> : vector<16xf32>
    %69 = vector.multi_reduction <add>, %68, %cst_39 [1] : vector<16x32xf32> to vector<16xf32>
    %70 = vector.shape_cast %69 : vector<16xf32> to vector<16x1xf32>
    %cst_40 = arith.constant 3.200000e+01 : f32
    %71 = vector.broadcast %cst_40 : f32 to vector<16x1xf32>
    %72 = arith.divf %70, %71 : vector<16x1xf32>
    %cst_41 = arith.constant 9.99999974E-6 : f32
    %73 = vector.broadcast %cst_41 : f32 to vector<16x1xf32>
    %74 = arith.addf %72, %73 : vector<16x1xf32>
    %75 = math.rsqrt %74 : vector<16x1xf32>
    %76 = vector.broadcast %75 : vector<16x1xf32> to vector<16x32xf32>
    %77 = arith.mulf %67, %76 : vector<16x32xf32>
    %c0_42 = arith.constant 0 : index
    %c0_43 = arith.constant 0 : index
    %78 = vector.load %arg8[%c0_42, %c0_43] : memref<1x32xf32, #tpu.memory_space<vmem>>, vector<1x32xf32>
    %79 = vector.broadcast %78 : vector<1x32xf32> to vector<16x32xf32>
    %80 = arith.mulf %77, %79 : vector<16x32xf32>
    %c0_44 = arith.constant 0 : index
    %c0_45 = arith.constant 0 : index
    %81 = vector.load %arg9[%c0_44, %c0_45] : memref<1x32xf32, #tpu.memory_space<vmem>>, vector<1x32xf32>
    %82 = vector.broadcast %81 : vector<1x32xf32> to vector<16x32xf32>
    %83 = arith.addf %80, %82 : vector<16x32xf32>
    %c0_46 = arith.constant 0 : index
    %c0_47 = arith.constant 0 : index
    %c0_48 = arith.constant 0 : index
    %84 = vector.load %arg10[%c0_46, %c0_47, %c0_48] : memref<1x16x32xf32, #tpu.memory_space<vmem>>, vector<1x16x32xf32>
    %85 = vector.shape_cast %84 : vector<1x16x32xf32> to vector<16x32xf32>
    %86 = vector.shape_cast %83 : vector<16x32xf32> to vector<1x16x32xf32>
    tpu.vector_store %arg10[%c0_46, %c0_47, %c0_48], %86 {strides = array<i32>} : memref<1x16x32xf32, #tpu.memory_space<vmem>>, vector<1x16x32xf32>,
    return
  }
  func.func @transform_0(%arg0: i32, %arg1: i32, %arg2: i32) -> (i32, i32, i32) {
    %c0_i32 = arith.constant 0 : i32
    %c0_i32_0 = arith.constant 0 : i32
    %c0_i32_1 = arith.constant 0 : i32
    return %arg0, %c0_i32, %c0_i32_0 : i32, i32, i32
  }
  func.func @transform_1(%arg0: i32, %arg1: i32, %arg2: i32) -> (i32, i32, i32) {
    %c0_i32 = arith.constant 0 : i32
    %c0_i32_0 = arith.constant 0 : i32
    %c0_i32_1 = arith.constant 0 : i32
    return %c0_i32, %c0_i32_0, %arg2 : i32, i32, i32
  }
  func.func @transform_2(%arg0: i32, %arg1: i32, %arg2: i32) -> (i32, i32) {
    %c0_i32 = arith.constant 0 : i32
    %c0_i32_0 = arith.constant 0 : i32
    return %c0_i32, %arg2 : i32, i32
  }
  func.func @transform_3(%arg0: i32, %arg1: i32, %arg2: i32) -> (i32, i32, i32) {
    %c0_i32 = arith.constant 0 : i32
    %c0_i32_0 = arith.constant 0 : i32
    %c0_i32_1 = arith.constant 0 : i32
    return %c0_i32, %arg2, %c0_i32_0 : i32, i32, i32
  }
  func.func @transform_4(%arg0: i32, %arg1: i32, %arg2: i32) -> (i32, i32) {
    %c0_i32 = arith.constant 0 : i32
    %c0_i32_0 = arith.constant 0 : i32
    %c0_i32_1 = arith.constant 0 : i32
    return %c0_i32, %c0_i32_0 : i32, i32
  }
  func.func @transform_5(%arg0: i32, %arg1: i32, %arg2: i32) -> (i32, i32) {
    %c0_i32 = arith.constant 0 : i32
    %c0_i32_0 = arith.constant 0 : i32
    %c0_i32_1 = arith.constant 0 : i32
    return %c0_i32, %c0_i32_0 : i32, i32
  }
  func.func @transform_6(%arg0: i32, %arg1: i32, %arg2: i32) -> (i32, i32) {
    %c0_i32 = arith.constant 0 : i32
    %c0_i32_0 = arith.constant 0 : i32
    %c0_i32_1 = arith.constant 0 : i32
    return %c0_i32, %c0_i32_0 : i32, i32
  }
  func.func @transform_7(%arg0: i32, %arg1: i32, %arg2: i32) -> (i32, i32, i32) {
    %c0_i32 = arith.constant 0 : i32
    %c0_i32_0 = arith.constant 0 : i32
    return %arg0, %arg1, %c0_i32 : i32, i32, i32
  }
}

module attributes {stable_mosaic.version = 11 : i64} {
  func.func @_ffn_kernel(%arg0: i32, %arg1: i32, %arg2: i32, %arg3: memref<1x24x32xf32, #tpu.memory_space<vmem>>, %arg4: memref<9x32x64xf32, #tpu.memory_space<vmem>>, %arg5: memref<1x64xf32, #tpu.memory_space<vmem>>, %arg6: memref<1x64x32xf32, #tpu.memory_space<vmem>>, %arg7: memref<1x32xf32, #tpu.memory_space<vmem>>, %arg8: memref<1x32xf32, #tpu.memory_space<vmem>>, %arg9: memref<1x32xf32, #tpu.memory_space<vmem>>, %arg10: memref<1x16x32xf32, #tpu.memory_space<vmem>>) attributes {dimension_semantics = [#tpu.dimension_semantics<parallel>, #tpu.dimension_semantics<parallel>, #tpu.dimension_semantics<arbitrary>], iteration_bounds = array<i64: 2, 1, 1>, scalar_prefetch = 0 : i64, scratch_operands = 0 : i64, tpu.core_type = #tpu.core_type<tc>, window_params = [{transform_indices = @transform_0, window_bounds = array<i64: 1, 24, 32>}, {transform_indices = @transform_1, window_bounds = array<i64: 9, 32, 64>}, {transform_indices = @transform_2, window_bounds = array<i64: 1, 64>}, {transform_indices = @transform_3, window_bounds = array<i64: 1, 64, 32>}, {pipeline_mode = #tpu.pipeline_mode<synchronous>, transform_indices = @transform_4, window_bounds = array<i64: 1, 32>}, {pipeline_mode = #tpu.pipeline_mode<synchronous>, transform_indices = @transform_5, window_bounds = array<i64: 1, 32>}, {pipeline_mode = #tpu.pipeline_mode<synchronous>, transform_indices = @transform_6, window_bounds = array<i64: 1, 32>}, {transform_indices = @transform_7, window_bounds = array<i64: 1, 16, 32>}]} {
    %c16_i32 = arith.constant 16 : i32
    %0 = arith.muli %arg1, %c16_i32 : i32
    %1 = tpu.assume_multiple %0, 8 : i32
    %c0 = arith.constant 0 : index
    %2 = arith.index_cast %1 : i32 to index
    %c0_0 = arith.constant 0 : index
    %3 = vector.load %arg3[%c0, %2, %c0_0] : memref<1x24x32xf32, #tpu.memory_space<vmem>>, vector<1x24x32xf32>
    %4 = vector.shape_cast %3 : vector<1x24x32xf32> to vector<24x32xf32>
    %5 = vector.extract_strided_slice %4 {offsets = [0, 0], sizes = [16, 32], strides = [1, 1]} : vector<24x32xf32> to vector<16x32xf32>
    %c0_1 = arith.constant 0 : index
    %c0_2 = arith.constant 0 : index
    %c0_3 = arith.constant 0 : index
    %6 = vector.load %arg4[%c0_1, %c0_2, %c0_3] : memref<9x32x64xf32, #tpu.memory_space<vmem>>, vector<1x32x64xf32>
    %7 = vector.shape_cast %6 : vector<1x32x64xf32> to vector<32x64xf32>
    %cst = arith.constant dense<0.000000e+00> : vector<16x64xf32>
    %8 = tpu.matmul %5, %7, %cst {dimension_numbers = #tpu.dot_dimension_numbers<[1], [0], [0], [1], [0, 0, 1, 1], [], []>} : vector<16x32xf32>, vector<32x64xf32>, vector<16x64xf32> -> vector<16x64xf32>
    %9 = vector.extract_strided_slice %4 {offsets = [1, 0], sizes = [16, 32], strides = [1, 1]} : vector<24x32xf32> to vector<16x32xf32>
    %c1 = arith.constant 1 : index
    %c0_4 = arith.constant 0 : index
    %c0_5 = arith.constant 0 : index
    %10 = vector.load %arg4[%c1, %c0_4, %c0_5] : memref<9x32x64xf32, #tpu.memory_space<vmem>>, vector<1x32x64xf32>
    %11 = vector.shape_cast %10 : vector<1x32x64xf32> to vector<32x64xf32>
    %cst_6 = arith.constant dense<0.000000e+00> : vector<16x64xf32>
    %12 = tpu.matmul %9, %11, %cst_6 {dimension_numbers = #tpu.dot_dimension_numbers<[1], [0], [0], [1], [0, 0, 1, 1], [], []>} : vector<16x32xf32>, vector<32x64xf32>, vector<16x64xf32> -> vector<16x64xf32>
    %13 = arith.addf %8, %12 : vector<16x64xf32>
    %14 = vector.extract_strided_slice %4 {offsets = [2, 0], sizes = [16, 32], strides = [1, 1]} : vector<24x32xf32> to vector<16x32xf32>
    %c2 = arith.constant 2 : index
    %c0_7 = arith.constant 0 : index
    %c0_8 = arith.constant 0 : index
    %15 = vector.load %arg4[%c2, %c0_7, %c0_8] : memref<9x32x64xf32, #tpu.memory_space<vmem>>, vector<1x32x64xf32>
    %16 = vector.shape_cast %15 : vector<1x32x64xf32> to vector<32x64xf32>
    %cst_9 = arith.constant dense<0.000000e+00> : vector<16x64xf32>
    %17 = tpu.matmul %14, %16, %cst_9 {dimension_numbers = #tpu.dot_dimension_numbers<[1], [0], [0], [1], [0, 0, 1, 1], [], []>} : vector<16x32xf32>, vector<32x64xf32>, vector<16x64xf32> -> vector<16x64xf32>
    %18 = arith.addf %13, %17 : vector<16x64xf32>
    %19 = vector.extract_strided_slice %4 {offsets = [3, 0], sizes = [16, 32], strides = [1, 1]} : vector<24x32xf32> to vector<16x32xf32>
    %c3 = arith.constant 3 : index
    %c0_10 = arith.constant 0 : index
    %c0_11 = arith.constant 0 : index
    %20 = vector.load %arg4[%c3, %c0_10, %c0_11] : memref<9x32x64xf32, #tpu.memory_space<vmem>>, vector<1x32x64xf32>
    %21 = vector.shape_cast %20 : vector<1x32x64xf32> to vector<32x64xf32>
    %cst_12 = arith.constant dense<0.000000e+00> : vector<16x64xf32>
    %22 = tpu.matmul %19, %21, %cst_12 {dimension_numbers = #tpu.dot_dimension_numbers<[1], [0], [0], [1], [0, 0, 1, 1], [], []>} : vector<16x32xf32>, vector<32x64xf32>, vector<16x64xf32> -> vector<16x64xf32>
    %23 = arith.addf %18, %22 : vector<16x64xf32>
    %24 = vector.extract_strided_slice %4 {offsets = [4, 0], sizes = [16, 32], strides = [1, 1]} : vector<24x32xf32> to vector<16x32xf32>
    %c4 = arith.constant 4 : index
    %c0_13 = arith.constant 0 : index
    %c0_14 = arith.constant 0 : index
    %25 = vector.load %arg4[%c4, %c0_13, %c0_14] : memref<9x32x64xf32, #tpu.memory_space<vmem>>, vector<1x32x64xf32>
    %26 = vector.shape_cast %25 : vector<1x32x64xf32> to vector<32x64xf32>
    %cst_15 = arith.constant dense<0.000000e+00> : vector<16x64xf32>
    %27 = tpu.matmul %24, %26, %cst_15 {dimension_numbers = #tpu.dot_dimension_numbers<[1], [0], [0], [1], [0, 0, 1, 1], [], []>} : vector<16x32xf32>, vector<32x64xf32>, vector<16x64xf32> -> vector<16x64xf32>
    %28 = arith.addf %23, %27 : vector<16x64xf32>
    %29 = vector.extract_strided_slice %4 {offsets = [5, 0], sizes = [16, 32], strides = [1, 1]} : vector<24x32xf32> to vector<16x32xf32>
    %c5 = arith.constant 5 : index
    %c0_16 = arith.constant 0 : index
    %c0_17 = arith.constant 0 : index
    %30 = vector.load %arg4[%c5, %c0_16, %c0_17] : memref<9x32x64xf32, #tpu.memory_space<vmem>>, vector<1x32x64xf32>
    %31 = vector.shape_cast %30 : vector<1x32x64xf32> to vector<32x64xf32>
    %cst_18 = arith.constant dense<0.000000e+00> : vector<16x64xf32>
    %32 = tpu.matmul %29, %31, %cst_18 {dimension_numbers = #tpu.dot_dimension_numbers<[1], [0], [0], [1], [0, 0, 1, 1], [], []>} : vector<16x32xf32>, vector<32x64xf32>, vector<16x64xf32> -> vector<16x64xf32>
    %33 = arith.addf %28, %32 : vector<16x64xf32>
    %34 = vector.extract_strided_slice %4 {offsets = [6, 0], sizes = [16, 32], strides = [1, 1]} : vector<24x32xf32> to vector<16x32xf32>
    %c6 = arith.constant 6 : index
    %c0_19 = arith.constant 0 : index
    %c0_20 = arith.constant 0 : index
    %35 = vector.load %arg4[%c6, %c0_19, %c0_20] : memref<9x32x64xf32, #tpu.memory_space<vmem>>, vector<1x32x64xf32>
    %36 = vector.shape_cast %35 : vector<1x32x64xf32> to vector<32x64xf32>
    %cst_21 = arith.constant dense<0.000000e+00> : vector<16x64xf32>
    %37 = tpu.matmul %34, %36, %cst_21 {dimension_numbers = #tpu.dot_dimension_numbers<[1], [0], [0], [1], [0, 0, 1, 1], [], []>} : vector<16x32xf32>, vector<32x64xf32>, vector<16x64xf32> -> vector<16x64xf32>
    %38 = arith.addf %33, %37 : vector<16x64xf32>
    %39 = vector.extract_strided_slice %4 {offsets = [7, 0], sizes = [16, 32], strides = [1, 1]} : vector<24x32xf32> to vector<16x32xf32>
    %c7 = arith.constant 7 : index
    %c0_22 = arith.constant 0 : index
    %c0_23 = arith.constant 0 : index
    %40 = vector.load %arg4[%c7, %c0_22, %c0_23] : memref<9x32x64xf32, #tpu.memory_space<vmem>>, vector<1x32x64xf32>
    %41 = vector.shape_cast %40 : vector<1x32x64xf32> to vector<32x64xf32>
    %cst_24 = arith.constant dense<0.000000e+00> : vector<16x64xf32>
    %42 = tpu.matmul %39, %41, %cst_24 {dimension_numbers = #tpu.dot_dimension_numbers<[1], [0], [0], [1], [0, 0, 1, 1], [], []>} : vector<16x32xf32>, vector<32x64xf32>, vector<16x64xf32> -> vector<16x64xf32>
    %43 = arith.addf %38, %42 : vector<16x64xf32>
    %44 = vector.extract_strided_slice %4 {offsets = [8, 0], sizes = [16, 32], strides = [1, 1]} : vector<24x32xf32> to vector<16x32xf32>
    %c8 = arith.constant 8 : index
    %c0_25 = arith.constant 0 : index
    %c0_26 = arith.constant 0 : index
    %45 = vector.load %arg4[%c8, %c0_25, %c0_26] : memref<9x32x64xf32, #tpu.memory_space<vmem>>, vector<1x32x64xf32>
    %46 = vector.shape_cast %45 : vector<1x32x64xf32> to vector<32x64xf32>
    %cst_27 = arith.constant dense<0.000000e+00> : vector<16x64xf32>
    %47 = tpu.matmul %44, %46, %cst_27 {dimension_numbers = #tpu.dot_dimension_numbers<[1], [0], [0], [1], [0, 0, 1, 1], [], []>} : vector<16x32xf32>, vector<32x64xf32>, vector<16x64xf32> -> vector<16x64xf32>
    %48 = arith.addf %43, %47 : vector<16x64xf32>
    %c0_28 = arith.constant 0 : index
    %c0_29 = arith.constant 0 : index
    %49 = vector.load %arg5[%c0_28, %c0_29] : memref<1x64xf32, #tpu.memory_space<vmem>>, vector<1x64xf32>
    %50 = vector.broadcast %49 : vector<1x64xf32> to vector<16x64xf32>
    %51 = arith.addf %48, %50 : vector<16x64xf32>
    %cst_30 = arith.constant 0.000000e+00 : f32
    %52 = vector.broadcast %cst_30 : f32 to vector<16x64xf32>
    %53 = arith.maximumf %51, %52 : vector<16x64xf32>
    %c0_31 = arith.constant 0 : index
    %c0_32 = arith.constant 0 : index
    %c0_33 = arith.constant 0 : index
    %54 = vector.load %arg6[%c0_31, %c0_32, %c0_33] : memref<1x64x32xf32, #tpu.memory_space<vmem>>, vector<1x64x32xf32>
    %55 = vector.shape_cast %54 : vector<1x64x32xf32> to vector<64x32xf32>
    %cst_34 = arith.constant dense<0.000000e+00> : vector<16x32xf32>
    %56 = tpu.matmul %53, %55, %cst_34 {dimension_numbers = #tpu.dot_dimension_numbers<[1], [0], [0], [1], [0, 0, 1, 1], [], []>} : vector<16x64xf32>, vector<64x32xf32>, vector<16x32xf32> -> vector<16x32xf32>
    %c0_35 = arith.constant 0 : index
    %c0_36 = arith.constant 0 : index
    %57 = vector.load %arg7[%c0_35, %c0_36] : memref<1x32xf32, #tpu.memory_space<vmem>>, vector<1x32xf32>
    %58 = vector.broadcast %57 : vector<1x32xf32> to vector<16x32xf32>
    %59 = arith.addf %56, %58 : vector<16x32xf32>
    %60 = vector.extract_strided_slice %4 {offsets = [4, 0], sizes = [16, 32], strides = [1, 1]} : vector<24x32xf32> to vector<16x32xf32>
    %61 = arith.addf %59, %60 : vector<16x32xf32>
    %cst_37 = arith.constant dense<0.000000e+00> : vector<16xf32>
    %62 = vector.multi_reduction <add>, %61, %cst_37 [1] : vector<16x32xf32> to vector<16xf32>
    %63 = vector.shape_cast %62 : vector<16xf32> to vector<16x1xf32>
    %cst_38 = arith.constant 3.200000e+01 : f32
    %64 = vector.broadcast %cst_38 : f32 to vector<16x1xf32>
    %65 = arith.divf %63, %64 : vector<16x1xf32>
    %66 = vector.broadcast %65 : vector<16x1xf32> to vector<16x32xf32>
    %67 = arith.subf %61, %66 : vector<16x32xf32>
    %68 = arith.mulf %67, %67 : vector<16x32xf32>
    %cst_39 = arith.constant dense<0.000000e+00> : vector<16xf32>
    %69 = vector.multi_reduction <add>, %68, %cst_39 [1] : vector<16x32xf32> to vector<16xf32>
    %70 = vector.shape_cast %69 : vector<16xf32> to vector<16x1xf32>
    %cst_40 = arith.constant 3.200000e+01 : f32
    %71 = vector.broadcast %cst_40 : f32 to vector<16x1xf32>
    %72 = arith.divf %70, %71 : vector<16x1xf32>
    %cst_41 = arith.constant 9.99999974E-6 : f32
    %73 = vector.broadcast %cst_41 : f32 to vector<16x1xf32>
    %74 = arith.addf %72, %73 : vector<16x1xf32>
    %75 = math.rsqrt %74 : vector<16x1xf32>
    %76 = vector.broadcast %75 : vector<16x1xf32> to vector<16x32xf32>
    %77 = arith.mulf %67, %76 : vector<16x32xf32>
    %c0_42 = arith.constant 0 : index
    %c0_43 = arith.constant 0 : index
    %78 = vector.load %arg8[%c0_42, %c0_43] : memref<1x32xf32, #tpu.memory_space<vmem>>, vector<1x32xf32>
    %79 = vector.broadcast %78 : vector<1x32xf32> to vector<16x32xf32>
    %80 = arith.mulf %77, %79 : vector<16x32xf32>
    %c0_44 = arith.constant 0 : index
    %c0_45 = arith.constant 0 : index
    %81 = vector.load %arg9[%c0_44, %c0_45] : memref<1x32xf32, #tpu.memory_space<vmem>>, vector<1x32xf32>
    %82 = vector.broadcast %81 : vector<1x32xf32> to vector<16x32xf32>
    %83 = arith.addf %80, %82 : vector<16x32xf32>
    %c0_46 = arith.constant 0 : index
    %c0_47 = arith.constant 0 : index
    %c0_48 = arith.constant 0 : index
    %84 = vector.load %arg10[%c0_46, %c0_47, %c0_48] : memref<1x16x32xf32, #tpu.memory_space<vmem>>, vector<1x16x32xf32>
    %85 = vector.shape_cast %84 : vector<1x16x32xf32> to vector<16x32xf32>
    %86 = vector.shape_cast %83 : vector<16x32xf32> to vector<1x16x32xf32>
    tpu.vector_store %arg10[%c0_46, %c0_47, %c0_48], %86 {strides = array<i32>} : memref<1x16x32xf32, #tpu.memory_space<vmem>>, vector<1x16x32xf32>,
    return
  }
  func.func @transform_0(%arg0: i32, %arg1: i32, %arg2: i32) -> (i32, i32, i32) {
    %c0_i32 = arith.constant 0 : i32
    %c0_i32_0 = arith.constant 0 : i32
    %c0_i32_1 = arith.constant 0 : i32
    return %arg0, %c0_i32, %c0_i32_0 : i32, i32, i32
  }
  func.func @transform_1(%arg0: i32, %arg1: i32, %arg2: i32) -> (i32, i32, i32) {
    %c0_i32 = arith.constant 0 : i32
    %c0_i32_0 = arith.constant 0 : i32
    %c0_i32_1 = arith.constant 0 : i32
    return %c0_i32, %c0_i32_0, %arg2 : i32, i32, i32
  }
  func.func @transform_2(%arg0: i32, %arg1: i32, %arg2: i32) -> (i32, i32) {
    %c0_i32 = arith.constant 0 : i32
    %c0_i32_0 = arith.constant 0 : i32
    return %c0_i32, %arg2 : i32, i32
  }
  func.func @transform_3(%arg0: i32, %arg1: i32, %arg2: i32) -> (i32, i32, i32) {
    %c0_i32 = arith.constant 0 : i32
    %c0_i32_0 = arith.constant 0 : i32
    %c0_i32_1 = arith.constant 0 : i32
    return %c0_i32, %arg2, %c0_i32_0 : i32, i32, i32
  }
  func.func @transform_4(%arg0: i32, %arg1: i32, %arg2: i32) -> (i32, i32) {
    %c0_i32 = arith.constant 0 : i32
    %c0_i32_0 = arith.constant 0 : i32
    %c0_i32_1 = arith.constant 0 : i32
    return %c0_i32, %c0_i32_0 : i32, i32
  }
  func.func @transform_5(%arg0: i32, %arg1: i32, %arg2: i32) -> (i32, i32) {
    %c0_i32 = arith.constant 0 : i32
    %c0_i32_0 = arith.constant 0 : i32
    %c0_i32_1 = arith.constant 0 : i32
    return %c0_i32, %c0_i32_0 : i32, i32
  }
  func.func @transform_6(%arg0: i32, %arg1: i32, %arg2: i32) -> (i32, i32) {
    %c0_i32 = arith.constant 0 : i32
    %c0_i32_0 = arith.constant 0 : i32
    %c0_i32_1 = arith.constant 0 : i32
    return %c0_i32, %c0_i32_0 : i32, i32
  }
  func.func @transform_7(%arg0: i32, %arg1: i32, %arg2: i32) -> (i32, i32, i32) {
    %c0_i32 = arith.constant 0 : i32
    %c0_i32_0 = arith.constant 0 : i32
    return %arg0, %arg1, %c0_i32 : i32, i32, i32
  }
}

</mosaic_0001>

<llo_original>
// kernel: tpu_custom_call.1
$region0: #{tpu_custom_call.1}
  #allocation0 [shape = 'u32[]', space=smem, size = 0x4, offset = 0x4, fixed_abs, tag = 'smem constant byte address 0x4 - core index']
  #allocation1 [shape = 'u32[144,128]{1,0:T(1,128)}', space=vmem, size = 0x12000, scoped, tag = 'internal scratch']
  %s0 = inlined_call_operand.vmem [shape: f32[2,24,32], index: 0, kind: input, shape index: {}]
  %s1 = inlined_call_operand.hbm [shape: f32[9,32,64], index: 1, kind: input, shape index: {}]
  %s2 = inlined_call_operand.vmem [shape: f32[1,64], index: 2, kind: input, shape index: {}]
  %s3 = inlined_call_operand.vmem [shape: f32[1,64,32], index: 3, kind: input, shape index: {}]
  %s4 = inlined_call_operand.vmem [shape: f32[1,32], index: 4, kind: input, shape index: {}]
  %s5 = inlined_call_operand.vmem [shape: f32[1,32], index: 5, kind: input, shape index: {}]
  %s6 = inlined_call_operand.vmem [shape: f32[1,32], index: 6, kind: input, shape index: {}]
  %s7 = inlined_call_operand.hbm [shape: f32[2,16,32], index: 7, kind: output, shape index: {}]
  %s8 = sld [smem:[#allocation0]]
  $region65: #{tpu_custom_call.1} parent=0
    _
  %s10 = ssub.s32 1, %s8
  %s11 = scalar_select 0, %s10, %s8
  $region1: #{tpu_custom_call.1} parent=0
    #allocation2 [shape = 'u8[147456]{0}', space=vmem, size = 0x24000, scoped, tag = 'input window, operand 1, single buffered']
    #allocation3 [shape = 's32[2]{0}', space=sflag, size = 0x8, scoped, tag = 'scoped memory for tpu_custom_call.1']
    #allocation4 [shape = 's32[2]{0}', space=sflag, size = 0x8, scoped, tag = 'scoped memory for tpu_custom_call.1']
    #allocation5 [shape = 'u8[16384]{0}', space=vmem, size = 0x4000, scoped, tag = 'output window, operand 0']
    %12 = vsyncpa [#allocation3], 0
    %13 = vsyncpa [#allocation4], 0
    %s14 = scalar_lea.sflag [#allocation4], 1
    %15 = vsyncpa %s14, 0
    loop: start=0, step=1, limit=4
    $region2: #{tpu_custom_call.1} parent=1 // loop_pre_header
      _
    $region3: #{tpu_custom_call.1} parent=1 // loop_header
      %s17 = sphi 0, %s21
      %p18 = scmp.ge.s32.totalorder %s17, 4
      %s24 = sphi 0, %s43
      %s25 = sphi 0, %s39
      %s26 = sphi 0, %s35
      %s27 = sphi 0, %s24
      %s28 = sphi 0, %s25
      %s29 = sphi 0, %s26
      %s30 = sphi 0, %s27
      %s31 = sphi 0, %s28
      %s32 = sphi 0, %s29
      %s46 = sphi 0, %s48
      %s49 = sphi 0, %s46
      %s50 = sphi 0, %s49
      %s66 = sphi 0, %s50
      %s72 = sphi 0, %s74
      %s75 = sphi 0, %s72
      %s76 = sphi 0, %s75
      %s92 = sphi 0, %s76
      %s98 = sphi 0, %s100
      %s101 = sphi 0, %s98
      %s102 = sphi 0, %s101
      %s118 = sphi 0, %s102
      %s124 = sphi 0, %s126
      %s127 = sphi 0, %s124
      %s128 = sphi 0, %s127
      %s144 = sphi 0, %s128
      %s148 = sphi 0, %s148
      %s150 = sphi 0, %s148
      %s151 = sphi 0, %s150
      %s165 = sphi 0, %s151
      %s169 = sphi 0, %s169
      %s171 = sphi 0, %s169
      %s172 = sphi 0, %s171
      %s186 = sphi 0, %s172
      %s190 = sphi 0, %s190
      %s192 = sphi 0, %s190
      %s193 = sphi 0, %s192
      %s207 = sphi 0, %s193
      %s215 = sphi 0, %s217
      %s218 = sphi 0, %s215
      %s219 = sphi 0, %s218
      %s235 = sphi 0, %s219
    $region4: #{tpu_custom_call.1} parent=1 // loop_header_branch
      %20 = sbr.rel (%p18) target = $region8
    $region5: #{tpu_custom_call.1} parent=1 // loop_body
      %s22 = ssub.s32 %s17, 1
      %s23 = ssub.s32 %s17, 2
      %s33 = sadd.s32 1, %s26
      %p34 = scmp.ge.s32.totalorder %s33, 1
      %s35 = scalar_select %p34, 0, %s33
      %s36 = sadd.s32 1, %s25
      %s37 = scalar_select %p34, %s36, %s25
      %p38 = scmp.ge.s32.totalorder %s37, 1
      %s39 = scalar_select %p38, 0, %s37
      %s40 = sadd.s32 1, %s24
      %s41 = scalar_select %p38, %s40, %s24
      %p42 = scmp.ge.s32.totalorder %s41, 2
      %s43 = scalar_select %p42, 0, %s41
      %s44 = ssub.s32 %s24, %s43
      %p45 = scmp.eq.s32.totalorder %s44, 0
      %s47 = sadd.s32 %s46, 1
      %s48 = scalar_select %p45, %s46, %s47
      %p51 = pneg %p45
      %p52 = scmp.eq.s32.totalorder %s17, 1
      %p53 = por %p51, %p52
      %p54 = scmp.ne.s32.totalorder %s46, %s49
      %p55 = scmp.eq.s32.totalorder %s17, 0
      %p56 = por %p54, %p55
      %p57 = scmp.ne.s32.totalorder %s46, %s49
      %p58 = scmp.eq.s32.totalorder %s22, 1
      %p59 = por %p57, %p58
      %p60 = scmp.ne.s32.totalorder %s49, %s50
      %p61 = scmp.eq.s32.totalorder %s22, 0
      %p62 = por %p60, %p61
      %p63 = scmp.ne.s32.totalorder %s49, %s50
      %p64 = scmp.eq.s32.totalorder %s23, 1
      %p65 = por %p63, %p64
      %p67 = scmp.ne.s32.totalorder %s50, %s66
      %p68 = scmp.eq.s32.totalorder %s23, 0
      %p69 = por %p67, %p68
      %s70 = ssub.s32 %s26, %s35
      %p71 = scmp.eq.s32.totalorder %s70, 0
      %s73 = sadd.s32 %s72, 1
      %s74 = scalar_select %p71, %s72, %s73
      %p77 = pneg %p71
      %p78 = scmp.eq.s32.totalorder %s17, 1
      %p79 = por %p77, %p78
      %p80 = scmp.ne.s32.totalorder %s72, %s75
      %p81 = scmp.eq.s32.totalorder %s17, 0
      %p82 = por %p80, %p81
      %p83 = scmp.ne.s32.totalorder %s72, %s75
      %p84 = scmp.eq.s32.totalorder %s22, 1
      %p85 = por %p83, %p84
      %p86 = scmp.ne.s32.totalorder %s75, %s76
      %p87 = scmp.eq.s32.totalorder %s22, 0
      %p88 = por %p86, %p87
      %p89 = scmp.ne.s32.totalorder %s75, %s76
      %p90 = scmp.eq.s32.totalorder %s23, 1
      %p91 = por %p89, %p90
      %p93 = scmp.ne.s32.totalorder %s76, %s92
      %p94 = scmp.eq.s32.totalorder %s23, 0
      %p95 = por %p93, %p94
      %s96 = ssub.s32 %s26, %s35
      %p97 = scmp.eq.s32.totalorder %s96, 0
      %s99 = sadd.s32 %s98, 1
      %s100 = scalar_select %p97, %s98, %s99
      %p103 = pneg %p97
      %p104 = scmp.eq.s32.totalorder %s17, 1
      %p105 = por %p103, %p104
      %p106 = scmp.ne.s32.totalorder %s98, %s101
      %p107 = scmp.eq.s32.totalorder %s17, 0
      %p108 = por %p106, %p107
      %p109 = scmp.ne.s32.totalorder %s98, %s101
      %p110 = scmp.eq.s32.totalorder %s22, 1
      %p111 = por %p109, %p110
      %p112 = scmp.ne.s32.totalorder %s101, %s102
      %p113 = scmp.eq.s32.totalorder %s22, 0
      %p114 = por %p112, %p113
      %p115 = scmp.ne.s32.totalorder %s101, %s102
      %p116 = scmp.eq.s32.totalorder %s23, 1
      %p117 = por %p115, %p116
      %p119 = scmp.ne.s32.totalorder %s102, %s118
      %p120 = scmp.eq.s32.totalorder %s23, 0
      %p121 = por %p119, %p120
      %s122 = ssub.s32 %s26, %s35
      %p123 = scmp.eq.s32.totalorder %s122, 0
      %s125 = sadd.s32 %s124, 1
      %s126 = scalar_select %p123, %s124, %s125
      %p129 = pneg %p123
      %p130 = scmp.eq.s32.totalorder %s17, 1
      %p131 = por %p129, %p130
      %p132 = scmp.ne.s32.totalorder %s124, %s127
      %p133 = scmp.eq.s32.totalorder %s17, 0
      %p134 = por %p132, %p133
      %p135 = scmp.ne.s32.totalorder %s124, %s127
      %p136 = scmp.eq.s32.totalorder %s22, 1
      %p137 = por %p135, %p136
      %p138 = scmp.ne.s32.totalorder %s127, %s128
      %p139 = scmp.eq.s32.totalorder %s22, 0
      %p140 = por %p138, %p139
      %p141 = scmp.ne.s32.totalorder %s127, %s128
      %p142 = scmp.eq.s32.totalorder %s23, 1
      %p143 = por %p141, %p142
      %p145 = scmp.ne.s32.totalorder %s128, %s144
      %p146 = scmp.eq.s32.totalorder %s23, 0
      %p147 = por %p145, %p146
      %s149 = sadd.s32 %s148, 1
      %p152 = scmp.eq.s32.totalorder %s17, 1
      %p153 = scmp.ne.s32.totalorder %s148, %s150
      %p154 = scmp.eq.s32.totalorder %s17, 0
      %p155 = por %p153, %p154
      %p156 = scmp.ne.s32.totalorder %s148, %s150
      %p157 = scmp.eq.s32.totalorder %s22, 1
      %p158 = por %p156, %p157
      %p159 = scmp.ne.s32.totalorder %s150, %s151
      %p160 = scmp.eq.s32.totalorder %s22, 0
      %p161 = por %p159, %p160
      %p162 = scmp.ne.s32.totalorder %s150, %s151
      %p163 = scmp.eq.s32.totalorder %s23, 1
      %p164 = por %p162, %p163
      %p166 = scmp.ne.s32.totalorder %s151, %s165
      %p167 = scmp.eq.s32.totalorder %s23, 0
      %p168 = por %p166, %p167
      %s170 = sadd.s32 %s169, 1
      %p173 = scmp.eq.s32.totalorder %s17, 1
      %p174 = scmp.ne.s32.totalorder %s169, %s171
      %p175 = scmp.eq.s32.totalorder %s17, 0
      %p176 = por %p174, %p175
      %p177 = scmp.ne.s32.totalorder %s169, %s171
      %p178 = scmp.eq.s32.totalorder %s22, 1
      %p179 = por %p177, %p178
      %p180 = scmp.ne.s32.totalorder %s171, %s172
      %p181 = scmp.eq.s32.totalorder %s22, 0
      %p182 = por %p180, %p181
      %p183 = scmp.ne.s32.totalorder %s171, %s172
      %p184 = scmp.eq.s32.totalorder %s23, 1
      %p185 = por %p183, %p184
      %p187 = scmp.ne.s32.totalorder %s172, %s186
      %p188 = scmp.eq.s32.totalorder %s23, 0
      %p189 = por %p187, %p188
      %s191 = sadd.s32 %s190, 1
      %p194 = scmp.eq.s32.totalorder %s17, 1
      %p195 = scmp.ne.s32.totalorder %s190, %s192
      %p196 = scmp.eq.s32.totalorder %s17, 0
      %p197 = por %p195, %p196
      %p198 = scmp.ne.s32.totalorder %s190, %s192
      %p199 = scmp.eq.s32.totalorder %s22, 1
      %p200 = por %p198, %p199
      %p201 = scmp.ne.s32.totalorder %s192, %s193
      %p202 = scmp.eq.s32.totalorder %s22, 0
      %p203 = por %p201, %p202
      %p204 = scmp.ne.s32.totalorder %s192, %s193
      %p205 = scmp.eq.s32.totalorder %s23, 1
      %p206 = por %p204, %p205
      %p208 = scmp.ne.s32.totalorder %s193, %s207
      %p209 = scmp.eq.s32.totalorder %s23, 0
      %p210 = por %p208, %p209
      %s211 = ssub.s32 %s24, %s43
      %s212 = ssub.s32 %s25, %s39
      %s213 = sor.u32 %s211, %s212
      %p214 = scmp.eq.s32.totalorder %s213, 0
      %s216 = sadd.s32 %s215, 1
      %s217 = scalar_select %p214, %s215, %s216
      %p220 = pneg %p214
      %p221 = scmp.eq.s32.totalorder %s17, 1
      %p222 = por %p220, %p221
      %p223 = scmp.ne.s32.totalorder %s215, %s218
      %p224 = scmp.eq.s32.totalorder %s17, 0
      %p225 = por %p223, %p224
      %p226 = scmp.ne.s32.totalorder %s215, %s218
      %p227 = scmp.eq.s32.totalorder %s22, 1
      %p228 = por %p226, %p227
      %p229 = scmp.ne.s32.totalorder %s218, %s219
      %p230 = scmp.eq.s32.totalorder %s22, 0
      %p231 = por %p229, %p230
      %p232 = scmp.ne.s32.totalorder %s218, %s219
      %p233 = scmp.eq.s32.totalorder %s23, 1
      %p234 = por %p232, %p233
      %p236 = scmp.ne.s32.totalorder %s219, %s235
      %p237 = scmp.eq.s32.totalorder %s23, 0
      %p238 = por %p236, %p237
      %p239 = scmp.le.s32.totalorder 1, %s17
      %p240 = scmp.lt.s32.totalorder %s17, 3
      %p241 = pnand %p239, %p240
      %p242 = pneg %p241
      // Predicated region
      $region9: #{tpu_custom_call.1} parent=5 // pred_check
        _
      $region10: #{tpu_custom_call.1} parent=5 // pred_check_branch
        %244 = sbr.rel (%p241) target = $region12
      $region11: #{tpu_custom_call.1} parent=5 // pred_region
        %s245 = ssub.s32 %s17, 1
        // Predicated region
        $region13: #{tpu_custom_call.1} parent=11 // pred_check
          %p246 = pneg %p88
        $region14: #{tpu_custom_call.1} parent=11 // pred_check_branch
          %248 = sbr.rel (%p246) target = $region16
        $region15: #{tpu_custom_call.1} parent=11 // pred_region
          %s250 = ssub.s32 4608, 4608
          %251 = vsyncadd [#allocation3], %s250
          %s252 = smul.addr %s29, 128
          %s253 = scalar_lea.hbm %s1, %s252
          %s254 = sshll.u32 [#allocation2], 4
          %s255 = int_to_ptr.vmem [resolvable:$true] %s254
          %260 = dma.hbm_to_vmem [thread:$0]  %s253, 4608, %s255, [#allocation3], 128, 128, 8
        $region16: #{tpu_custom_call.1} parent=11 // pred_fallthru
          _
        // Predicated region
        $region17: #{tpu_custom_call.1} parent=11 // pred_check
          %p261 = pneg %p114
        $region18: #{tpu_custom_call.1} parent=11 // pred_check_branch
          %263 = sbr.rel (%p261) target = $region20
        $region19: #{tpu_custom_call.1} parent=11 // pred_region
          %p264 = scmp.lt.s32.totalorder %s29, 0
          %s265 = scalar_select %p264, %s29, 0
          %s266 = scalar_lea.vmem %s2, %s265
        $region20: #{tpu_custom_call.1} parent=11 // pred_fallthru
          _
        // Predicated region
        $region21: #{tpu_custom_call.1} parent=11 // pred_check
          %p267 = pneg %p140
        $region22: #{tpu_custom_call.1} parent=11 // pred_check_branch
          %269 = sbr.rel (%p267) target = $region24
        $region23: #{tpu_custom_call.1} parent=11 // pred_region
          %s270 = smul.u32 8, %s29
          %p271 = scmp.lt.s32.totalorder %s270, 7
          %s272 = scalar_select %p271, %s270, 7
          %s273 = smul.addr %s272, 8
          %s274 = scalar_lea.vmem %s3, %s273
          %s275 = smul.u32 8, %s29
        $region24: #{tpu_custom_call.1} parent=11 // pred_fallthru
          _
        // Predicated region
        $region25: #{tpu_custom_call.1} parent=11 // pred_check
          %p276 = pneg %p161
        $region26: #{tpu_custom_call.1} parent=11 // pred_check_branch
          %278 = sbr.rel (%p276) target = $region28
        $region27: #{tpu_custom_call.1} parent=11 // pred_region
          _
        $region28: #{tpu_custom_call.1} parent=11 // pred_fallthru
          _
        // Predicated region
        $region29: #{tpu_custom_call.1} parent=11 // pred_check
          %p279 = pneg %p182
        $region30: #{tpu_custom_call.1} parent=11 // pred_check_branch
          %281 = sbr.rel (%p279) target = $region32
        $region31: #{tpu_custom_call.1} parent=11 // pred_region
          _
        $region32: #{tpu_custom_call.1} parent=11 // pred_fallthru
          _
        // Predicated region
        $region33: #{tpu_custom_call.1} parent=11 // pred_check
          %p282 = pneg %p203
        $region34: #{tpu_custom_call.1} parent=11 // pred_check_branch
          %284 = sbr.rel (%p282) target = $region36
        $region35: #{tpu_custom_call.1} parent=11 // pred_region
          _
        $region36: #{tpu_custom_call.1} parent=11 // pred_fallthru
          _
      $region12: #{tpu_custom_call.1} parent=5 // pred_fallthru
        _
      %p285 = scmp.lt.s32.totalorder %s17, 2
      // Predicated region
      $region37: #{tpu_custom_call.1} parent=5 // pred_check
        %p286 = pneg %p285
      $region38: #{tpu_custom_call.1} parent=5 // pred_check_branch
        %288 = sbr.rel (%p286) target = $region40
      $region39: #{tpu_custom_call.1} parent=5 // pred_region
        // Predicated region
        $region41: #{tpu_custom_call.1} parent=39 // pred_check
          %p289 = pneg %p56
        $region42: #{tpu_custom_call.1} parent=39 // pred_check_branch
          %291 = sbr.rel (%p289) target = $region44
        $region43: #{tpu_custom_call.1} parent=39 // pred_region
          %p292 = scmp.lt.s32.totalorder %s24, 1
          %s293 = scalar_select %p292, %s24, 1
          %s294 = smul.addr %s293, 3
          %s295 = smul.addr %s294, 8
          %s296 = scalar_lea.vmem %s0, %s295
        $region44: #{tpu_custom_call.1} parent=39 // pred_fallthru
          _
      $region40: #{tpu_custom_call.1} parent=5 // pred_fallthru
        _
      %p297 = scmp.le.s32.totalorder 1, %s17
      %p298 = scmp.lt.s32.totalorder %s17, 3
      %p299 = pnand %p297, %p298
      %p300 = pneg %p299
      // Predicated region
      $region45: #{tpu_custom_call.1} parent=5 // pred_check
        _
      $region46: #{tpu_custom_call.1} parent=5 // pred_check_branch
        %302 = sbr.rel (%p299) target = $region48
      $region47: #{tpu_custom_call.1} parent=5 // pred_region
        %s303 = ssub.s32 %s17, 1
        // Predicated region
        $region49: #{tpu_custom_call.1} parent=47 // pred_check
          %p304 = pneg %p88
        $region50: #{tpu_custom_call.1} parent=47 // pred_check_branch
          %306 = sbr.rel (%p304) target = $region52
        $region51: #{tpu_custom_call.1} parent=47 // pred_region
          %307 = dma.done [#allocation3], 4608
        $region52: #{tpu_custom_call.1} parent=47 // pred_fallthru
          _
        %p308 = scmp.lt.s32.totalorder %s27, 1
        %s309 = scalar_select %p308, %s27, 1
        %s310 = smul.addr %s309, 3
        %s311 = smul.addr %s310, 8
        %s312 = scalar_lea.vmem %s0, %s311
        %p313 = pneg %p62
        %p314 = pneg %p59
        %p315 = pneg %p88
        %p316 = pneg %p85
        %p317 = scmp.lt.s32.totalorder %s29, 0
        %s318 = scalar_select %p317, %s29, 0
        %s319 = scalar_lea.vmem %s2, %s318
        %p320 = pneg %p114
        %p321 = pneg %p111
        %s322 = smul.u32 8, %s29
        %p323 = scmp.lt.s32.totalorder %s322, 7
        %s324 = scalar_select %p323, %s322, 7
        %s325 = smul.addr %s324, 8
        %s326 = scalar_lea.vmem %s3, %s325
        %p327 = pneg %p140
        %p328 = pneg %p137
        %p329 = pneg %p161
        %p330 = pneg %p158
        %p331 = pneg %p182
        %p332 = pneg %p179
        %p333 = pneg %p203
        %p334 = pneg %p200
        %p335 = pneg %p231
        %p336 = pneg %p228
        %s337 = sand.u32 %s218, 1
        %s338 = scalar_lea.sflag [#allocation4], %s337
        %s339 = sand.u32 %s218, 1
        %s340 = smul.addr %s339, 16
        %s341 = scalar_lea.vmem [#allocation5], %s340
        %p342 = scmp.lt.s32.totalorder %s27, 1
        %s343 = scalar_select %p342, %s27, 1
        %s344 = smul.addr %s343, 3
        %s345 = smul.addr %s344, 8
        %s346 = scalar_lea.vmem %s0, %s345
        %p347 = scmp.lt.s32.totalorder %s29, 0
        %s348 = scalar_select %p347, %s29, 0
        %s349 = scalar_lea.vmem %s2, %s348
        %s350 = smul.u32 8, %s29
        %p351 = scmp.lt.s32.totalorder %s350, 7
        %s352 = scalar_select %p351, %s350, 7
        %s353 = smul.addr %s352, 8
        %s354 = scalar_lea.vmem %s3, %s353
        %s355 = smul.u32 8, %s29
        %s356 = smul.u32 2, %s28
        %s357 = smul.u32 %s28, 16
        %s358 = scalar_lea.vmem %s346, %s357
        %v359 = vld [vmem:[%s358] sm:$0xff]
        %v360 = vld [vmem:[%s358 + $0x8] sm:$0xff]
        %v361 = vld [vmem:[%s358 + $0x10] sm:$0xff]
        %v362 = vld [vmem:[#allocation2] sm:$0xff]
        %v363 = vld [vmem:[#allocation2 + $0x8] sm:$0xff]
        %v364 = vld [vmem:[#allocation2 + $0x10] sm:$0xff]
        %v365 = vld [vmem:[#allocation2 + $0x18] sm:$0xff]
        %s366 = scalar_lea.vmem [#allocation2], 32
        %v367 = vld [vmem:[%s366] sm:$0xff]
        %v368 = vld [vmem:[%s366 + $0x8] sm:$0xff]
        %v369 = vld [vmem:[%s366 + $0x10] sm:$0xff]
        %v370 = vld [vmem:[%s366 + $0x18] sm:$0xff]
        %vm374 = vcmask 1046528
        %v375 = vrot.slane %v359, 1
        %v376 = vrot.slane %v360, 1
        %v377 = vsel %vm374, %v375, %v376
        %v378 = vrot.slane %v361, 1
        %v379 = vsel %vm374, %v376, %v378
        %vm380 = vcmask 261120
        %v381 = vsel %vm380, %v377, 0
        %v383 = vsel %vm380, %v379, 0
        %385 = vmatprep.subr.mxu0 0.0
        %386 = vmatpush1.msra.mxu0 %v367
        %387 = vmatprep.subr.mxu0 0.0
        %388 = vmatpush1.msra.mxu0 %v368
        %389 = vmatprep.subr.mxu0 0.0
        %390 = vmatpush1.msra.mxu0 %v369
        %391 = vmatprep.subr.mxu0 0.0
        %392 = vmatpush1.msra.mxu0 %v370
        %393 = vmatprep.subr.mxu0 0.0
        %394 = vmatpush1.msra.mxu0 0.0
        %395 = vmatprep.subr.mxu0 0.0
        %396 = vmatpush1.msra.mxu0 0.0
        %397 = vmatprep.subr.mxu0 0.0
        %398 = vmatpush1.msra.mxu0 0.0
        %399 = vmatprep.subr.mxu0 0.0
        %400 = vmatpush1.msra.mxu0 0.0
        %401 = vmatprep.subr.mxu0 0.0
        %402 = vmatpush1.msra.mxu0 0.0
        %403 = vmatprep.subr.mxu0 0.0
        %404 = vmatpush1.msra.mxu0 0.0
        %405 = vmatprep.subr.mxu0 0.0
        %406 = vmatpush1.msra.mxu0 0.0
        %407 = vmatprep.subr.mxu0 0.0
        %408 = vmatpush1.msra.mxu0 0.0
        %409 = vmatprep.subr.mxu0 0.0
        %410 = vmatpush1.msra.mxu0 0.0
        %411 = vmatprep.subr.mxu0 0.0
        %412 = vmatpush1.msra.mxu0 0.0
        %413 = vmatprep.subr.mxu0 0.0
        %414 = vmatpush1.msra.mxu0 0.0
        %415 = vmatprep.subr.mxu0 0.0
        %416 = vmatpush1.msra.mxu0 0.0
        %417 = vmatprep.subr.mxu0 0.0
        %418 = vmatpush1.msra.mxu0 0.0
        %419 = vmatprep.subr.mxu0 0.0
        %420 = vmatpush1.msra.mxu0 0.0
        %421 = vmatprep.subr.mxu0 0.0
        %422 = vmatpush1.msra.mxu0 0.0
        %423 = vmatprep.subr.mxu0 0.0
        %424 = vmatpush1.msra.mxu0 0.0
        %425 = vmatprep.subr.mxu0 0.0
        %426 = vmatpush1.msra.mxu0 0.0
        %427 = vmatprep.subr.mxu0 0.0
        %428 = vmatpush1.msra.mxu0 0.0
        %429 = vmatprep.subr.mxu0 0.0
        %430 = vmatpush1.msra.mxu0 0.0
        %431 = vmatprep.subr.mxu0 0.0
        %432 = vmatpush1.msra.mxu0 0.0
        %433 = vmatprep.subr.mxu0 0.0
        %434 = vmatpush1.msra.mxu0 0.0
        %435 = vmatprep.subr.mxu0 0.0
        %436 = vmatpush1.msra.mxu0 0.0
        %437 = vmatprep.subr.mxu0 0.0
        %438 = vmatpush1.msra.mxu0 0.0
        %439 = vmatprep.subr.mxu0 0.0
        %440 = vmatpush1.msra.mxu0 0.0
        %441 = vmatprep.subr.mxu0 0.0
        %442 = vmatpush1.msra.mxu0 0.0
        %443 = vmatprep.subr.mxu0 0.0
        %444 = vmatpush1.msra.mxu0 0.0
        %445 = vmatprep.subr.mxu0 0.0
        %446 = vmatpush1.msra.mxu0 0.0
        %447 = vmatprep.subr.mxu0 0.0
        %448 = vmatpush1.msra.mxu0 0.0
        %449 = vmatprep.mubr.f32.mxu0 0.0
        %450 = vmatmul.mubr.f32.gmra.mrb[0].mxu0 %v381
        %v451 = vpop.f32.mrb[0].mxu0
        %v452 = vadd.f32 0.0, %v451
        %v453 = vpop.f32.mrb[0].mxu0
        %454 = vmatprep.mubr.f32.mxu0 0.0
        %455 = vmatmul.mubr.f32.gmra.mrb[0].mxu0 %v383
        %v456 = vpop.f32.mrb[0].mxu0
        %v457 = vadd.f32 0.0, %v456
        %v458 = vpop.f32.mrb[0].mxu0
        %459 = vdwg.mxu0
        %v460 = vsel %vm380, %v359, 0
        %v462 = vsel %vm380, %v360, 0
        %464 = vmatprep.subr.mxu0 0.0
        %465 = vmatpush1.msra.mxu0 %v362
        %466 = vmatprep.subr.mxu0 0.0
        %467 = vmatpush1.msra.mxu0 %v363
        %468 = vmatprep.subr.mxu0 0.0
        %469 = vmatpush1.msra.mxu0 %v364
        %470 = vmatprep.subr.mxu0 0.0
        %471 = vmatpush1.msra.mxu0 %v365
        %472 = vmatprep.subr.mxu0 0.0
        %473 = vmatpush1.msra.mxu0 0.0
        %474 = vmatprep.subr.mxu0 0.0
        %475 = vmatpush1.msra.mxu0 0.0
        %476 = vmatprep.subr.mxu0 0.0
        %477 = vmatpush1.msra.mxu0 0.0
        %478 = vmatprep.subr.mxu0 0.0
        %479 = vmatpush1.msra.mxu0 0.0
        %480 = vmatprep.subr.mxu0 0.0
        %481 = vmatpush1.msra.mxu0 0.0
        %482 = vmatprep.subr.mxu0 0.0
        %483 = vmatpush1.msra.mxu0 0.0
        %484 = vmatprep.subr.mxu0 0.0
        %485 = vmatpush1.msra.mxu0 0.0
        %486 = vmatprep.subr.mxu0 0.0
        %487 = vmatpush1.msra.mxu0 0.0
        %488 = vmatprep.subr.mxu0 0.0
        %489 = vmatpush1.msra.mxu0 0.0
        %490 = vmatprep.subr.mxu0 0.0
        %491 = vmatpush1.msra.mxu0 0.0
        %492 = vmatprep.subr.mxu0 0.0
        %493 = vmatpush1.msra.mxu0 0.0
        %494 = vmatprep.subr.mxu0 0.0
        %495 = vmatpush1.msra.mxu0 0.0
        %496 = vmatprep.subr.mxu0 0.0
        %497 = vmatpush1.msra.mxu0 0.0
        %498 = vmatprep.subr.mxu0 0.0
        %499 = vmatpush1.msra.mxu0 0.0
        %500 = vmatprep.subr.mxu0 0.0
        %501 = vmatpush1.msra.mxu0 0.0
        %502 = vmatprep.subr.mxu0 0.0
        %503 = vmatpush1.msra.mxu0 0.0
        %504 = vmatprep.subr.mxu0 0.0
        %505 = vmatpush1.msra.mxu0 0.0
        %506 = vmatprep.subr.mxu0 0.0
        %507 = vmatpush1.msra.mxu0 0.0
        %508 = vmatprep.subr.mxu0 0.0
        %509 = vmatpush1.msra.mxu0 0.0
        %510 = vmatprep.subr.mxu0 0.0
        %511 = vmatpush1.msra.mxu0 0.0
        %512 = vmatprep.subr.mxu0 0.0
        %513 = vmatpush1.msra.mxu0 0.0
        %514 = vmatprep.subr.mxu0 0.0
        %515 = vmatpush1.msra.mxu0 0.0
        %516 = vmatprep.subr.mxu0 0.0
        %517 = vmatpush1.msra.mxu0 0.0
        %518 = vmatprep.subr.mxu0 0.0
        %519 = vmatpush1.msra.mxu0 0.0
        %520 = vmatprep.subr.mxu0 0.0
        %521 = vmatpush1.msra.mxu0 0.0
        %522 = vmatprep.subr.mxu0 0.0
        %523 = vmatpush1.msra.mxu0 0.0
        %524 = vmatprep.subr.mxu0 0.0
        %525 = vmatpush1.msra.mxu0 0.0
        %526 = vmatprep.subr.mxu0 0.0
        %527 = vmatpush1.msra.mxu0 0.0
        %528 = vmatprep.mubr.f32.mxu0 0.0
        %529 = vmatmul.mubr.f32.gmra.mrb[0].mxu0 %v460
        %v530 = vpop.f32.mrb[0].mxu0
        %v531 = vadd.f32 %v452, %v530
        %v532 = vpop.f32.mrb[0].mxu0
        %533 = vmatprep.mubr.f32.mxu0 0.0
        %534 = vmatmul.mubr.f32.gmra.mrb[0].mxu0 %v462
        %v535 = vpop.f32.mrb[0].mxu0
        %v536 = vadd.f32 %v457, %v535
        %v537 = vpop.f32.mrb[0].mxu0
        %538 = vdwg.mxu0
        %s539 = scalar_lea.vmem [#allocation2], 64
        %v540 = vld [vmem:[%s539] sm:$0xff]
        %v541 = vld [vmem:[%s539 + $0x8] sm:$0xff]
        %v542 = vld [vmem:[%s539 + $0x10] sm:$0xff]
        %v543 = vld [vmem:[%s539 + $0x18] sm:$0xff]
        %vm544 = vcmask 1045504
        %v545 = vrot.slane %v359, 2
        %v546 = vrot.slane %v360, 2
        %v547 = vsel %vm544, %v545, %v546
        %v548 = vrot.slane %v361, 2
        %v549 = vsel %vm544, %v546, %v548
        %v550 = vsel %vm380, %v547, 0
        %v552 = vsel %vm380, %v549, 0
        %554 = vmatprep.subr.mxu0 0.0
        %555 = vmatpush1.msra.mxu0 %v540
        %556 = vmatprep.subr.mxu0 0.0
        %557 = vmatpush1.msra.mxu0 %v541
        %558 = vmatprep.subr.mxu0 0.0
        %559 = vmatpush1.msra.mxu0 %v542
        %560 = vmatprep.subr.mxu0 0.0
        %561 = vmatpush1.msra.mxu0 %v543
        %562 = vmatprep.subr.mxu0 0.0
        %563 = vmatpush1.msra.mxu0 0.0
        %564 = vmatprep.subr.mxu0 0.0
        %565 = vmatpush1.msra.mxu0 0.0
        %566 = vmatprep.subr.mxu0 0.0
        %567 = vmatpush1.msra.mxu0 0.0
        %568 = vmatprep.subr.mxu0 0.0
        %569 = vmatpush1.msra.mxu0 0.0
        %570 = vmatprep.subr.mxu0 0.0
        %571 = vmatpush1.msra.mxu0 0.0
        %572 = vmatprep.subr.mxu0 0.0
        %573 = vmatpush1.msra.mxu0 0.0
        %574 = vmatprep.subr.mxu0 0.0
        %575 = vmatpush1.msra.mxu0 0.0
        %576 = vmatprep.subr.mxu0 0.0
        %577 = vmatpush1.msra.mxu0 0.0
        %578 = vmatprep.subr.mxu0 0.0
        %579 = vmatpush1.msra.mxu0 0.0
        %580 = vmatprep.subr.mxu0 0.0
        %581 = vmatpush1.msra.mxu0 0.0
        %582 = vmatprep.subr.mxu0 0.0
        %583 = vmatpush1.msra.mxu0 0.0
        %584 = vmatprep.subr.mxu0 0.0
        %585 = vmatpush1.msra.mxu0 0.0
        %586 = vmatprep.subr.mxu0 0.0
        %587 = vmatpush1.msra.mxu0 0.0
        %588 = vmatprep.subr.mxu0 0.0
        %589 = vmatpush1.msra.mxu0 0.0
        %590 = vmatprep.subr.mxu0 0.0
        %591 = vmatpush1.msra.mxu0 0.0
        %592 = vmatprep.subr.mxu0 0.0
        %593 = vmatpush1.msra.mxu0 0.0
        %594 = vmatprep.subr.mxu0 0.0
        %595 = vmatpush1.msra.mxu0 0.0
        %596 = vmatprep.subr.mxu0 0.0
        %597 = vmatpush1.msra.mxu0 0.0
        %598 = vmatprep.subr.mxu0 0.0
        %599 = vmatpush1.msra.mxu0 0.0
        %600 = vmatprep.subr.mxu0 0.0
        %601 = vmatpush1.msra.mxu0 0.0
        %602 = vmatprep.subr.mxu0 0.0
        %603 = vmatpush1.msra.mxu0 0.0
        %604 = vmatprep.subr.mxu0 0.0
        %605 = vmatpush1.msra.mxu0 0.0
        %606 = vmatprep.subr.mxu0 0.0
        %607 = vmatpush1.msra.mxu0 0.0
        %608 = vmatprep.subr.mxu0 0.0
        %609 = vmatpush1.msra.mxu0 0.0
        %610 = vmatprep.subr.mxu0 0.0
        %611 = vmatpush1.msra.mxu0 0.0
        %612 = vmatprep.subr.mxu0 0.0
        %613 = vmatpush1.msra.mxu0 0.0
        %614 = vmatprep.subr.mxu0 0.0
        %615 = vmatpush1.msra.mxu0 0.0
        %616 = vmatprep.subr.mxu0 0.0
        %617 = vmatpush1.msra.mxu0 0.0
        %618 = vmatprep.mubr.f32.mxu0 0.0
        %619 = vmatmul.mubr.f32.gmra.mrb[0].mxu0 %v550
        %v620 = vpop.f32.mrb[0].mxu0
        %v621 = vadd.f32 0.0, %v620
        %v622 = vpop.f32.mrb[0].mxu0
        %623 = vmatprep.mubr.f32.mxu0 0.0
        %624 = vmatmul.mubr.f32.gmra.mrb[0].mxu0 %v552
        %v625 = vpop.f32.mrb[0].mxu0
        %v626 = vadd.f32 0.0, %v625
        %v627 = vpop.f32.mrb[0].mxu0
        %628 = vdwg.mxu0
        %v629 = vadd.f32 %v531, %v621
        %v630 = vadd.f32 %v536, %v626
        %s631 = scalar_lea.vmem [#allocation2], 96
        %v632 = vld [vmem:[%s631] sm:$0xff]
        %v633 = vld [vmem:[%s631 + $0x8] sm:$0xff]
        %v634 = vld [vmem:[%s631 + $0x10] sm:$0xff]
        %v635 = vld [vmem:[%s631 + $0x18] sm:$0xff]
        %vm636 = vcmask 1044480
        %v637 = vrot.slane %v359, 3
        %v638 = vrot.slane %v360, 3
        %v639 = vsel %vm636, %v637, %v638
        %v640 = vrot.slane %v361, 3
        %v641 = vsel %vm636, %v638, %v640
        %v642 = vsel %vm380, %v639, 0
        %v644 = vsel %vm380, %v641, 0
        %646 = vmatprep.subr.mxu0 0.0
        %647 = vmatpush1.msra.mxu0 %v632
        %648 = vmatprep.subr.mxu0 0.0
        %649 = vmatpush1.msra.mxu0 %v633
        %650 = vmatprep.subr.mxu0 0.0
        %651 = vmatpush1.msra.mxu0 %v634
        %652 = vmatprep.subr.mxu0 0.0
        %653 = vmatpush1.msra.mxu0 %v635
        %654 = vmatprep.subr.mxu0 0.0
        %655 = vmatpush1.msra.mxu0 0.0
        %656 = vmatprep.subr.mxu0 0.0
        %657 = vmatpush1.msra.mxu0 0.0
        %658 = vmatprep.subr.mxu0 0.0
        %659 = vmatpush1.msra.mxu0 0.0
        %660 = vmatprep.subr.mxu0 0.0
        %661 = vmatpush1.msra.mxu0 0.0
        %662 = vmatprep.subr.mxu0 0.0
        %663 = vmatpush1.msra.mxu0 0.0
        %664 = vmatprep.subr.mxu0 0.0
        %665 = vmatpush1.msra.mxu0 0.0
        %666 = vmatprep.subr.mxu0 0.0
        %667 = vmatpush1.msra.mxu0 0.0
        %668 = vmatprep.subr.mxu0 0.0
        %669 = vmatpush1.msra.mxu0 0.0
        %670 = vmatprep.subr.mxu0 0.0
        %671 = vmatpush1.msra.mxu0 0.0
        %672 = vmatprep.subr.mxu0 0.0
        %673 = vmatpush1.msra.mxu0 0.0
        %674 = vmatprep.subr.mxu0 0.0
        %675 = vmatpush1.msra.mxu0 0.0
        %676 = vmatprep.subr.mxu0 0.0
        %677 = vmatpush1.msra.mxu0 0.0
        %678 = vmatprep.subr.mxu0 0.0
        %679 = vmatpush1.msra.mxu0 0.0
        %680 = vmatprep.subr.mxu0 0.0
        %681 = vmatpush1.msra.mxu0 0.0
        %682 = vmatprep.subr.mxu0 0.0
        %683 = vmatpush1.msra.mxu0 0.0
        %684 = vmatprep.subr.mxu0 0.0
        %685 = vmatpush1.msra.mxu0 0.0
        %686 = vmatprep.subr.mxu0 0.0
        %687 = vmatpush1.msra.mxu0 0.0
        %688 = vmatprep.subr.mxu0 0.0
        %689 = vmatpush1.msra.mxu0 0.0
        %690 = vmatprep.subr.mxu0 0.0
        %691 = vmatpush1.msra.mxu0 0.0
        %692 = vmatprep.subr.mxu0 0.0
        %693 = vmatpush1.msra.mxu0 0.0
        %694 = vmatprep.subr.mxu0 0.0
        %695 = vmatpush1.msra.mxu0 0.0
        %696 = vmatprep.subr.mxu0 0.0
        %697 = vmatpush1.msra.mxu0 0.0
        %698 = vmatprep.subr.mxu0 0.0
        %699 = vmatpush1.msra.mxu0 0.0
        %700 = vmatprep.subr.mxu0 0.0
        %701 = vmatpush1.msra.mxu0 0.0
        %702 = vmatprep.subr.mxu0 0.0
        %703 = vmatpush1.msra.mxu0 0.0
        %704 = vmatprep.subr.mxu0 0.0
        %705 = vmatpush1.msra.mxu0 0.0
        %706 = vmatprep.subr.mxu0 0.0
        %707 = vmatpush1.msra.mxu0 0.0
        %708 = vmatprep.subr.mxu0 0.0
        %709 = vmatpush1.msra.mxu0 0.0
        %710 = vmatprep.mubr.f32.mxu0 0.0
        %711 = vmatmul.mubr.f32.gmra.mrb[0].mxu0 %v642
        %v712 = vpop.f32.mrb[0].mxu0
        %v713 = vadd.f32 0.0, %v712
        %v714 = vpop.f32.mrb[0].mxu0
        %715 = vmatprep.mubr.f32.mxu0 0.0
        %716 = vmatmul.mubr.f32.gmra.mrb[0].mxu0 %v644
        %v717 = vpop.f32.mrb[0].mxu0
        %v718 = vadd.f32 0.0, %v717
        %v719 = vpop.f32.mrb[0].mxu0
        %720 = vdwg.mxu0
        %v721 = vadd.f32 %v629, %v713
        %v722 = vadd.f32 %v630, %v718
        %s723 = scalar_lea.vmem [#allocation2], 128
        %v724 = vld [vmem:[%s723] sm:$0xff]
        %v725 = vld [vmem:[%s723 + $0x8] sm:$0xff]
        %v726 = vld [vmem:[%s723 + $0x10] sm:$0xff]
        %v727 = vld [vmem:[%s723 + $0x18] sm:$0xff]
        %vm728 = vcmask 1043456
        %v729 = vrot.slane %v359, 4
        %v730 = vrot.slane %v360, 4
        %v731 = vsel %vm728, %v729, %v730
        %v732 = vrot.slane %v361, 4
        %v733 = vsel %vm728, %v730, %v732
        %v734 = vsel %vm380, %v731, 0
        %v736 = vsel %vm380, %v733, 0
        %738 = vmatprep.subr.mxu0 0.0
        %739 = vmatpush1.msra.mxu0 %v724
        %740 = vmatprep.subr.mxu0 0.0
        %741 = vmatpush1.msra.mxu0 %v725
        %742 = vmatprep.subr.mxu0 0.0
        %743 = vmatpush1.msra.mxu0 %v726
        %744 = vmatprep.subr.mxu0 0.0
        %745 = vmatpush1.msra.mxu0 %v727
        %746 = vmatprep.subr.mxu0 0.0
        %747 = vmatpush1.msra.mxu0 0.0
        %748 = vmatprep.subr.mxu0 0.0
        %749 = vmatpush1.msra.mxu0 0.0
        %750 = vmatprep.subr.mxu0 0.0
        %751 = vmatpush1.msra.mxu0 0.0
        %752 = vmatprep.subr.mxu0 0.0
        %753 = vmatpush1.msra.mxu0 0.0
        %754 = vmatprep.subr.mxu0 0.0
        %755 = vmatpush1.msra.mxu0 0.0
        %756 = vmatprep.subr.mxu0 0.0
        %757 = vmatpush1.msra.mxu0 0.0
        %758 = vmatprep.subr.mxu0 0.0
        %759 = vmatpush1.msra.mxu0 0.0
        %760 = vmatprep.subr.mxu0 0.0
        %761 = vmatpush1.msra.mxu0 0.0
        %762 = vmatprep.subr.mxu0 0.0
        %763 = vmatpush1.msra.mxu0 0.0
        %764 = vmatprep.subr.mxu0 0.0
        %765 = vmatpush1.msra.mxu0 0.0
        %766 = vmatprep.subr.mxu0 0.0
        %767 = vmatpush1.msra.mxu0 0.0
        %768 = vmatprep.subr.mxu0 0.0
        %769 = vmatpush1.msra.mxu0 0.0
        %770 = vmatprep.subr.mxu0 0.0
        %771 = vmatpush1.msra.mxu0 0.0
        %772 = vmatprep.subr.mxu0 0.0
        %773 = vmatpush1.msra.mxu0 0.0
        %774 = vmatprep.subr.mxu0 0.0
        %775 = vmatpush1.msra.mxu0 0.0
        %776 = vmatprep.subr.mxu0 0.0
        %777 = vmatpush1.msra.mxu0 0.0
        %778 = vmatprep.subr.mxu0 0.0
        %779 = vmatpush1.msra.mxu0 0.0
        %780 = vmatprep.subr.mxu0 0.0
        %781 = vmatpush1.msra.mxu0 0.0
        %782 = vmatprep.subr.mxu0 0.0
        %783 = vmatpush1.msra.mxu0 0.0
        %784 = vmatprep.subr.mxu0 0.0
        %785 = vmatpush1.msra.mxu0 0.0
        %786 = vmatprep.subr.mxu0 0.0
        %787 = vmatpush1.msra.mxu0 0.0
        %788 = vmatprep.subr.mxu0 0.0
        %789 = vmatpush1.msra.mxu0 0.0
        %790 = vmatprep.subr.mxu0 0.0
        %791 = vmatpush1.msra.mxu0 0.0
        %792 = vmatprep.subr.mxu0 0.0
        %793 = vmatpush1.msra.mxu0 0.0
        %794 = vmatprep.subr.mxu0 0.0
        %795 = vmatpush1.msra.mxu0 0.0
        %796 = vmatprep.subr.mxu0 0.0
        %797 = vmatpush1.msra.mxu0 0.0
        %798 = vmatprep.subr.mxu0 0.0
        %799 = vmatpush1.msra.mxu0 0.0
        %800 = vmatprep.subr.mxu0 0.0
        %801 = vmatpush1.msra.mxu0 0.0
        %802 = vmatprep.mubr.f32.mxu0 0.0
        %803 = vmatmul.mubr.f32.gmra.mrb[0].mxu0 %v734
        %v804 = vpop.f32.mrb[0].mxu0
        %v805 = vadd.f32 0.0, %v804
        %v806 = vpop.f32.mrb[0].mxu0
        %807 = vmatprep.mubr.f32.mxu0 0.0
        %808 = vmatmul.mubr.f32.gmra.mrb[0].mxu0 %v736
        %v809 = vpop.f32.mrb[0].mxu0
        %v810 = vadd.f32 0.0, %v809
        %v811 = vpop.f32.mrb[0].mxu0
        %812 = vdwg.mxu0
        %v813 = vadd.f32 %v721, %v805
        %v814 = vadd.f32 %v722, %v810
        %s815 = scalar_lea.vmem [#allocation2], 160
        %v816 = vld [vmem:[%s815] sm:$0xff]
        %v817 = vld [vmem:[%s815 + $0x8] sm:$0xff]
        %v818 = vld [vmem:[%s815 + $0x10] sm:$0xff]
        %v819 = vld [vmem:[%s815 + $0x18] sm:$0xff]
        %vm820 = vcmask 1042432
        %v821 = vrot.slane %v359, 5
        %v822 = vrot.slane %v360, 5
        %v823 = vsel %vm820, %v821, %v822
        %v824 = vrot.slane %v361, 5
        %v825 = vsel %vm820, %v822, %v824
        %v826 = vsel %vm380, %v823, 0
        %v828 = vsel %vm380, %v825, 0
        %830 = vmatprep.subr.mxu0 0.0
        %831 = vmatpush1.msra.mxu0 %v816
        %832 = vmatprep.subr.mxu0 0.0
        %833 = vmatpush1.msra.mxu0 %v817
        %834 = vmatprep.subr.mxu0 0.0
        %835 = vmatpush1.msra.mxu0 %v818
        %836 = vmatprep.subr.mxu0 0.0
        %837 = vmatpush1.msra.mxu0 %v819
        %838 = vmatprep.subr.mxu0 0.0
        %839 = vmatpush1.msra.mxu0 0.0
        %840 = vmatprep.subr.mxu0 0.0
        %841 = vmatpush1.msra.mxu0 0.0
        %842 = vmatprep.subr.mxu0 0.0
        %843 = vmatpush1.msra.mxu0 0.0
        %844 = vmatprep.subr.mxu0 0.0
        %845 = vmatpush1.msra.mxu0 0.0
        %846 = vmatprep.subr.mxu0 0.0
        %847 = vmatpush1.msra.mxu0 0.0
        %848 = vmatprep.subr.mxu0 0.0
        %849 = vmatpush1.msra.mxu0 0.0
        %850 = vmatprep.subr.mxu0 0.0
        %851 = vmatpush1.msra.mxu0 0.0
        %852 = vmatprep.subr.mxu0 0.0
        %853 = vmatpush1.msra.mxu0 0.0
        %854 = vmatprep.subr.mxu0 0.0
        %855 = vmatpush1.msra.mxu0 0.0
        %856 = vmatprep.subr.mxu0 0.0
        %857 = vmatpush1.msra.mxu0 0.0
        %858 = vmatprep.subr.mxu0 0.0
        %859 = vmatpush1.msra.mxu0 0.0
        %860 = vmatprep.subr.mxu0 0.0
        %861 = vmatpush1.msra.mxu0 0.0
        %862 = vmatprep.subr.mxu0 0.0
        %863 = vmatpush1.msra.mxu0 0.0
        %864 = vmatprep.subr.mxu0 0.0
        %865 = vmatpush1.msra.mxu0 0.0
        %866 = vmatprep.subr.mxu0 0.0
        %867 = vmatpush1.msra.mxu0 0.0
        %868 = vmatprep.subr.mxu0 0.0
        %869 = vmatpush1.msra.mxu0 0.0
        %870 = vmatprep.subr.mxu0 0.0
        %871 = vmatpush1.msra.mxu0 0.0
        %872 = vmatprep.subr.mxu0 0.0
        %873 = vmatpush1.msra.mxu0 0.0
        %874 = vmatprep.subr.mxu0 0.0
        %875 = vmatpush1.msra.mxu0 0.0
        %876 = vmatprep.subr.mxu0 0.0
        %877 = vmatpush1.msra.mxu0 0.0
        %878 = vmatprep.subr.mxu0 0.0
        %879 = vmatpush1.msra.mxu0 0.0
        %880 = vmatprep.subr.mxu0 0.0
        %881 = vmatpush1.msra.mxu0 0.0
        %882 = vmatprep.subr.mxu0 0.0
        %883 = vmatpush1.msra.mxu0 0.0
        %884 = vmatprep.subr.mxu0 0.0
        %885 = vmatpush1.msra.mxu0 0.0
        %886 = vmatprep.subr.mxu0 0.0
        %887 = vmatpush1.msra.mxu0 0.0
        %888 = vmatprep.subr.mxu0 0.0
        %889 = vmatpush1.msra.mxu0 0.0
        %890 = vmatprep.subr.mxu0 0.0
        %891 = vmatpush1.msra.mxu0 0.0
        %892 = vmatprep.subr.mxu0 0.0
        %893 = vmatpush1.msra.mxu0 0.0
        %894 = vmatprep.mubr.f32.mxu0 0.0
        %895 = vmatmul.mubr.f32.gmra.mrb[0].mxu0 %v826
        %v896 = vpop.f32.mrb[0].mxu0
        %v897 = vadd.f32 0.0, %v896
        %v898 = vpop.f32.mrb[0].mxu0
        %899 = vmatprep.mubr.f32.mxu0 0.0
        %900 = vmatmul.mubr.f32.gmra.mrb[0].mxu0 %v828
        %v901 = vpop.f32.mrb[0].mxu0
        %v902 = vadd.f32 0.0, %v901
        %v903 = vpop.f32.mrb[0].mxu0
        %904 = vdwg.mxu0
        %v905 = vadd.f32 %v813, %v897
        %v906 = vadd.f32 %v814, %v902
        %s907 = scalar_lea.vmem [#allocation2], 192
        %v908 = vld [vmem:[%s907] sm:$0xff]
        %v909 = vld [vmem:[%s907 + $0x8] sm:$0xff]
        %v910 = vld [vmem:[%s907 + $0x10] sm:$0xff]
        %v911 = vld [vmem:[%s907 + $0x18] sm:$0xff]
        %vm912 = vcmask 1041408
        %v913 = vrot.slane %v359, 6
        %v914 = vrot.slane %v360, 6
        %v915 = vsel %vm912, %v913, %v914
        %v916 = vrot.slane %v361, 6
        %v917 = vsel %vm912, %v914, %v916
        %v918 = vsel %vm380, %v915, 0
        %v920 = vsel %vm380, %v917, 0
        %922 = vmatprep.subr.mxu0 0.0
        %923 = vmatpush1.msra.mxu0 %v908
        %924 = vmatprep.subr.mxu0 0.0
        %925 = vmatpush1.msra.mxu0 %v909
        %926 = vmatprep.subr.mxu0 0.0
        %927 = vmatpush1.msra.mxu0 %v910
        %928 = vmatprep.subr.mxu0 0.0
        %929 = vmatpush1.msra.mxu0 %v911
        %930 = vmatprep.subr.mxu0 0.0
        %931 = vmatpush1.msra.mxu0 0.0
        %932 = vmatprep.subr.mxu0 0.0
        %933 = vmatpush1.msra.mxu0 0.0
        %934 = vmatprep.subr.mxu0 0.0
        %935 = vmatpush1.msra.mxu0 0.0
        %936 = vmatprep.subr.mxu0 0.0
        %937 = vmatpush1.msra.mxu0 0.0
        %938 = vmatprep.subr.mxu0 0.0
        %939 = vmatpush1.msra.mxu0 0.0
        %940 = vmatprep.subr.mxu0 0.0
        %941 = vmatpush1.msra.mxu0 0.0
        %942 = vmatprep.subr.mxu0 0.0
        %943 = vmatpush1.msra.mxu0 0.0
        %944 = vmatprep.subr.mxu0 0.0
        %945 = vmatpush1.msra.mxu0 0.0
        %946 = vmatprep.subr.mxu0 0.0
        %947 = vmatpush1.msra.mxu0 0.0
        %948 = vmatprep.subr.mxu0 0.0
        %949 = vmatpush1.msra.mxu0 0.0
        %950 = vmatprep.subr.mxu0 0.0
        %951 = vmatpush1.msra.mxu0 0.0
        %952 = vmatprep.subr.mxu0 0.0
        %953 = vmatpush1.msra.mxu0 0.0
        %954 = vmatprep.subr.mxu0 0.0
        %955 = vmatpush1.msra.mxu0 0.0
        %956 = vmatprep.subr.mxu0 0.0
        %957 = vmatpush1.msra.mxu0 0.0
        %958 = vmatprep.subr.mxu0 0.0
        %959 = vmatpush1.msra.mxu0 0.0
        %960 = vmatprep.subr.mxu0 0.0
        %961 = vmatpush1.msra.mxu0 0.0
        %962 = vmatprep.subr.mxu0 0.0
        %963 = vmatpush1.msra.mxu0 0.0
        %964 = vmatprep.subr.mxu0 0.0
        %965 = vmatpush1.msra.mxu0 0.0
        %966 = vmatprep.subr.mxu0 0.0
        %967 = vmatpush1.msra.mxu0 0.0
        %968 = vmatprep.subr.mxu0 0.0
        %969 = vmatpush1.msra.mxu0 0.0
        %970 = vmatprep.subr.mxu0 0.0
        %971 = vmatpush1.msra.mxu0 0.0
        %972 = vmatprep.subr.mxu0 0.0
        %973 = vmatpush1.msra.mxu0 0.0
        %974 = vmatprep.subr.mxu0 0.0
        %975 = vmatpush1.msra.mxu0 0.0
        %976 = vmatprep.subr.mxu0 0.0
        %977 = vmatpush1.msra.mxu0 0.0
        %978 = vmatprep.subr.mxu0 0.0
        %979 = vmatpush1.msra.mxu0 0.0
        %980 = vmatprep.subr.mxu0 0.0
        %981 = vmatpush1.msra.mxu0 0.0
        %982 = vmatprep.subr.mxu0 0.0
        %983 = vmatpush1.msra.mxu0 0.0
        %984 = vmatprep.subr.mxu0 0.0
        %985 = vmatpush1.msra.mxu0 0.0
        %986 = vmatprep.mubr.f32.mxu0 0.0
        %987 = vmatmul.mubr.f32.gmra.mrb[0].mxu0 %v918
        %v988 = vpop.f32.mrb[0].mxu0
        %v989 = vadd.f32 0.0, %v988
        %v990 = vpop.f32.mrb[0].mxu0
        %991 = vmatprep.mubr.f32.mxu0 0.0
        %992 = vmatmul.mubr.f32.gmra.mrb[0].mxu0 %v920
        %v993 = vpop.f32.mrb[0].mxu0
        %v994 = vadd.f32 0.0, %v993
        %v995 = vpop.f32.mrb[0].mxu0
        %996 = vdwg.mxu0
        %v997 = vadd.f32 %v905, %v989
        %v998 = vadd.f32 %v906, %v994
        %s999 = scalar_lea.vmem [#allocation2], 224
        %v1000 = vld [vmem:[%s999] sm:$0xff]
        %v1001 = vld [vmem:[%s999 + $0x8] sm:$0xff]
        %v1002 = vld [vmem:[%s999 + $0x10] sm:$0xff]
        %v1003 = vld [vmem:[%s999 + $0x18] sm:$0xff]
        %vm1004 = vcmask 1040384
        %v1005 = vrot.slane %v359, 7
        %v1006 = vrot.slane %v360, 7
        %v1007 = vsel %vm1004, %v1005, %v1006
        %v1008 = vrot.slane %v361, 7
        %v1009 = vsel %vm1004, %v1006, %v1008
        %v1010 = vsel %vm380, %v1007, 0
        %v1012 = vsel %vm380, %v1009, 0
        %1014 = vmatprep.subr.mxu0 0.0
        %1015 = vmatpush1.msra.mxu0 %v1000
        %1016 = vmatprep.subr.mxu0 0.0
        %1017 = vmatpush1.msra.mxu0 %v1001
        %1018 = vmatprep.subr.mxu0 0.0
        %1019 = vmatpush1.msra.mxu0 %v1002
        %1020 = vmatprep.subr.mxu0 0.0
        %1021 = vmatpush1.msra.mxu0 %v1003
        %1022 = vmatprep.subr.mxu0 0.0
        %1023 = vmatpush1.msra.mxu0 0.0
        %1024 = vmatprep.subr.mxu0 0.0
        %1025 = vmatpush1.msra.mxu0 0.0
        %1026 = vmatprep.subr.mxu0 0.0
        %1027 = vmatpush1.msra.mxu0 0.0
        %1028 = vmatprep.subr.mxu0 0.0
        %1029 = vmatpush1.msra.mxu0 0.0
        %1030 = vmatprep.subr.mxu0 0.0
        %1031 = vmatpush1.msra.mxu0 0.0
        %1032 = vmatprep.subr.mxu0 0.0
        %1033 = vmatpush1.msra.mxu0 0.0
        %1034 = vmatprep.subr.mxu0 0.0
        %1035 = vmatpush1.msra.mxu0 0.0
        %1036 = vmatprep.subr.mxu0 0.0
        %1037 = vmatpush1.msra.mxu0 0.0
        %1038 = vmatprep.subr.mxu0 0.0
        %1039 = vmatpush1.msra.mxu0 0.0
        %1040 = vmatprep.subr.mxu0 0.0
        %1041 = vmatpush1.msra.mxu0 0.0
        %1042 = vmatprep.subr.mxu0 0.0
        %1043 = vmatpush1.msra.mxu0 0.0
        %1044 = vmatprep.subr.mxu0 0.0
        %1045 = vmatpush1.msra.mxu0 0.0
        %1046 = vmatprep.subr.mxu0 0.0
        %1047 = vmatpush1.msra.mxu0 0.0
        %1048 = vmatprep.subr.mxu0 0.0
        %1049 = vmatpush1.msra.mxu0 0.0
        %1050 = vmatprep.subr.mxu0 0.0
        %1051 = vmatpush1.msra.mxu0 0.0
        %1052 = vmatprep.subr.mxu0 0.0
        %1053 = vmatpush1.msra.mxu0 0.0
        %1054 = vmatprep.subr.mxu0 0.0
        %1055 = vmatpush1.msra.mxu0 0.0
        %1056 = vmatprep.subr.mxu0 0.0
        %1057 = vmatpush1.msra.mxu0 0.0
        %1058 = vmatprep.subr.mxu0 0.0
        %1059 = vmatpush1.msra.mxu0 0.0
        %1060 = vmatprep.subr.mxu0 0.0
        %1061 = vmatpush1.msra.mxu0 0.0
        %1062 = vmatprep.subr.mxu0 0.0
        %1063 = vmatpush1.msra.mxu0 0.0
        %1064 = vmatprep.subr.mxu0 0.0
        %1065 = vmatpush1.msra.mxu0 0.0
        %1066 = vmatprep.subr.mxu0 0.0
        %1067 = vmatpush1.msra.mxu0 0.0
        %1068 = vmatprep.subr.mxu0 0.0
        %1069 = vmatpush1.msra.mxu0 0.0
        %1070 = vmatprep.subr.mxu0 0.0
        %1071 = vmatpush1.msra.mxu0 0.0
        %1072 = vmatprep.subr.mxu0 0.0
        %1073 = vmatpush1.msra.mxu0 0.0
        %1074 = vmatprep.subr.mxu0 0.0
        %1075 = vmatpush1.msra.mxu0 0.0
        %1076 = vmatprep.subr.mxu0 0.0
        %1077 = vmatpush1.msra.mxu0 0.0
        %1078 = vmatprep.mubr.f32.mxu0 0.0
        %1079 = vmatmul.mubr.f32.gmra.mrb[0].mxu0 %v1010
        %v1080 = vpop.f32.mrb[0].mxu0
        %v1081 = vadd.f32 0.0, %v1080
        %v1082 = vpop.f32.mrb[0].mxu0
        %1083 = vmatprep.mubr.f32.mxu0 0.0
        %1084 = vmatmul.mubr.f32.gmra.mrb[0].mxu0 %v1012
        %v1085 = vpop.f32.mrb[0].mxu0
        %v1086 = vadd.f32 0.0, %v1085
        %v1087 = vpop.f32.mrb[0].mxu0
        %1088 = vdwg.mxu0
        %v1089 = vadd.f32 %v997, %v1081
        %v1090 = vadd.f32 %v998, %v1086
        %s1091 = scalar_lea.vmem [#allocation2], 256
        %v1092 = vld [vmem:[%s1091] sm:$0xff]
        %v1093 = vld [vmem:[%s1091 + $0x8] sm:$0xff]
        %v1094 = vld [vmem:[%s1091 + $0x10] sm:$0xff]
        %v1095 = vld [vmem:[%s1091 + $0x18] sm:$0xff]
        %v1096 = vsel %vm380, %v361, 0
        %1098 = vmatprep.subr.mxu0 0.0
        %1099 = vmatpush1.msra.mxu0 %v1092
        %1100 = vmatprep.subr.mxu0 0.0
        %1101 = vmatpush1.msra.mxu0 %v1093
        %1102 = vmatprep.subr.mxu0 0.0
        %1103 = vmatpush1.msra.mxu0 %v1094
        %1104 = vmatprep.subr.mxu0 0.0
        %1105 = vmatpush1.msra.mxu0 %v1095
        %1106 = vmatprep.subr.mxu0 0.0
        %1107 = vmatpush1.msra.mxu0 0.0
        %1108 = vmatprep.subr.mxu0 0.0
        %1109 = vmatpush1.msra.mxu0 0.0
        %1110 = vmatprep.subr.mxu0 0.0
        %1111 = vmatpush1.msra.mxu0 0.0
        %1112 = vmatprep.subr.mxu0 0.0
        %1113 = vmatpush1.msra.mxu0 0.0
        %1114 = vmatprep.subr.mxu0 0.0
        %1115 = vmatpush1.msra.mxu0 0.0
        %1116 = vmatprep.subr.mxu0 0.0
        %1117 = vmatpush1.msra.mxu0 0.0
        %1118 = vmatprep.subr.mxu0 0.0
        %1119 = vmatpush1.msra.mxu0 0.0
        %1120 = vmatprep.subr.mxu0 0.0
        %1121 = vmatpush1.msra.mxu0 0.0
        %1122 = vmatprep.subr.mxu0 0.0
        %1123 = vmatpush1.msra.mxu0 0.0
        %1124 = vmatprep.subr.mxu0 0.0
        %1125 = vmatpush1.msra.mxu0 0.0
        %1126 = vmatprep.subr.mxu0 0.0
        %1127 = vmatpush1.msra.mxu0 0.0
        %1128 = vmatprep.subr.mxu0 0.0
        %1129 = vmatpush1.msra.mxu0 0.0
        %1130 = vmatprep.subr.mxu0 0.0
        %1131 = vmatpush1.msra.mxu0 0.0
        %1132 = vmatprep.subr.mxu0 0.0
        %1133 = vmatpush1.msra.mxu0 0.0
        %1134 = vmatprep.subr.mxu0 0.0
        %1135 = vmatpush1.msra.mxu0 0.0
        %1136 = vmatprep.subr.mxu0 0.0
        %1137 = vmatpush1.msra.mxu0 0.0
        %1138 = vmatprep.subr.mxu0 0.0
        %1139 = vmatpush1.msra.mxu0 0.0
        %1140 = vmatprep.subr.mxu0 0.0
        %1141 = vmatpush1.msra.mxu0 0.0
        %1142 = vmatprep.subr.mxu0 0.0
        %1143 = vmatpush1.msra.mxu0 0.0
        %1144 = vmatprep.subr.mxu0 0.0
        %1145 = vmatpush1.msra.mxu0 0.0
        %1146 = vmatprep.subr.mxu0 0.0
        %1147 = vmatpush1.msra.mxu0 0.0
        %1148 = vmatprep.subr.mxu0 0.0
        %1149 = vmatpush1.msra.mxu0 0.0
        %1150 = vmatprep.subr.mxu0 0.0
        %1151 = vmatpush1.msra.mxu0 0.0
        %1152 = vmatprep.subr.mxu0 0.0
        %1153 = vmatpush1.msra.mxu0 0.0
        %1154 = vmatprep.subr.mxu0 0.0
        %1155 = vmatpush1.msra.mxu0 0.0
        %1156 = vmatprep.subr.mxu0 0.0
        %1157 = vmatpush1.msra.mxu0 0.0
        %1158 = vmatprep.subr.mxu0 0.0
        %1159 = vmatpush1.msra.mxu0 0.0
        %1160 = vmatprep.subr.mxu0 0.0
        %1161 = vmatpush1.msra.mxu0 0.0
        %1162 = vmatprep.mubr.f32.mxu0 0.0
        %1163 = vmatmul.mubr.f32.gmra.mrb[0].mxu0 %v462
        %v1164 = vpop.f32.mrb[0].mxu0
        %v1165 = vadd.f32 0.0, %v1164
        %v1166 = vpop.f32.mrb[0].mxu0
        %1167 = vmatprep.mubr.f32.mxu0 0.0
        %1168 = vmatmul.mubr.f32.gmra.mrb[0].mxu0 %v1096
        %v1169 = vpop.f32.mrb[0].mxu0
        %v1170 = vadd.f32 0.0, %v1169
        %v1171 = vpop.f32.mrb[0].mxu0
        %1172 = vdwg.mxu0
        %v1173 = vadd.f32 %v1089, %v1165
        %v1174 = vadd.f32 %v1090, %v1170
        %v1175 = vld [vmem:[%s349] sm:$0x1]
        %v1177 = vlaneseq
        %v1178 = vshrl.u32 %v1177, 7
        %v1179 = vsub.s32 0, %v1178
        %v1180 = vrot.slane %v1175, %v1179
        %v1182 = vadd.f32 %v1173, %v1180
        %v1183 = vadd.f32 %v1174, %v1180
        %v1184 = vmax.f32 %v1182, 0.0
        %v1185 = vmax.f32 %v1183, 0.0
        %v1186 = vld [vmem:[%s354] sm:$0xff]
        %v1187 = vld [vmem:[%s354 + $0x8] sm:$0xff]
        %v1188 = vld [vmem:[%s354 + $0x10] sm:$0xff]
        %v1189 = vld [vmem:[%s354 + $0x18] sm:$0xff]
        %v1190 = vld [vmem:[%s354 + $0x20] sm:$0xff]
        %v1191 = vld [vmem:[%s354 + $0x28] sm:$0xff]
        %v1192 = vld [vmem:[%s354 + $0x30] sm:$0xff]
        %v1193 = vld [vmem:[%s354 + $0x38] sm:$0xff]
        %v1194 = vld [vmem:[%s4] sm:$0x1]
        %v1196 = vlaneseq
        %v1197 = vshrl.u32 %v1196, 7
        %v1198 = vsub.s32 0, %v1197
        %v1199 = vrot.slane %v1194, %v1198
        %vm1201 = vcmask 523264
        %v1203 = vsel %vm1201, %v1184, 0
        %v1206 = vsel %vm1201, %v1185, 0
        %1208 = vmatprep.subr.mxu0 0.0
        %1209 = vmatpush1.msra.mxu0 %v1186
        %1210 = vmatprep.subr.mxu0 0.0
        %1211 = vmatpush1.msra.mxu0 %v1187
        %1212 = vmatprep.subr.mxu0 0.0
        %1213 = vmatpush1.msra.mxu0 %v1188
        %1214 = vmatprep.subr.mxu0 0.0
        %1215 = vmatpush1.msra.mxu0 %v1189
        %1216 = vmatprep.subr.mxu0 0.0
        %1217 = vmatpush1.msra.mxu0 %v1190
        %1218 = vmatprep.subr.mxu0 0.0
        %1219 = vmatpush1.msra.mxu0 %v1191
        %1220 = vmatprep.subr.mxu0 0.0
        %1221 = vmatpush1.msra.mxu0 %v1192
        %1222 = vmatprep.subr.mxu0 0.0
        %1223 = vmatpush1.msra.mxu0 %v1193
        %1224 = vmatprep.subr.mxu0 0.0
        %1225 = vmatpush1.msra.mxu0 0.0
        %1226 = vmatprep.subr.mxu0 0.0
        %1227 = vmatpush1.msra.mxu0 0.0
        %1228 = vmatprep.subr.mxu0 0.0
        %1229 = vmatpush1.msra.mxu0 0.0
        %1230 = vmatprep.subr.mxu0 0.0
        %1231 = vmatpush1.msra.mxu0 0.0
        %1232 = vmatprep.subr.mxu0 0.0
        %1233 = vmatpush1.msra.mxu0 0.0
        %1234 = vmatprep.subr.mxu0 0.0
        %1235 = vmatpush1.msra.mxu0 0.0
        %1236 = vmatprep.subr.mxu0 0.0
        %1237 = vmatpush1.msra.mxu0 0.0
        %1238 = vmatprep.subr.mxu0 0.0
        %1239 = vmatpush1.msra.mxu0 0.0
        %1240 = vmatprep.subr.mxu0 0.0
        %1241 = vmatpush1.msra.mxu0 0.0
        %1242 = vmatprep.subr.mxu0 0.0
        %1243 = vmatpush1.msra.mxu0 0.0
        %1244 = vmatprep.subr.mxu0 0.0
        %1245 = vmatpush1.msra.mxu0 0.0
        %1246 = vmatprep.subr.mxu0 0.0
        %1247 = vmatpush1.msra.mxu0 0.0
        %1248 = vmatprep.subr.mxu0 0.0
        %1249 = vmatpush1.msra.mxu0 0.0
        %1250 = vmatprep.subr.mxu0 0.0
        %1251 = vmatpush1.msra.mxu0 0.0
        %1252 = vmatprep.subr.mxu0 0.0
        %1253 = vmatpush1.msra.mxu0 0.0
        %1254 = vmatprep.subr.mxu0 0.0
        %1255 = vmatpush1.msra.mxu0 0.0
        %1256 = vmatprep.subr.mxu0 0.0
        %1257 = vmatpush1.msra.mxu0 0.0
        %1258 = vmatprep.subr.mxu0 0.0
        %1259 = vmatpush1.msra.mxu0 0.0
        %1260 = vmatprep.subr.mxu0 0.0
        %1261 = vmatpush1.msra.mxu0 0.0
        %1262 = vmatprep.subr.mxu0 0.0
        %1263 = vmatpush1.msra.mxu0 0.0
        %1264 = vmatprep.subr.mxu0 0.0
        %1265 = vmatpush1.msra.mxu0 0.0
        %1266 = vmatprep.subr.mxu0 0.0
        %1267 = vmatpush1.msra.mxu0 0.0
        %1268 = vmatprep.subr.mxu0 0.0
        %1269 = vmatpush1.msra.mxu0 0.0
        %1270 = vmatprep.subr.mxu0 0.0
        %1271 = vmatpush1.msra.mxu0 0.0
        %1272 = vmatprep.mubr.f32.mxu0 0.0
        %1273 = vmatmul.mubr.f32.gmra.mrb[0].mxu0 %v1203
        %v1274 = vpop.f32.mrb[0].mxu0
        %v1275 = vadd.f32 %v1199, %v1274
        %v1276 = vpop.f32.mrb[0].mxu0
        %1277 = vmatprep.mubr.f32.mxu0 0.0
        %1278 = vmatmul.mubr.f32.gmra.mrb[0].mxu0 %v1206
        %v1279 = vpop.f32.mrb[0].mxu0
        %v1280 = vadd.f32 %v1199, %v1279
        %v1281 = vpop.f32.mrb[0].mxu0
        %1282 = vdwg.mxu0
        %v1285 = vadd.f32 %v1275, %v731
        %v1286 = vadd.f32 %v1280, %v733
        %v1287 = vsel %vm380, %v1285, 0.0
        %1288 = vadd.xlane.f32.xlu0 %v1287
        %v1289 = vpop.xlane.xlu0 %1288
        %v1290 = vsel %vm380, %v1286, 0.0
        %1291 = vadd.xlane.f32.xlu0 %v1290
        %v1292 = vpop.xlane.xlu0 %1291
        %v1293 = vrcp.pop 32.0
        %v1294 = vmul.f32 %v1289, %v1293
        %v1295 = vmul.f32 %v1292, %v1293
        %v1296 = vsub.f32 %v1285, %v1294
        %v1297 = vsub.f32 %v1286, %v1295
        %v1298 = vmul.f32 %v1296, %v1296
        %v1299 = vmul.f32 %v1297, %v1297
        %v1300 = vsel %vm380, %v1298, 0.0
        %1301 = vadd.xlane.f32.xlu0 %v1300
        %v1302 = vpop.xlane.xlu0 %1301
        %v1303 = vsel %vm380, %v1299, 0.0
        %1304 = vadd.xlane.f32.xlu0 %v1303
        %v1305 = vpop.xlane.xlu0 %1304
        %v1306 = vmul.f32 %v1302, %v1293
        %v1307 = vmul.f32 %v1305, %v1293
        %v1308 = vadd.f32 %v1306, 1e-05
        %v1309 = vadd.f32 %v1307, 1e-05
        %v1310 = vrsqrt.pop %v1308
        %v1311 = vrsqrt.pop %v1309
        %v1312 = vmul.f32 %v1296, %v1310
        %v1313 = vmul.f32 %v1297, %v1311
        %v1314 = vld [vmem:[%s5] sm:$0x1]
        %v1316 = vlaneseq
        %v1317 = vshrl.u32 %v1316, 7
        %v1318 = vsub.s32 0, %v1317
        %v1319 = vrot.slane %v1314, %v1318
        %v1321 = vmul.f32 %v1312, %v1319
        %v1322 = vmul.f32 %v1313, %v1319
        %v1323 = vld [vmem:[%s6] sm:$0x1]
        %v1325 = vlaneseq
        %v1326 = vshrl.u32 %v1325, 7
        %v1327 = vsub.s32 0, %v1326
        %v1328 = vrot.slane %v1323, %v1327
        %v1330 = vadd.f32 %v1321, %v1328
        %v1331 = vadd.f32 %v1322, %v1328
        %1332 = vst.msk [vmem:[%s341] sm:$0xff] %vm380, %v1330
        %1333 = vst.msk [vmem:[%s341 + $0x8] sm:$0xff] %vm380, %v1331
        %s1334 = sand.u32 %s218, 1
        %s1335 = scalar_lea.sflag [#allocation4], %s1334
        %s1336 = sand.u32 %s218, 1
        %s1337 = smul.addr %s1336, 16
        %s1338 = scalar_lea.vmem [#allocation5], %s1337
        // Predicated region
        $region53: #{tpu_custom_call.1} parent=47 // pred_check
          %p1339 = pneg %p228
        $region54: #{tpu_custom_call.1} parent=47 // pred_check_branch
          %1341 = sbr.rel (%p1339) target = $region56
        $region55: #{tpu_custom_call.1} parent=47 // pred_region
          %s1342 = smul.u32 2, %s28
          %s1344 = ssub.s32 256, 256
          %1345 = vsyncadd %s1335, %s1344
          %s1346 = smul.addr %s27, 2
          %s1347 = sadd.s32 %s1342, %s1346
          %s1348 = smul.addr %s1347, 128
          %s1349 = scalar_lea.hbm %s7, %s1348
          %s1350 = sshll.u32 %s1338, 4
          %s1351 = int_to_ptr.vmem [resolvable:$true] %s1350
          %1356 = dma.vmem_to_hbm [thread:$0]  %s1351, 256, %s1349, %s1335, 128, 128, 8
        $region56: #{tpu_custom_call.1} parent=47 // pred_fallthru
          _
      $region48: #{tpu_custom_call.1} parent=5 // pred_fallthru
        _
      %p1357 = scmp.le.s32.totalorder 2, %s17
      // Predicated region
      $region57: #{tpu_custom_call.1} parent=5 // pred_check
        %p1358 = pneg %p1357
      $region58: #{tpu_custom_call.1} parent=5 // pred_check_branch
        %1360 = sbr.rel (%p1358) target = $region60
      $region59: #{tpu_custom_call.1} parent=5 // pred_region
        %s1361 = ssub.s32 %s17, 2
        // Predicated region
        $region61: #{tpu_custom_call.1} parent=59 // pred_check
          %p1362 = pneg %p234
        $region62: #{tpu_custom_call.1} parent=59 // pred_check_branch
          %1364 = sbr.rel (%p1362) target = $region64
        $region63: #{tpu_custom_call.1} parent=59 // pred_region
          %s1365 = sand.u32 %s219, 1
          %s1366 = scalar_lea.sflag [#allocation4], %s1365
          %s1367 = sand.u32 %s219, 1
          %s1368 = smul.addr %s1367, 16
          %s1369 = scalar_lea.vmem [#allocation5], %s1368
          %1370 = dma.done %s1366, 256
        $region64: #{tpu_custom_call.1} parent=59 // pred_fallthru
          _
      $region60: #{tpu_custom_call.1} parent=5 // pred_fallthru
        _
    $region6: #{tpu_custom_call.1} parent=1 // loop_footer
      %s21 = sadd.s32 1, %s17
    $region7: #{tpu_custom_call.1} parent=1 // loop_footer_branch
      %16 = sbr.rel target = $region3
    $region8: #{tpu_custom_call.1} parent=1 // loop_exit
      _
    %1371 = vsyncpa [#allocation3], 1
    %s1372 = scalar_lea.sflag [#allocation3], 1
    %1373 = vsyncpa %s1372, 1
    %1374 = vsyncpa [#allocation4], 1
    %s1375 = scalar_lea.sflag [#allocation4], 1
    %1376 = vsyncpa %s1375, 1

// kernel: tpu_custom_call.1
$region0: #{tpu_custom_call.1}
  #allocation0 [shape = 'u32[]', space=smem, size = 0x4, offset = 0x4, fixed_abs, tag = 'smem constant byte address 0x4 - core index']
  #allocation1 [shape = 'u32[144,128]{1,0:T(1,128)}', space=vmem, size = 0x12000, scoped, tag = 'internal scratch']
  %s0 = inlined_call_operand.vmem [shape: f32[2,24,32], index: 0, kind: input, shape index: {}]
  %s1 = inlined_call_operand.hbm [shape: f32[9,32,64], index: 1, kind: input, shape index: {}]
  %s2 = inlined_call_operand.vmem [shape: f32[1,64], index: 2, kind: input, shape index: {}]
  %s3 = inlined_call_operand.vmem [shape: f32[1,64,32], index: 3, kind: input, shape index: {}]
  %s4 = inlined_call_operand.vmem [shape: f32[1,32], index: 4, kind: input, shape index: {}]
  %s5 = inlined_call_operand.vmem [shape: f32[1,32], index: 5, kind: input, shape index: {}]
  %s6 = inlined_call_operand.vmem [shape: f32[1,32], index: 6, kind: input, shape index: {}]
  %s7 = inlined_call_operand.hbm [shape: f32[2,16,32], index: 7, kind: output, shape index: {}]
  %s8 = sld [smem:[#allocation0]]
  $region65: #{tpu_custom_call.1} parent=0
    _
  %s10 = ssub.s32 1, %s8
  %s11 = scalar_select 0, %s10, %s8
  $region1: #{tpu_custom_call.1} parent=0
    #allocation2 [shape = 'u8[147456]{0}', space=vmem, size = 0x24000, scoped, tag = 'input window, operand 1, single buffered']
    #allocation3 [shape = 's32[2]{0}', space=sflag, size = 0x8, scoped, tag = 'scoped memory for tpu_custom_call.1']
    #allocation4 [shape = 's32[2]{0}', space=sflag, size = 0x8, scoped, tag = 'scoped memory for tpu_custom_call.1']
    #allocation5 [shape = 'u8[16384]{0}', space=vmem, size = 0x4000, scoped, tag = 'output window, operand 0']
    %12 = vsyncpa [#allocation3], 0
    %13 = vsyncpa [#allocation4], 0
    %s14 = scalar_lea.sflag [#allocation4], 1
    %15 = vsyncpa %s14, 0
    loop: start=0, step=1, limit=4
    $region2: #{tpu_custom_call.1} parent=1 // loop_pre_header
      _
    $region3: #{tpu_custom_call.1} parent=1 // loop_header
      %s17 = sphi 0, %s21
      %p18 = scmp.ge.s32.totalorder %s17, 4
      %s24 = sphi 0, %s43
      %s25 = sphi 0, %s39
      %s26 = sphi 0, %s35
      %s27 = sphi 0, %s24
      %s28 = sphi 0, %s25
      %s29 = sphi 0, %s26
      %s30 = sphi 0, %s27
      %s31 = sphi 0, %s28
      %s32 = sphi 0, %s29
      %s46 = sphi 0, %s48
      %s49 = sphi 0, %s46
      %s50 = sphi 0, %s49
      %s66 = sphi 0, %s50
      %s72 = sphi 0, %s74
      %s75 = sphi 0, %s72
      %s76 = sphi 0, %s75
      %s92 = sphi 0, %s76
      %s98 = sphi 0, %s100
      %s101 = sphi 0, %s98
      %s102 = sphi 0, %s101
      %s118 = sphi 0, %s102
      %s124 = sphi 0, %s126
      %s127 = sphi 0, %s124
      %s128 = sphi 0, %s127
      %s144 = sphi 0, %s128
      %s148 = sphi 0, %s148
      %s150 = sphi 0, %s148
      %s151 = sphi 0, %s150
      %s165 = sphi 0, %s151
      %s169 = sphi 0, %s169
      %s171 = sphi 0, %s169
      %s172 = sphi 0, %s171
      %s186 = sphi 0, %s172
      %s190 = sphi 0, %s190
      %s192 = sphi 0, %s190
      %s193 = sphi 0, %s192
      %s207 = sphi 0, %s193
      %s215 = sphi 0, %s217
      %s218 = sphi 0, %s215
      %s219 = sphi 0, %s218
      %s235 = sphi 0, %s219
    $region4: #{tpu_custom_call.1} parent=1 // loop_header_branch
      %20 = sbr.rel (%p18) target = $region8
    $region5: #{tpu_custom_call.1} parent=1 // loop_body
      %s22 = ssub.s32 %s17, 1
      %s23 = ssub.s32 %s17, 2
      %s33 = sadd.s32 1, %s26
      %p34 = scmp.ge.s32.totalorder %s33, 1
      %s35 = scalar_select %p34, 0, %s33
      %s36 = sadd.s32 1, %s25
      %s37 = scalar_select %p34, %s36, %s25
      %p38 = scmp.ge.s32.totalorder %s37, 1
      %s39 = scalar_select %p38, 0, %s37
      %s40 = sadd.s32 1, %s24
      %s41 = scalar_select %p38, %s40, %s24
      %p42 = scmp.ge.s32.totalorder %s41, 2
      %s43 = scalar_select %p42, 0, %s41
      %s44 = ssub.s32 %s24, %s43
      %p45 = scmp.eq.s32.totalorder %s44, 0
      %s47 = sadd.s32 %s46, 1
      %s48 = scalar_select %p45, %s46, %s47
      %p51 = pneg %p45
      %p52 = scmp.eq.s32.totalorder %s17, 1
      %p53 = por %p51, %p52
      %p54 = scmp.ne.s32.totalorder %s46, %s49
      %p55 = scmp.eq.s32.totalorder %s17, 0
      %p56 = por %p54, %p55
      %p57 = scmp.ne.s32.totalorder %s46, %s49
      %p58 = scmp.eq.s32.totalorder %s22, 1
      %p59 = por %p57, %p58
      %p60 = scmp.ne.s32.totalorder %s49, %s50
      %p61 = scmp.eq.s32.totalorder %s22, 0
      %p62 = por %p60, %p61
      %p63 = scmp.ne.s32.totalorder %s49, %s50
      %p64 = scmp.eq.s32.totalorder %s23, 1
      %p65 = por %p63, %p64
      %p67 = scmp.ne.s32.totalorder %s50, %s66
      %p68 = scmp.eq.s32.totalorder %s23, 0
      %p69 = por %p67, %p68
      %s70 = ssub.s32 %s26, %s35
      %p71 = scmp.eq.s32.totalorder %s70, 0
      %s73 = sadd.s32 %s72, 1
      %s74 = scalar_select %p71, %s72, %s73
      %p77 = pneg %p71
      %p78 = scmp.eq.s32.totalorder %s17, 1
      %p79 = por %p77, %p78
      %p80 = scmp.ne.s32.totalorder %s72, %s75
      %p81 = scmp.eq.s32.totalorder %s17, 0
      %p82 = por %p80, %p81
      %p83 = scmp.ne.s32.totalorder %s72, %s75
      %p84 = scmp.eq.s32.totalorder %s22, 1
      %p85 = por %p83, %p84
      %p86 = scmp.ne.s32.totalorder %s75, %s76
      %p87 = scmp.eq.s32.totalorder %s22, 0
      %p88 = por %p86, %p87
      %p89 = scmp.ne.s32.totalorder %s75, %s76
      %p90 = scmp.eq.s32.totalorder %s23, 1
      %p91 = por %p89, %p90
      %p93 = scmp.ne.s32.totalorder %s76, %s92
      %p94 = scmp.eq.s32.totalorder %s23, 0
      %p95 = por %p93, %p94
      %s96 = ssub.s32 %s26, %s35
      %p97 = scmp.eq.s32.totalorder %s96, 0
      %s99 = sadd.s32 %s98, 1
      %s100 = scalar_select %p97, %s98, %s99
      %p103 = pneg %p97
      %p104 = scmp.eq.s32.totalorder %s17, 1
      %p105 = por %p103, %p104
      %p106 = scmp.ne.s32.totalorder %s98, %s101
      %p107 = scmp.eq.s32.totalorder %s17, 0
      %p108 = por %p106, %p107
      %p109 = scmp.ne.s32.totalorder %s98, %s101
      %p110 = scmp.eq.s32.totalorder %s22, 1
      %p111 = por %p109, %p110
      %p112 = scmp.ne.s32.totalorder %s101, %s102
      %p113 = scmp.eq.s32.totalorder %s22, 0
      %p114 = por %p112, %p113
      %p115 = scmp.ne.s32.totalorder %s101, %s102
      %p116 = scmp.eq.s32.totalorder %s23, 1
      %p117 = por %p115, %p116
      %p119 = scmp.ne.s32.totalorder %s102, %s118
      %p120 = scmp.eq.s32.totalorder %s23, 0
      %p121 = por %p119, %p120
      %s122 = ssub.s32 %s26, %s35
      %p123 = scmp.eq.s32.totalorder %s122, 0
      %s125 = sadd.s32 %s124, 1
      %s126 = scalar_select %p123, %s124, %s125
      %p129 = pneg %p123
      %p130 = scmp.eq.s32.totalorder %s17, 1
      %p131 = por %p129, %p130
      %p132 = scmp.ne.s32.totalorder %s124, %s127
      %p133 = scmp.eq.s32.totalorder %s17, 0
      %p134 = por %p132, %p133
      %p135 = scmp.ne.s32.totalorder %s124, %s127
      %p136 = scmp.eq.s32.totalorder %s22, 1
      %p137 = por %p135, %p136
      %p138 = scmp.ne.s32.totalorder %s127, %s128
      %p139 = scmp.eq.s32.totalorder %s22, 0
      %p140 = por %p138, %p139
      %p141 = scmp.ne.s32.totalorder %s127, %s128
      %p142 = scmp.eq.s32.totalorder %s23, 1
      %p143 = por %p141, %p142
      %p145 = scmp.ne.s32.totalorder %s128, %s144
      %p146 = scmp.eq.s32.totalorder %s23, 0
      %p147 = por %p145, %p146
      %s149 = sadd.s32 %s148, 1
      %p152 = scmp.eq.s32.totalorder %s17, 1
      %p153 = scmp.ne.s32.totalorder %s148, %s150
      %p154 = scmp.eq.s32.totalorder %s17, 0
      %p155 = por %p153, %p154
      %p156 = scmp.ne.s32.totalorder %s148, %s150
      %p157 = scmp.eq.s32.totalorder %s22, 1
      %p158 = por %p156, %p157
      %p159 = scmp.ne.s32.totalorder %s150, %s151
      %p160 = scmp.eq.s32.totalorder %s22, 0
      %p161 = por %p159, %p160
      %p162 = scmp.ne.s32.totalorder %s150, %s151
      %p163 = scmp.eq.s32.totalorder %s23, 1
      %p164 = por %p162, %p163
      %p166 = scmp.ne.s32.totalorder %s151, %s165
      %p167 = scmp.eq.s32.totalorder %s23, 0
      %p168 = por %p166, %p167
      %s170 = sadd.s32 %s169, 1
      %p173 = scmp.eq.s32.totalorder %s17, 1
      %p174 = scmp.ne.s32.totalorder %s169, %s171
      %p175 = scmp.eq.s32.totalorder %s17, 0
      %p176 = por %p174, %p175
      %p177 = scmp.ne.s32.totalorder %s169, %s171
      %p178 = scmp.eq.s32.totalorder %s22, 1
      %p179 = por %p177, %p178
      %p180 = scmp.ne.s32.totalorder %s171, %s172
      %p181 = scmp.eq.s32.totalorder %s22, 0
      %p182 = por %p180, %p181
      %p183 = scmp.ne.s32.totalorder %s171, %s172
      %p184 = scmp.eq.s32.totalorder %s23, 1
      %p185 = por %p183, %p184
      %p187 = scmp.ne.s32.totalorder %s172, %s186
      %p188 = scmp.eq.s32.totalorder %s23, 0
      %p189 = por %p187, %p188
      %s191 = sadd.s32 %s190, 1
      %p194 = scmp.eq.s32.totalorder %s17, 1
      %p195 = scmp.ne.s32.totalorder %s190, %s192
      %p196 = scmp.eq.s32.totalorder %s17, 0
      %p197 = por %p195, %p196
      %p198 = scmp.ne.s32.totalorder %s190, %s192
      %p199 = scmp.eq.s32.totalorder %s22, 1
      %p200 = por %p198, %p199
      %p201 = scmp.ne.s32.totalorder %s192, %s193
      %p202 = scmp.eq.s32.totalorder %s22, 0
      %p203 = por %p201, %p202
      %p204 = scmp.ne.s32.totalorder %s192, %s193
      %p205 = scmp.eq.s32.totalorder %s23, 1
      %p206 = por %p204, %p205
      %p208 = scmp.ne.s32.totalorder %s193, %s207
      %p209 = scmp.eq.s32.totalorder %s23, 0
      %p210 = por %p208, %p209
      %s211 = ssub.s32 %s24, %s43
      %s212 = ssub.s32 %s25, %s39
      %s213 = sor.u32 %s211, %s212
      %p214 = scmp.eq.s32.totalorder %s213, 0
      %s216 = sadd.s32 %s215, 1
      %s217 = scalar_select %p214, %s215, %s216
      %p220 = pneg %p214
      %p221 = scmp.eq.s32.totalorder %s17, 1
      %p222 = por %p220, %p221
      %p223 = scmp.ne.s32.totalorder %s215, %s218
      %p224 = scmp.eq.s32.totalorder %s17, 0
      %p225 = por %p223, %p224
      %p226 = scmp.ne.s32.totalorder %s215, %s218
      %p227 = scmp.eq.s32.totalorder %s22, 1
      %p228 = por %p226, %p227
      %p229 = scmp.ne.s32.totalorder %s218, %s219
      %p230 = scmp.eq.s32.totalorder %s22, 0
      %p231 = por %p229, %p230
      %p232 = scmp.ne.s32.totalorder %s218, %s219
      %p233 = scmp.eq.s32.totalorder %s23, 1
      %p234 = por %p232, %p233
      %p236 = scmp.ne.s32.totalorder %s219, %s235
      %p237 = scmp.eq.s32.totalorder %s23, 0
      %p238 = por %p236, %p237
      %p239 = scmp.le.s32.totalorder 1, %s17
      %p240 = scmp.lt.s32.totalorder %s17, 3
      %p241 = pnand %p239, %p240
      %p242 = pneg %p241
      // Predicated region
      $region9: #{tpu_custom_call.1} parent=5 // pred_check
        _
      $region10: #{tpu_custom_call.1} parent=5 // pred_check_branch
        %244 = sbr.rel (%p241) target = $region12
      $region11: #{tpu_custom_call.1} parent=5 // pred_region
        %s245 = ssub.s32 %s17, 1
        // Predicated region
        $region13: #{tpu_custom_call.1} parent=11 // pred_check
          %p246 = pneg %p88
        $region14: #{tpu_custom_call.1} parent=11 // pred_check_branch
          %248 = sbr.rel (%p246) target = $region16
        $region15: #{tpu_custom_call.1} parent=11 // pred_region
          %s250 = ssub.s32 4608, 4608
          %251 = vsyncadd [#allocation3], %s250
          %s252 = smul.addr %s29, 128
          %s253 = scalar_lea.hbm %s1, %s252
          %s254 = sshll.u32 [#allocation2], 4
          %s255 = int_to_ptr.vmem [resolvable:$true] %s254
          %260 = dma.hbm_to_vmem [thread:$0]  %s253, 4608, %s255, [#allocation3], 128, 128, 8
        $region16: #{tpu_custom_call.1} parent=11 // pred_fallthru
          _
        // Predicated region
        $region17: #{tpu_custom_call.1} parent=11 // pred_check
          %p261 = pneg %p114
        $region18: #{tpu_custom_call.1} parent=11 // pred_check_branch
          %263 = sbr.rel (%p261) target = $region20
        $region19: #{tpu_custom_call.1} parent=11 // pred_region
          %p264 = scmp.lt.s32.totalorder %s29, 0
          %s265 = scalar_select %p264, %s29, 0
          %s266 = scalar_lea.vmem %s2, %s265
        $region20: #{tpu_custom_call.1} parent=11 // pred_fallthru
          _
        // Predicated region
        $region21: #{tpu_custom_call.1} parent=11 // pred_check
          %p267 = pneg %p140
        $region22: #{tpu_custom_call.1} parent=11 // pred_check_branch
          %269 = sbr.rel (%p267) target = $region24
        $region23: #{tpu_custom_call.1} parent=11 // pred_region
          %s270 = smul.u32 8, %s29
          %p271 = scmp.lt.s32.totalorder %s270, 7
          %s272 = scalar_select %p271, %s270, 7
          %s273 = smul.addr %s272, 8
          %s274 = scalar_lea.vmem %s3, %s273
          %s275 = smul.u32 8, %s29
        $region24: #{tpu_custom_call.1} parent=11 // pred_fallthru
          _
        // Predicated region
        $region25: #{tpu_custom_call.1} parent=11 // pred_check
          %p276 = pneg %p161
        $region26: #{tpu_custom_call.1} parent=11 // pred_check_branch
          %278 = sbr.rel (%p276) target = $region28
        $region27: #{tpu_custom_call.1} parent=11 // pred_region
          _
        $region28: #{tpu_custom_call.1} parent=11 // pred_fallthru
          _
        // Predicated region
        $region29: #{tpu_custom_call.1} parent=11 // pred_check
          %p279 = pneg %p182
        $region30: #{tpu_custom_call.1} parent=11 // pred_check_branch
          %281 = sbr.rel (%p279) target = $region32
        $region31: #{tpu_custom_call.1} parent=11 // pred_region
          _
        $region32: #{tpu_custom_call.1} parent=11 // pred_fallthru
          _
        // Predicated region
        $region33: #{tpu_custom_call.1} parent=11 // pred_check
          %p282 = pneg %p203
        $region34: #{tpu_custom_call.1} parent=11 // pred_check_branch
          %284 = sbr.rel (%p282) target = $region36
        $region35: #{tpu_custom_call.1} parent=11 // pred_region
          _
        $region36: #{tpu_custom_call.1} parent=11 // pred_fallthru
          _
      $region12: #{tpu_custom_call.1} parent=5 // pred_fallthru
        _
      %p285 = scmp.lt.s32.totalorder %s17, 2
      // Predicated region
      $region37: #{tpu_custom_call.1} parent=5 // pred_check
        %p286 = pneg %p285
      $region38: #{tpu_custom_call.1} parent=5 // pred_check_branch
        %288 = sbr.rel (%p286) target = $region40
      $region39: #{tpu_custom_call.1} parent=5 // pred_region
        // Predicated region
        $region41: #{tpu_custom_call.1} parent=39 // pred_check
          %p289 = pneg %p56
        $region42: #{tpu_custom_call.1} parent=39 // pred_check_branch
          %291 = sbr.rel (%p289) target = $region44
        $region43: #{tpu_custom_call.1} parent=39 // pred_region
          %p292 = scmp.lt.s32.totalorder %s24, 1
          %s293 = scalar_select %p292, %s24, 1
          %s294 = smul.addr %s293, 3
          %s295 = smul.addr %s294, 8
          %s296 = scalar_lea.vmem %s0, %s295
        $region44: #{tpu_custom_call.1} parent=39 // pred_fallthru
          _
      $region40: #{tpu_custom_call.1} parent=5 // pred_fallthru
        _
      %p297 = scmp.le.s32.totalorder 1, %s17
      %p298 = scmp.lt.s32.totalorder %s17, 3
      %p299 = pnand %p297, %p298
      %p300 = pneg %p299
      // Predicated region
      $region45: #{tpu_custom_call.1} parent=5 // pred_check
        _
      $region46: #{tpu_custom_call.1} parent=5 // pred_check_branch
        %302 = sbr.rel (%p299) target = $region48
      $region47: #{tpu_custom_call.1} parent=5 // pred_region
        %s303 = ssub.s32 %s17, 1
        // Predicated region
        $region49: #{tpu_custom_call.1} parent=47 // pred_check
          %p304 = pneg %p88
        $region50: #{tpu_custom_call.1} parent=47 // pred_check_branch
          %306 = sbr.rel (%p304) target = $region52
        $region51: #{tpu_custom_call.1} parent=47 // pred_region
          %307 = dma.done [#allocation3], 4608
        $region52: #{tpu_custom_call.1} parent=47 // pred_fallthru
          _
        %p308 = scmp.lt.s32.totalorder %s27, 1
        %s309 = scalar_select %p308, %s27, 1
        %s310 = smul.addr %s309, 3
        %s311 = smul.addr %s310, 8
        %s312 = scalar_lea.vmem %s0, %s311
        %p313 = pneg %p62
        %p314 = pneg %p59
        %p315 = pneg %p88
        %p316 = pneg %p85
        %p317 = scmp.lt.s32.totalorder %s29, 0
        %s318 = scalar_select %p317, %s29, 0
        %s319 = scalar_lea.vmem %s2, %s318
        %p320 = pneg %p114
        %p321 = pneg %p111
        %s322 = smul.u32 8, %s29
        %p323 = scmp.lt.s32.totalorder %s322, 7
        %s324 = scalar_select %p323, %s322, 7
        %s325 = smul.addr %s324, 8
        %s326 = scalar_lea.vmem %s3, %s325
        %p327 = pneg %p140
        %p328 = pneg %p137
        %p329 = pneg %p161
        %p330 = pneg %p158
        %p331 = pneg %p182
        %p332 = pneg %p179
        %p333 = pneg %p203
        %p334 = pneg %p200
        %p335 = pneg %p231
        %p336 = pneg %p228
        %s337 = sand.u32 %s218, 1
        %s338 = scalar_lea.sflag [#allocation4], %s337
        %s339 = sand.u32 %s218, 1
        %s340 = smul.addr %s339, 16
        %s341 = scalar_lea.vmem [#allocation5], %s340
        %p342 = scmp.lt.s32.totalorder %s27, 1
        %s343 = scalar_select %p342, %s27, 1
        %s344 = smul.addr %s343, 3
        %s345 = smul.addr %s344, 8
        %s346 = scalar_lea.vmem %s0, %s345
        %p347 = scmp.lt.s32.totalorder %s29, 0
        %s348 = scalar_select %p347, %s29, 0
        %s349 = scalar_lea.vmem %s2, %s348
        %s350 = smul.u32 8, %s29
        %p351 = scmp.lt.s32.totalorder %s350, 7
        %s352 = scalar_select %p351, %s350, 7
        %s353 = smul.addr %s352, 8
        %s354 = scalar_lea.vmem %s3, %s353
        %s355 = smul.u32 8, %s29
        %s356 = smul.u32 2, %s28
        %s357 = smul.u32 %s28, 16
        %s358 = scalar_lea.vmem %s346, %s357
        %v359 = vld [vmem:[%s358] sm:$0xff]
        %v360 = vld [vmem:[%s358 + $0x8] sm:$0xff]
        %v361 = vld [vmem:[%s358 + $0x10] sm:$0xff]
        %v362 = vld [vmem:[#allocation2] sm:$0xff]
        %v363 = vld [vmem:[#allocation2 + $0x8] sm:$0xff]
        %v364 = vld [vmem:[#allocation2 + $0x10] sm:$0xff]
        %v365 = vld [vmem:[#allocation2 + $0x18] sm:$0xff]
        %s366 = scalar_lea.vmem [#allocation2], 32
        %v367 = vld [vmem:[%s366] sm:$0xff]
        %v368 = vld [vmem:[%s366 + $0x8] sm:$0xff]
        %v369 = vld [vmem:[%s366 + $0x10] sm:$0xff]
        %v370 = vld [vmem:[%s366 + $0x18] sm:$0xff]
        %vm374 = vcmask 1046528
        %v375 = vrot.slane %v359, 1
        %v376 = vrot.slane %v360, 1
        %v377 = vsel %vm374, %v375, %v376
        %v378 = vrot.slane %v361, 1
        %v379 = vsel %vm374, %v376, %v378
        %vm380 = vcmask 261120
        %v381 = vsel %vm380, %v377, 0
        %v383 = vsel %vm380, %v379, 0
        %385 = vmatprep.subr.mxu0 0.0
        %386 = vmatpush1.msra.mxu0 %v367
        %387 = vmatprep.subr.mxu0 0.0
        %388 = vmatpush1.msra.mxu0 %v368
        %389 = vmatprep.subr.mxu0 0.0
        %390 = vmatpush1.msra.mxu0 %v369
        %391 = vmatprep.subr.mxu0 0.0
        %392 = vmatpush1.msra.mxu0 %v370
        %393 = vmatprep.subr.mxu0 0.0
        %394 = vmatpush1.msra.mxu0 0.0
        %395 = vmatprep.subr.mxu0 0.0
        %396 = vmatpush1.msra.mxu0 0.0
        %397 = vmatprep.subr.mxu0 0.0
        %398 = vmatpush1.msra.mxu0 0.0
        %399 = vmatprep.subr.mxu0 0.0
        %400 = vmatpush1.msra.mxu0 0.0
        %401 = vmatprep.subr.mxu0 0.0
        %402 = vmatpush1.msra.mxu0 0.0
        %403 = vmatprep.subr.mxu0 0.0
        %404 = vmatpush1.msra.mxu0 0.0
        %405 = vmatprep.subr.mxu0 0.0
        %406 = vmatpush1.msra.mxu0 0.0
        %407 = vmatprep.subr.mxu0 0.0
        %408 = vmatpush1.msra.mxu0 0.0
        %409 = vmatprep.subr.mxu0 0.0
        %410 = vmatpush1.msra.mxu0 0.0
        %411 = vmatprep.subr.mxu0 0.0
        %412 = vmatpush1.msra.mxu0 0.0
        %413 = vmatprep.subr.mxu0 0.0
        %414 = vmatpush1.msra.mxu0 0.0
        %415 = vmatprep.subr.mxu0 0.0
        %416 = vmatpush1.msra.mxu0 0.0
        %417 = vmatprep.subr.mxu0 0.0
        %418 = vmatpush1.msra.mxu0 0.0
        %419 = vmatprep.subr.mxu0 0.0
        %420 = vmatpush1.msra.mxu0 0.0
        %421 = vmatprep.subr.mxu0 0.0
        %422 = vmatpush1.msra.mxu0 0.0
        %423 = vmatprep.subr.mxu0 0.0
        %424 = vmatpush1.msra.mxu0 0.0
        %425 = vmatprep.subr.mxu0 0.0
        %426 = vmatpush1.msra.mxu0 0.0
        %427 = vmatprep.subr.mxu0 0.0
        %428 = vmatpush1.msra.mxu0 0.0
        %429 = vmatprep.subr.mxu0 0.0
        %430 = vmatpush1.msra.mxu0 0.0
        %431 = vmatprep.subr.mxu0 0.0
        %432 = vmatpush1.msra.mxu0 0.0
        %433 = vmatprep.subr.mxu0 0.0
        %434 = vmatpush1.msra.mxu0 0.0
        %435 = vmatprep.subr.mxu0 0.0
        %436 = vmatpush1.msra.mxu0 0.0
        %437 = vmatprep.subr.mxu0 0.0
        %438 = vmatpush1.msra.mxu0 0.0
        %439 = vmatprep.subr.mxu0 0.0
        %440 = vmatpush1.msra.mxu0 0.0
        %441 = vmatprep.subr.mxu0 0.0
        %442 = vmatpush1.msra.mxu0 0.0
        %443 = vmatprep.subr.mxu0 0.0
        %444 = vmatpush1.msra.mxu0 0.0
        %445 = vmatprep.subr.mxu0 0.0
        %446 = vmatpush1.msra.mxu0 0.0
        %447 = vmatprep.subr.mxu0 0.0
        %448 = vmatpush1.msra.mxu0 0.0
        %449 = vmatprep.mubr.f32.mxu0 0.0
        %450 = vmatmul.mubr.f32.gmra.mrb[0].mxu0 %v381
        %v451 = vpop.f32.mrb[0].mxu0
        %v452 = vadd.f32 0.0, %v451
        %v453 = vpop.f32.mrb[0].mxu0
        %454 = vmatprep.mubr.f32.mxu0 0.0
        %455 = vmatmul.mubr.f32.gmra.mrb[0].mxu0 %v383
        %v456 = vpop.f32.mrb[0].mxu0
        %v457 = vadd.f32 0.0, %v456
        %v458 = vpop.f32.mrb[0].mxu0
        %459 = vdwg.mxu0
        %v460 = vsel %vm380, %v359, 0
        %v462 = vsel %vm380, %v360, 0
        %464 = vmatprep.subr.mxu0 0.0
        %465 = vmatpush1.msra.mxu0 %v362
        %466 = vmatprep.subr.mxu0 0.0
        %467 = vmatpush1.msra.mxu0 %v363
        %468 = vmatprep.subr.mxu0 0.0
        %469 = vmatpush1.msra.mxu0 %v364
        %470 = vmatprep.subr.mxu0 0.0
        %471 = vmatpush1.msra.mxu0 %v365
        %472 = vmatprep.subr.mxu0 0.0
        %473 = vmatpush1.msra.mxu0 0.0
        %474 = vmatprep.subr.mxu0 0.0
        %475 = vmatpush1.msra.mxu0 0.0
        %476 = vmatprep.subr.mxu0 0.0
        %477 = vmatpush1.msra.mxu0 0.0
        %478 = vmatprep.subr.mxu0 0.0
        %479 = vmatpush1.msra.mxu0 0.0
        %480 = vmatprep.subr.mxu0 0.0
        %481 = vmatpush1.msra.mxu0 0.0
        %482 = vmatprep.subr.mxu0 0.0
        %483 = vmatpush1.msra.mxu0 0.0
        %484 = vmatprep.subr.mxu0 0.0
        %485 = vmatpush1.msra.mxu0 0.0
        %486 = vmatprep.subr.mxu0 0.0
        %487 = vmatpush1.msra.mxu0 0.0
        %488 = vmatprep.subr.mxu0 0.0
        %489 = vmatpush1.msra.mxu0 0.0
        %490 = vmatprep.subr.mxu0 0.0
        %491 = vmatpush1.msra.mxu0 0.0
        %492 = vmatprep.subr.mxu0 0.0
        %493 = vmatpush1.msra.mxu0 0.0
        %494 = vmatprep.subr.mxu0 0.0
        %495 = vmatpush1.msra.mxu0 0.0
        %496 = vmatprep.subr.mxu0 0.0
        %497 = vmatpush1.msra.mxu0 0.0
        %498 = vmatprep.subr.mxu0 0.0
        %499 = vmatpush1.msra.mxu0 0.0
        %500 = vmatprep.subr.mxu0 0.0
        %501 = vmatpush1.msra.mxu0 0.0
        %502 = vmatprep.subr.mxu0 0.0
        %503 = vmatpush1.msra.mxu0 0.0
        %504 = vmatprep.subr.mxu0 0.0
        %505 = vmatpush1.msra.mxu0 0.0
        %506 = vmatprep.subr.mxu0 0.0
        %507 = vmatpush1.msra.mxu0 0.0
        %508 = vmatprep.subr.mxu0 0.0
        %509 = vmatpush1.msra.mxu0 0.0
        %510 = vmatprep.subr.mxu0 0.0
        %511 = vmatpush1.msra.mxu0 0.0
        %512 = vmatprep.subr.mxu0 0.0
        %513 = vmatpush1.msra.mxu0 0.0
        %514 = vmatprep.subr.mxu0 0.0
        %515 = vmatpush1.msra.mxu0 0.0
        %516 = vmatprep.subr.mxu0 0.0
        %517 = vmatpush1.msra.mxu0 0.0
        %518 = vmatprep.subr.mxu0 0.0
        %519 = vmatpush1.msra.mxu0 0.0
        %520 = vmatprep.subr.mxu0 0.0
        %521 = vmatpush1.msra.mxu0 0.0
        %522 = vmatprep.subr.mxu0 0.0
        %523 = vmatpush1.msra.mxu0 0.0
        %524 = vmatprep.subr.mxu0 0.0
        %525 = vmatpush1.msra.mxu0 0.0
        %526 = vmatprep.subr.mxu0 0.0
        %527 = vmatpush1.msra.mxu0 0.0
        %528 = vmatprep.mubr.f32.mxu0 0.0
        %529 = vmatmul.mubr.f32.gmra.mrb[0].mxu0 %v460
        %v530 = vpop.f32.mrb[0].mxu0
        %v531 = vadd.f32 %v452, %v530
        %v532 = vpop.f32.mrb[0].mxu0
        %533 = vmatprep.mubr.f32.mxu0 0.0
        %534 = vmatmul.mubr.f32.gmra.mrb[0].mxu0 %v462
        %v535 = vpop.f32.mrb[0].mxu0
        %v536 = vadd.f32 %v457, %v535
        %v537 = vpop.f32.mrb[0].mxu0
        %538 = vdwg.mxu0
        %s539 = scalar_lea.vmem [#allocation2], 64
        %v540 = vld [vmem:[%s539] sm:$0xff]
        %v541 = vld [vmem:[%s539 + $0x8] sm:$0xff]
        %v542 = vld [vmem:[%s539 + $0x10] sm:$0xff]
        %v543 = vld [vmem:[%s539 + $0x18] sm:$0xff]
        %vm544 = vcmask 1045504
        %v545 = vrot.slane %v359, 2
        %v546 = vrot.slane %v360, 2
        %v547 = vsel %vm544, %v545, %v546
        %v548 = vrot.slane %v361, 2
        %v549 = vsel %vm544, %v546, %v548
        %v550 = vsel %vm380, %v547, 0
        %v552 = vsel %vm380, %v549, 0
        %554 = vmatprep.subr.mxu0 0.0
        %555 = vmatpush1.msra.mxu0 %v540
        %556 = vmatprep.subr.mxu0 0.0
        %557 = vmatpush1.msra.mxu0 %v541
        %558 = vmatprep.subr.mxu0 0.0
        %559 = vmatpush1.msra.mxu0 %v542
        %560 = vmatprep.subr.mxu0 0.0
        %561 = vmatpush1.msra.mxu0 %v543
        %562 = vmatprep.subr.mxu0 0.0
        %563 = vmatpush1.msra.mxu0 0.0
        %564 = vmatprep.subr.mxu0 0.0
        %565 = vmatpush1.msra.mxu0 0.0
        %566 = vmatprep.subr.mxu0 0.0
        %567 = vmatpush1.msra.mxu0 0.0
        %568 = vmatprep.subr.mxu0 0.0
        %569 = vmatpush1.msra.mxu0 0.0
        %570 = vmatprep.subr.mxu0 0.0
        %571 = vmatpush1.msra.mxu0 0.0
        %572 = vmatprep.subr.mxu0 0.0
        %573 = vmatpush1.msra.mxu0 0.0
        %574 = vmatprep.subr.mxu0 0.0
        %575 = vmatpush1.msra.mxu0 0.0
        %576 = vmatprep.subr.mxu0 0.0
        %577 = vmatpush1.msra.mxu0 0.0
        %578 = vmatprep.subr.mxu0 0.0
        %579 = vmatpush1.msra.mxu0 0.0
        %580 = vmatprep.subr.mxu0 0.0
        %581 = vmatpush1.msra.mxu0 0.0
        %582 = vmatprep.subr.mxu0 0.0
        %583 = vmatpush1.msra.mxu0 0.0
        %584 = vmatprep.subr.mxu0 0.0
        %585 = vmatpush1.msra.mxu0 0.0
        %586 = vmatprep.subr.mxu0 0.0
        %587 = vmatpush1.msra.mxu0 0.0
        %588 = vmatprep.subr.mxu0 0.0
        %589 = vmatpush1.msra.mxu0 0.0
        %590 = vmatprep.subr.mxu0 0.0
        %591 = vmatpush1.msra.mxu0 0.0
        %592 = vmatprep.subr.mxu0 0.0
        %593 = vmatpush1.msra.mxu0 0.0
        %594 = vmatprep.subr.mxu0 0.0
        %595 = vmatpush1.msra.mxu0 0.0
        %596 = vmatprep.subr.mxu0 0.0
        %597 = vmatpush1.msra.mxu0 0.0
        %598 = vmatprep.subr.mxu0 0.0
        %599 = vmatpush1.msra.mxu0 0.0
        %600 = vmatprep.subr.mxu0 0.0
        %601 = vmatpush1.msra.mxu0 0.0
        %602 = vmatprep.subr.mxu0 0.0
        %603 = vmatpush1.msra.mxu0 0.0
        %604 = vmatprep.subr.mxu0 0.0
        %605 = vmatpush1.msra.mxu0 0.0
        %606 = vmatprep.subr.mxu0 0.0
        %607 = vmatpush1.msra.mxu0 0.0
        %608 = vmatprep.subr.mxu0 0.0
        %609 = vmatpush1.msra.mxu0 0.0
        %610 = vmatprep.subr.mxu0 0.0
        %611 = vmatpush1.msra.mxu0 0.0
        %612 = vmatprep.subr.mxu0 0.0
        %613 = vmatpush1.msra.mxu0 0.0
        %614 = vmatprep.subr.mxu0 0.0
        %615 = vmatpush1.msra.mxu0 0.0
        %616 = vmatprep.subr.mxu0 0.0
        %617 = vmatpush1.msra.mxu0 0.0
        %618 = vmatprep.mubr.f32.mxu0 0.0
        %619 = vmatmul.mubr.f32.gmra.mrb[0].mxu0 %v550
        %v620 = vpop.f32.mrb[0].mxu0
        %v621 = vadd.f32 0.0, %v620
        %v622 = vpop.f32.mrb[0].mxu0
        %623 = vmatprep.mubr.f32.mxu0 0.0
        %624 = vmatmul.mubr.f32.gmra.mrb[0].mxu0 %v552
        %v625 = vpop.f32.mrb[0].mxu0
        %v626 = vadd.f32 0.0, %v625
        %v627 = vpop.f32.mrb[0].mxu0
        %628 = vdwg.mxu0
        %v629 = vadd.f32 %v531, %v621
        %v630 = vadd.f32 %v536, %v626
        %s631 = scalar_lea.vmem [#allocation2], 96
        %v632 = vld [vmem:[%s631] sm:$0xff]
        %v633 = vld [vmem:[%s631 + $0x8] sm:$0xff]
        %v634 = vld [vmem:[%s631 + $0x10] sm:$0xff]
        %v635 = vld [vmem:[%s631 + $0x18] sm:$0xff]
        %vm636 = vcmask 1044480
        %v637 = vrot.slane %v359, 3
        %v638 = vrot.slane %v360, 3
        %v639 = vsel %vm636, %v637, %v638
        %v640 = vrot.slane %v361, 3
        %v641 = vsel %vm636, %v638, %v640
        %v642 = vsel %vm380, %v639, 0
        %v644 = vsel %vm380, %v641, 0
        %646 = vmatprep.subr.mxu0 0.0
        %647 = vmatpush1.msra.mxu0 %v632
        %648 = vmatprep.subr.mxu0 0.0
        %649 = vmatpush1.msra.mxu0 %v633
        %650 = vmatprep.subr.mxu0 0.0
        %651 = vmatpush1.msra.mxu0 %v634
        %652 = vmatprep.subr.mxu0 0.0
        %653 = vmatpush1.msra.mxu0 %v635
        %654 = vmatprep.subr.mxu0 0.0
        %655 = vmatpush1.msra.mxu0 0.0
        %656 = vmatprep.subr.mxu0 0.0
        %657 = vmatpush1.msra.mxu0 0.0
        %658 = vmatprep.subr.mxu0 0.0
        %659 = vmatpush1.msra.mxu0 0.0
        %660 = vmatprep.subr.mxu0 0.0
        %661 = vmatpush1.msra.mxu0 0.0
        %662 = vmatprep.subr.mxu0 0.0
        %663 = vmatpush1.msra.mxu0 0.0
        %664 = vmatprep.subr.mxu0 0.0
        %665 = vmatpush1.msra.mxu0 0.0
        %666 = vmatprep.subr.mxu0 0.0
        %667 = vmatpush1.msra.mxu0 0.0
        %668 = vmatprep.subr.mxu0 0.0
        %669 = vmatpush1.msra.mxu0 0.0
        %670 = vmatprep.subr.mxu0 0.0
        %671 = vmatpush1.msra.mxu0 0.0
        %672 = vmatprep.subr.mxu0 0.0
        %673 = vmatpush1.msra.mxu0 0.0
        %674 = vmatprep.subr.mxu0 0.0
        %675 = vmatpush1.msra.mxu0 0.0
        %676 = vmatprep.subr.mxu0 0.0
        %677 = vmatpush1.msra.mxu0 0.0
        %678 = vmatprep.subr.mxu0 0.0
        %679 = vmatpush1.msra.mxu0 0.0
        %680 = vmatprep.subr.mxu0 0.0
        %681 = vmatpush1.msra.mxu0 0.0
        %682 = vmatprep.subr.mxu0 0.0
        %683 = vmatpush1.msra.mxu0 0.0
        %684 = vmatprep.subr.mxu0 0.0
        %685 = vmatpush1.msra.mxu0 0.0
        %686 = vmatprep.subr.mxu0 0.0
        %687 = vmatpush1.msra.mxu0 0.0
        %688 = vmatprep.subr.mxu0 0.0
        %689 = vmatpush1.msra.mxu0 0.0
        %690 = vmatprep.subr.mxu0 0.0
        %691 = vmatpush1.msra.mxu0 0.0
        %692 = vmatprep.subr.mxu0 0.0
        %693 = vmatpush1.msra.mxu0 0.0
        %694 = vmatprep.subr.mxu0 0.0
        %695 = vmatpush1.msra.mxu0 0.0
        %696 = vmatprep.subr.mxu0 0.0
        %697 = vmatpush1.msra.mxu0 0.0
        %698 = vmatprep.subr.mxu0 0.0
        %699 = vmatpush1.msra.mxu0 0.0
        %700 = vmatprep.subr.mxu0 0.0
        %701 = vmatpush1.msra.mxu0 0.0
        %702 = vmatprep.subr.mxu0 0.0
        %703 = vmatpush1.msra.mxu0 0.0
        %704 = vmatprep.subr.mxu0 0.0
        %705 = vmatpush1.msra.mxu0 0.0
        %706 = vmatprep.subr.mxu0 0.0
        %707 = vmatpush1.msra.mxu0 0.0
        %708 = vmatprep.subr.mxu0 0.0
        %709 = vmatpush1.msra.mxu0 0.0
        %710 = vmatprep.mubr.f32.mxu0 0.0
        %711 = vmatmul.mubr.f32.gmra.mrb[0].mxu0 %v642
        %v712 = vpop.f32.mrb[0].mxu0
        %v713 = vadd.f32 0.0, %v712
        %v714 = vpop.f32.mrb[0].mxu0
        %715 = vmatprep.mubr.f32.mxu0 0.0
        %716 = vmatmul.mubr.f32.gmra.mrb[0].mxu0 %v644
        %v717 = vpop.f32.mrb[0].mxu0
        %v718 = vadd.f32 0.0, %v717
        %v719 = vpop.f32.mrb[0].mxu0
        %720 = vdwg.mxu0
        %v721 = vadd.f32 %v629, %v713
        %v722 = vadd.f32 %v630, %v718
        %s723 = scalar_lea.vmem [#allocation2], 128
        %v724 = vld [vmem:[%s723] sm:$0xff]
        %v725 = vld [vmem:[%s723 + $0x8] sm:$0xff]
        %v726 = vld [vmem:[%s723 + $0x10] sm:$0xff]
        %v727 = vld [vmem:[%s723 + $0x18] sm:$0xff]
        %vm728 = vcmask 1043456
        %v729 = vrot.slane %v359, 4
        %v730 = vrot.slane %v360, 4
        %v731 = vsel %vm728, %v729, %v730
        %v732 = vrot.slane %v361, 4
        %v733 = vsel %vm728, %v730, %v732
        %v734 = vsel %vm380, %v731, 0
        %v736 = vsel %vm380, %v733, 0
        %738 = vmatprep.subr.mxu0 0.0
        %739 = vmatpush1.msra.mxu0 %v724
        %740 = vmatprep.subr.mxu0 0.0
        %741 = vmatpush1.msra.mxu0 %v725
        %742 = vmatprep.subr.mxu0 0.0
        %743 = vmatpush1.msra.mxu0 %v726
        %744 = vmatprep.subr.mxu0 0.0
        %745 = vmatpush1.msra.mxu0 %v727
        %746 = vmatprep.subr.mxu0 0.0
        %747 = vmatpush1.msra.mxu0 0.0
        %748 = vmatprep.subr.mxu0 0.0
        %749 = vmatpush1.msra.mxu0 0.0
        %750 = vmatprep.subr.mxu0 0.0
        %751 = vmatpush1.msra.mxu0 0.0
        %752 = vmatprep.subr.mxu0 0.0
        %753 = vmatpush1.msra.mxu0 0.0
        %754 = vmatprep.subr.mxu0 0.0
        %755 = vmatpush1.msra.mxu0 0.0
        %756 = vmatprep.subr.mxu0 0.0
        %757 = vmatpush1.msra.mxu0 0.0
        %758 = vmatprep.subr.mxu0 0.0
        %759 = vmatpush1.msra.mxu0 0.0
        %760 = vmatprep.subr.mxu0 0.0
        %761 = vmatpush1.msra.mxu0 0.0
        %762 = vmatprep.subr.mxu0 0.0
        %763 = vmatpush1.msra.mxu0 0.0
        %764 = vmatprep.subr.mxu0 0.0
        %765 = vmatpush1.msra.mxu0 0.0
        %766 = vmatprep.subr.mxu0 0.0
        %767 = vmatpush1.msra.mxu0 0.0
        %768 = vmatprep.subr.mxu0 0.0
        %769 = vmatpush1.msra.mxu0 0.0
        %770 = vmatprep.subr.mxu0 0.0
        %771 = vmatpush1.msra.mxu0 0.0
        %772 = vmatprep.subr.mxu0 0.0
        %773 = vmatpush1.msra.mxu0 0.0
        %774 = vmatprep.subr.mxu0 0.0
        %775 = vmatpush1.msra.mxu0 0.0
        %776 = vmatprep.subr.mxu0 0.0
        %777 = vmatpush1.msra.mxu0 0.0
        %778 = vmatprep.subr.mxu0 0.0
        %779 = vmatpush1.msra.mxu0 0.0
        %780 = vmatprep.subr.mxu0 0.0
        %781 = vmatpush1.msra.mxu0 0.0
        %782 = vmatprep.subr.mxu0 0.0
        %783 = vmatpush1.msra.mxu0 0.0
        %784 = vmatprep.subr.mxu0 0.0
        %785 = vmatpush1.msra.mxu0 0.0
        %786 = vmatprep.subr.mxu0 0.0
        %787 = vmatpush1.msra.mxu0 0.0
        %788 = vmatprep.subr.mxu0 0.0
        %789 = vmatpush1.msra.mxu0 0.0
        %790 = vmatprep.subr.mxu0 0.0
        %791 = vmatpush1.msra.mxu0 0.0
        %792 = vmatprep.subr.mxu0 0.0
        %793 = vmatpush1.msra.mxu0 0.0
        %794 = vmatprep.subr.mxu0 0.0
        %795 = vmatpush1.msra.mxu0 0.0
        %796 = vmatprep.subr.mxu0 0.0
        %797 = vmatpush1.msra.mxu0 0.0
        %798 = vmatprep.subr.mxu0 0.0
        %799 = vmatpush1.msra.mxu0 0.0
        %800 = vmatprep.subr.mxu0 0.0
        %801 = vmatpush1.msra.mxu0 0.0
        %802 = vmatprep.mubr.f32.mxu0 0.0
        %803 = vmatmul.mubr.f32.gmra.mrb[0].mxu0 %v734
        %v804 = vpop.f32.mrb[0].mxu0
        %v805 = vadd.f32 0.0, %v804
        %v806 = vpop.f32.mrb[0].mxu0
        %807 = vmatprep.mubr.f32.mxu0 0.0
        %808 = vmatmul.mubr.f32.gmra.mrb[0].mxu0 %v736
        %v809 = vpop.f32.mrb[0].mxu0
        %v810 = vadd.f32 0.0, %v809
        %v811 = vpop.f32.mrb[0].mxu0
        %812 = vdwg.mxu0
        %v813 = vadd.f32 %v721, %v805
        %v814 = vadd.f32 %v722, %v810
        %s815 = scalar_lea.vmem [#allocation2], 160
        %v816 = vld [vmem:[%s815] sm:$0xff]
        %v817 = vld [vmem:[%s815 + $0x8] sm:$0xff]
        %v818 = vld [vmem:[%s815 + $0x10] sm:$0xff]
        %v819 = vld [vmem:[%s815 + $0x18] sm:$0xff]
        %vm820 = vcmask 1042432
        %v821 = vrot.slane %v359, 5
        %v822 = vrot.slane %v360, 5
        %v823 = vsel %vm820, %v821, %v822
        %v824 = vrot.slane %v361, 5
        %v825 = vsel %vm820, %v822, %v824
        %v826 = vsel %vm380, %v823, 0
        %v828 = vsel %vm380, %v825, 0
        %830 = vmatprep.subr.mxu0 0.0
        %831 = vmatpush1.msra.mxu0 %v816
        %832 = vmatprep.subr.mxu0 0.0
        %833 = vmatpush1.msra.mxu0 %v817
        %834 = vmatprep.subr.mxu0 0.0
        %835 = vmatpush1.msra.mxu0 %v818
        %836 = vmatprep.subr.mxu0 0.0
        %837 = vmatpush1.msra.mxu0 %v819
        %838 = vmatprep.subr.mxu0 0.0
        %839 = vmatpush1.msra.mxu0 0.0
        %840 = vmatprep.subr.mxu0 0.0
        %841 = vmatpush1.msra.mxu0 0.0
        %842 = vmatprep.subr.mxu0 0.0
        %843 = vmatpush1.msra.mxu0 0.0
        %844 = vmatprep.subr.mxu0 0.0
        %845 = vmatpush1.msra.mxu0 0.0
        %846 = vmatprep.subr.mxu0 0.0
        %847 = vmatpush1.msra.mxu0 0.0
        %848 = vmatprep.subr.mxu0 0.0
        %849 = vmatpush1.msra.mxu0 0.0
        %850 = vmatprep.subr.mxu0 0.0
        %851 = vmatpush1.msra.mxu0 0.0
        %852 = vmatprep.subr.mxu0 0.0
        %853 = vmatpush1.msra.mxu0 0.0
        %854 = vmatprep.subr.mxu0 0.0
        %855 = vmatpush1.msra.mxu0 0.0
        %856 = vmatprep.subr.mxu0 0.0
        %857 = vmatpush1.msra.mxu0 0.0
        %858 = vmatprep.subr.mxu0 0.0
        %859 = vmatpush1.msra.mxu0 0.0
        %860 = vmatprep.subr.mxu0 0.0
        %861 = vmatpush1.msra.mxu0 0.0
        %862 = vmatprep.subr.mxu0 0.0
        %863 = vmatpush1.msra.mxu0 0.0
        %864 = vmatprep.subr.mxu0 0.0
        %865 = vmatpush1.msra.mxu0 0.0
        %866 = vmatprep.subr.mxu0 0.0
        %867 = vmatpush1.msra.mxu0 0.0
        %868 = vmatprep.subr.mxu0 0.0
        %869 = vmatpush1.msra.mxu0 0.0
        %870 = vmatprep.subr.mxu0 0.0
        %871 = vmatpush1.msra.mxu0 0.0
        %872 = vmatprep.subr.mxu0 0.0
        %873 = vmatpush1.msra.mxu0 0.0
        %874 = vmatprep.subr.mxu0 0.0
        %875 = vmatpush1.msra.mxu0 0.0
        %876 = vmatprep.subr.mxu0 0.0
        %877 = vmatpush1.msra.mxu0 0.0
        %878 = vmatprep.subr.mxu0 0.0
        %879 = vmatpush1.msra.mxu0 0.0
        %880 = vmatprep.subr.mxu0 0.0
        %881 = vmatpush1.msra.mxu0 0.0
        %882 = vmatprep.subr.mxu0 0.0
        %883 = vmatpush1.msra.mxu0 0.0
        %884 = vmatprep.subr.mxu0 0.0
        %885 = vmatpush1.msra.mxu0 0.0
        %886 = vmatprep.subr.mxu0 0.0
        %887 = vmatpush1.msra.mxu0 0.0
        %888 = vmatprep.subr.mxu0 0.0
        %889 = vmatpush1.msra.mxu0 0.0
        %890 = vmatprep.subr.mxu0 0.0
        %891 = vmatpush1.msra.mxu0 0.0
        %892 = vmatprep.subr.mxu0 0.0
        %893 = vmatpush1.msra.mxu0 0.0
        %894 = vmatprep.mubr.f32.mxu0 0.0
        %895 = vmatmul.mubr.f32.gmra.mrb[0].mxu0 %v826
        %v896 = vpop.f32.mrb[0].mxu0
        %v897 = vadd.f32 0.0, %v896
        %v898 = vpop.f32.mrb[0].mxu0
        %899 = vmatprep.mubr.f32.mxu0 0.0
        %900 = vmatmul.mubr.f32.gmra.mrb[0].mxu0 %v828
        %v901 = vpop.f32.mrb[0].mxu0
        %v902 = vadd.f32 0.0, %v901
        %v903 = vpop.f32.mrb[0].mxu0
        %904 = vdwg.mxu0
        %v905 = vadd.f32 %v813, %v897
        %v906 = vadd.f32 %v814, %v902
        %s907 = scalar_lea.vmem [#allocation2], 192
        %v908 = vld [vmem:[%s907] sm:$0xff]
        %v909 = vld [vmem:[%s907 + $0x8] sm:$0xff]
        %v910 = vld [vmem:[%s907 + $0x10] sm:$0xff]
        %v911 = vld [vmem:[%s907 + $0x18] sm:$0xff]
        %vm912 = vcmask 1041408
        %v913 = vrot.slane %v359, 6
        %v914 = vrot.slane %v360, 6
        %v915 = vsel %vm912, %v913, %v914
        %v916 = vrot.slane %v361, 6
        %v917 = vsel %vm912, %v914, %v916
        %v918 = vsel %vm380, %v915, 0
        %v920 = vsel %vm380, %v917, 0
        %922 = vmatprep.subr.mxu0 0.0
        %923 = vmatpush1.msra.mxu0 %v908
        %924 = vmatprep.subr.mxu0 0.0
        %925 = vmatpush1.msra.mxu0 %v909
        %926 = vmatprep.subr.mxu0 0.0
        %927 = vmatpush1.msra.mxu0 %v910
        %928 = vmatprep.subr.mxu0 0.0
        %929 = vmatpush1.msra.mxu0 %v911
        %930 = vmatprep.subr.mxu0 0.0
        %931 = vmatpush1.msra.mxu0 0.0
        %932 = vmatprep.subr.mxu0 0.0
        %933 = vmatpush1.msra.mxu0 0.0
        %934 = vmatprep.subr.mxu0 0.0
        %935 = vmatpush1.msra.mxu0 0.0
        %936 = vmatprep.subr.mxu0 0.0
        %937 = vmatpush1.msra.mxu0 0.0
        %938 = vmatprep.subr.mxu0 0.0
        %939 = vmatpush1.msra.mxu0 0.0
        %940 = vmatprep.subr.mxu0 0.0
        %941 = vmatpush1.msra.mxu0 0.0
        %942 = vmatprep.subr.mxu0 0.0
        %943 = vmatpush1.msra.mxu0 0.0
        %944 = vmatprep.subr.mxu0 0.0
        %945 = vmatpush1.msra.mxu0 0.0
        %946 = vmatprep.subr.mxu0 0.0
        %947 = vmatpush1.msra.mxu0 0.0
        %948 = vmatprep.subr.mxu0 0.0
        %949 = vmatpush1.msra.mxu0 0.0
        %950 = vmatprep.subr.mxu0 0.0
        %951 = vmatpush1.msra.mxu0 0.0
        %952 = vmatprep.subr.mxu0 0.0
        %953 = vmatpush1.msra.mxu0 0.0
        %954 = vmatprep.subr.mxu0 0.0
        %955 = vmatpush1.msra.mxu0 0.0
        %956 = vmatprep.subr.mxu0 0.0
        %957 = vmatpush1.msra.mxu0 0.0
        %958 = vmatprep.subr.mxu0 0.0
        %959 = vmatpush1.msra.mxu0 0.0
        %960 = vmatprep.subr.mxu0 0.0
        %961 = vmatpush1.msra.mxu0 0.0
        %962 = vmatprep.subr.mxu0 0.0
        %963 = vmatpush1.msra.mxu0 0.0
        %964 = vmatprep.subr.mxu0 0.0
        %965 = vmatpush1.msra.mxu0 0.0
        %966 = vmatprep.subr.mxu0 0.0
        %967 = vmatpush1.msra.mxu0 0.0
        %968 = vmatprep.subr.mxu0 0.0
        %969 = vmatpush1.msra.mxu0 0.0
        %970 = vmatprep.subr.mxu0 0.0
        %971 = vmatpush1.msra.mxu0 0.0
        %972 = vmatprep.subr.mxu0 0.0
        %973 = vmatpush1.msra.mxu0 0.0
        %974 = vmatprep.subr.mxu0 0.0
        %975 = vmatpush1.msra.mxu0 0.0
        %976 = vmatprep.subr.mxu0 0.0
        %977 = vmatpush1.msra.mxu0 0.0
        %978 = vmatprep.subr.mxu0 0.0
        %979 = vmatpush1.msra.mxu0 0.0
        %980 = vmatprep.subr.mxu0 0.0
        %981 = vmatpush1.msra.mxu0 0.0
        %982 = vmatprep.subr.mxu0 0.0
        %983 = vmatpush1.msra.mxu0 0.0
        %984 = vmatprep.subr.mxu0 0.0
        %985 = vmatpush1.msra.mxu0 0.0
        %986 = vmatprep.mubr.f32.mxu0 0.0
        %987 = vmatmul.mubr.f32.gmra.mrb[0].mxu0 %v918
        %v988 = vpop.f32.mrb[0].mxu0
        %v989 = vadd.f32 0.0, %v988
        %v990 = vpop.f32.mrb[0].mxu0
        %991 = vmatprep.mubr.f32.mxu0 0.0
        %992 = vmatmul.mubr.f32.gmra.mrb[0].mxu0 %v920
        %v993 = vpop.f32.mrb[0].mxu0
        %v994 = vadd.f32 0.0, %v993
        %v995 = vpop.f32.mrb[0].mxu0
        %996 = vdwg.mxu0
        %v997 = vadd.f32 %v905, %v989
        %v998 = vadd.f32 %v906, %v994
        %s999 = scalar_lea.vmem [#allocation2], 224
        %v1000 = vld [vmem:[%s999] sm:$0xff]
        %v1001 = vld [vmem:[%s999 + $0x8] sm:$0xff]
        %v1002 = vld [vmem:[%s999 + $0x10] sm:$0xff]
        %v1003 = vld [vmem:[%s999 + $0x18] sm:$0xff]
        %vm1004 = vcmask 1040384
        %v1005 = vrot.slane %v359, 7
        %v1006 = vrot.slane %v360, 7
        %v1007 = vsel %vm1004, %v1005, %v1006
        %v1008 = vrot.slane %v361, 7
        %v1009 = vsel %vm1004, %v1006, %v1008
        %v1010 = vsel %vm380, %v1007, 0
        %v1012 = vsel %vm380, %v1009, 0
        %1014 = vmatprep.subr.mxu0 0.0
        %1015 = vmatpush1.msra.mxu0 %v1000
        %1016 = vmatprep.subr.mxu0 0.0
        %1017 = vmatpush1.msra.mxu0 %v1001
        %1018 = vmatprep.subr.mxu0 0.0
        %1019 = vmatpush1.msra.mxu0 %v1002
        %1020 = vmatprep.subr.mxu0 0.0
        %1021 = vmatpush1.msra.mxu0 %v1003
        %1022 = vmatprep.subr.mxu0 0.0
        %1023 = vmatpush1.msra.mxu0 0.0
        %1024 = vmatprep.subr.mxu0 0.0
        %1025 = vmatpush1.msra.mxu0 0.0
        %1026 = vmatprep.subr.mxu0 0.0
        %1027 = vmatpush1.msra.mxu0 0.0
        %1028 = vmatprep.subr.mxu0 0.0
        %1029 = vmatpush1.msra.mxu0 0.0
        %1030 = vmatprep.subr.mxu0 0.0
        %1031 = vmatpush1.msra.mxu0 0.0
        %1032 = vmatprep.subr.mxu0 0.0
        %1033 = vmatpush1.msra.mxu0 0.0
        %1034 = vmatprep.subr.mxu0 0.0
        %1035 = vmatpush1.msra.mxu0 0.0
        %1036 = vmatprep.subr.mxu0 0.0
        %1037 = vmatpush1.msra.mxu0 0.0
        %1038 = vmatprep.subr.mxu0 0.0
        %1039 = vmatpush1.msra.mxu0 0.0
        %1040 = vmatprep.subr.mxu0 0.0
        %1041 = vmatpush1.msra.mxu0 0.0
        %1042 = vmatprep.subr.mxu0 0.0
        %1043 = vmatpush1.msra.mxu0 0.0
        %1044 = vmatprep.subr.mxu0 0.0
        %1045 = vmatpush1.msra.mxu0 0.0
        %1046 = vmatprep.subr.mxu0 0.0
        %1047 = vmatpush1.msra.mxu0 0.0
        %1048 = vmatprep.subr.mxu0 0.0
        %1049 = vmatpush1.msra.mxu0 0.0
        %1050 = vmatprep.subr.mxu0 0.0
        %1051 = vmatpush1.msra.mxu0 0.0
        %1052 = vmatprep.subr.mxu0 0.0
        %1053 = vmatpush1.msra.mxu0 0.0
        %1054 = vmatprep.subr.mxu0 0.0
        %1055 = vmatpush1.msra.mxu0 0.0
        %1056 = vmatprep.subr.mxu0 0.0
        %1057 = vmatpush1.msra.mxu0 0.0
        %1058 = vmatprep.subr.mxu0 0.0
        %1059 = vmatpush1.msra.mxu0 0.0
        %1060 = vmatprep.subr.mxu0 0.0
        %1061 = vmatpush1.msra.mxu0 0.0
        %1062 = vmatprep.subr.mxu0 0.0
        %1063 = vmatpush1.msra.mxu0 0.0
        %1064 = vmatprep.subr.mxu0 0.0
        %1065 = vmatpush1.msra.mxu0 0.0
        %1066 = vmatprep.subr.mxu0 0.0
        %1067 = vmatpush1.msra.mxu0 0.0
        %1068 = vmatprep.subr.mxu0 0.0
        %1069 = vmatpush1.msra.mxu0 0.0
        %1070 = vmatprep.subr.mxu0 0.0
        %1071 = vmatpush1.msra.mxu0 0.0
        %1072 = vmatprep.subr.mxu0 0.0
        %1073 = vmatpush1.msra.mxu0 0.0
        %1074 = vmatprep.subr.mxu0 0.0
        %1075 = vmatpush1.msra.mxu0 0.0
        %1076 = vmatprep.subr.mxu0 0.0
        %1077 = vmatpush1.msra.mxu0 0.0
        %1078 = vmatprep.mubr.f32.mxu0 0.0
        %1079 = vmatmul.mubr.f32.gmra.mrb[0].mxu0 %v1010
        %v1080 = vpop.f32.mrb[0].mxu0
        %v1081 = vadd.f32 0.0, %v1080
        %v1082 = vpop.f32.mrb[0].mxu0
        %1083 = vmatprep.mubr.f32.mxu0 0.0
        %1084 = vmatmul.mubr.f32.gmra.mrb[0].mxu0 %v1012
        %v1085 = vpop.f32.mrb[0].mxu0
        %v1086 = vadd.f32 0.0, %v1085
        %v1087 = vpop.f32.mrb[0].mxu0
        %1088 = vdwg.mxu0
        %v1089 = vadd.f32 %v997, %v1081
        %v1090 = vadd.f32 %v998, %v1086
        %s1091 = scalar_lea.vmem [#allocation2], 256
        %v1092 = vld [vmem:[%s1091] sm:$0xff]
        %v1093 = vld [vmem:[%s1091 + $0x8] sm:$0xff]
        %v1094 = vld [vmem:[%s1091 + $0x10] sm:$0xff]
        %v1095 = vld [vmem:[%s1091 + $0x18] sm:$0xff]
        %v1096 = vsel %vm380, %v361, 0
        %1098 = vmatprep.subr.mxu0 0.0
        %1099 = vmatpush1.msra.mxu0 %v1092
        %1100 = vmatprep.subr.mxu0 0.0
        %1101 = vmatpush1.msra.mxu0 %v1093
        %1102 = vmatprep.subr.mxu0 0.0
        %1103 = vmatpush1.msra.mxu0 %v1094
        %1104 = vmatprep.subr.mxu0 0.0
        %1105 = vmatpush1.msra.mxu0 %v1095
        %1106 = vmatprep.subr.mxu0 0.0
        %1107 = vmatpush1.msra.mxu0 0.0
        %1108 = vmatprep.subr.mxu0 0.0
        %1109 = vmatpush1.msra.mxu0 0.0
        %1110 = vmatprep.subr.mxu0 0.0
        %1111 = vmatpush1.msra.mxu0 0.0
        %1112 = vmatprep.subr.mxu0 0.0
        %1113 = vmatpush1.msra.mxu0 0.0
        %1114 = vmatprep.subr.mxu0 0.0
        %1115 = vmatpush1.msra.mxu0 0.0
        %1116 = vmatprep.subr.mxu0 0.0
        %1117 = vmatpush1.msra.mxu0 0.0
        %1118 = vmatprep.subr.mxu0 0.0
        %1119 = vmatpush1.msra.mxu0 0.0
        %1120 = vmatprep.subr.mxu0 0.0
        %1121 = vmatpush1.msra.mxu0 0.0
        %1122 = vmatprep.subr.mxu0 0.0
        %1123 = vmatpush1.msra.mxu0 0.0
        %1124 = vmatprep.subr.mxu0 0.0
        %1125 = vmatpush1.msra.mxu0 0.0
        %1126 = vmatprep.subr.mxu0 0.0
        %1127 = vmatpush1.msra.mxu0 0.0
        %1128 = vmatprep.subr.mxu0 0.0
        %1129 = vmatpush1.msra.mxu0 0.0
        %1130 = vmatprep.subr.mxu0 0.0
        %1131 = vmatpush1.msra.mxu0 0.0
        %1132 = vmatprep.subr.mxu0 0.0
        %1133 = vmatpush1.msra.mxu0 0.0
        %1134 = vmatprep.subr.mxu0 0.0
        %1135 = vmatpush1.msra.mxu0 0.0
        %1136 = vmatprep.subr.mxu0 0.0
        %1137 = vmatpush1.msra.mxu0 0.0
        %1138 = vmatprep.subr.mxu0 0.0
        %1139 = vmatpush1.msra.mxu0 0.0
        %1140 = vmatprep.subr.mxu0 0.0
        %1141 = vmatpush1.msra.mxu0 0.0
        %1142 = vmatprep.subr.mxu0 0.0
        %1143 = vmatpush1.msra.mxu0 0.0
        %1144 = vmatprep.subr.mxu0 0.0
        %1145 = vmatpush1.msra.mxu0 0.0
        %1146 = vmatprep.subr.mxu0 0.0
        %1147 = vmatpush1.msra.mxu0 0.0
        %1148 = vmatprep.subr.mxu0 0.0
        %1149 = vmatpush1.msra.mxu0 0.0
        %1150 = vmatprep.subr.mxu0 0.0
        %1151 = vmatpush1.msra.mxu0 0.0
        %1152 = vmatprep.subr.mxu0 0.0
        %1153 = vmatpush1.msra.mxu0 0.0
        %1154 = vmatprep.subr.mxu0 0.0
        %1155 = vmatpush1.msra.mxu0 0.0
        %1156 = vmatprep.subr.mxu0 0.0
        %1157 = vmatpush1.msra.mxu0 0.0
        %1158 = vmatprep.subr.mxu0 0.0
        %1159 = vmatpush1.msra.mxu0 0.0
        %1160 = vmatprep.subr.mxu0 0.0
        %1161 = vmatpush1.msra.mxu0 0.0
        %1162 = vmatprep.mubr.f32.mxu0 0.0
        %1163 = vmatmul.mubr.f32.gmra.mrb[0].mxu0 %v462
        %v1164 = vpop.f32.mrb[0].mxu0
        %v1165 = vadd.f32 0.0, %v1164
        %v1166 = vpop.f32.mrb[0].mxu0
        %1167 = vmatprep.mubr.f32.mxu0 0.0
        %1168 = vmatmul.mubr.f32.gmra.mrb[0].mxu0 %v1096
        %v1169 = vpop.f32.mrb[0].mxu0
        %v1170 = vadd.f32 0.0, %v1169
        %v1171 = vpop.f32.mrb[0].mxu0
        %1172 = vdwg.mxu0
        %v1173 = vadd.f32 %v1089, %v1165
        %v1174 = vadd.f32 %v1090, %v1170
        %v1175 = vld [vmem:[%s349] sm:$0x1]
        %v1177 = vlaneseq
        %v1178 = vshrl.u32 %v1177, 7
        %v1179 = vsub.s32 0, %v1178
        %v1180 = vrot.slane %v1175, %v1179
        %v1182 = vadd.f32 %v1173, %v1180
        %v1183 = vadd.f32 %v1174, %v1180
        %v1184 = vmax.f32 %v1182, 0.0
        %v1185 = vmax.f32 %v1183, 0.0
        %v1186 = vld [vmem:[%s354] sm:$0xff]
        %v1187 = vld [vmem:[%s354 + $0x8] sm:$0xff]
        %v1188 = vld [vmem:[%s354 + $0x10] sm:$0xff]
        %v1189 = vld [vmem:[%s354 + $0x18] sm:$0xff]
        %v1190 = vld [vmem:[%s354 + $0x20] sm:$0xff]
        %v1191 = vld [vmem:[%s354 + $0x28] sm:$0xff]
        %v1192 = vld [vmem:[%s354 + $0x30] sm:$0xff]
        %v1193 = vld [vmem:[%s354 + $0x38] sm:$0xff]
        %v1194 = vld [vmem:[%s4] sm:$0x1]
        %v1196 = vlaneseq
        %v1197 = vshrl.u32 %v1196, 7
        %v1198 = vsub.s32 0, %v1197
        %v1199 = vrot.slane %v1194, %v1198
        %vm1201 = vcmask 523264
        %v1203 = vsel %vm1201, %v1184, 0
        %v1206 = vsel %vm1201, %v1185, 0
        %1208 = vmatprep.subr.mxu0 0.0
        %1209 = vmatpush1.msra.mxu0 %v1186
        %1210 = vmatprep.subr.mxu0 0.0
        %1211 = vmatpush1.msra.mxu0 %v1187
        %1212 = vmatprep.subr.mxu0 0.0
        %1213 = vmatpush1.msra.mxu0 %v1188
        %1214 = vmatprep.subr.mxu0 0.0
        %1215 = vmatpush1.msra.mxu0 %v1189
        %1216 = vmatprep.subr.mxu0 0.0
        %1217 = vmatpush1.msra.mxu0 %v1190
        %1218 = vmatprep.subr.mxu0 0.0
        %1219 = vmatpush1.msra.mxu0 %v1191
        %1220 = vmatprep.subr.mxu0 0.0
        %1221 = vmatpush1.msra.mxu0 %v1192
        %1222 = vmatprep.subr.mxu0 0.0
        %1223 = vmatpush1.msra.mxu0 %v1193
        %1224 = vmatprep.subr.mxu0 0.0
        %1225 = vmatpush1.msra.mxu0 0.0
        %1226 = vmatprep.subr.mxu0 0.0
        %1227 = vmatpush1.msra.mxu0 0.0
        %1228 = vmatprep.subr.mxu0 0.0
        %1229 = vmatpush1.msra.mxu0 0.0
        %1230 = vmatprep.subr.mxu0 0.0
        %1231 = vmatpush1.msra.mxu0 0.0
        %1232 = vmatprep.subr.mxu0 0.0
        %1233 = vmatpush1.msra.mxu0 0.0
        %1234 = vmatprep.subr.mxu0 0.0
        %1235 = vmatpush1.msra.mxu0 0.0
        %1236 = vmatprep.subr.mxu0 0.0
        %1237 = vmatpush1.msra.mxu0 0.0
        %1238 = vmatprep.subr.mxu0 0.0
        %1239 = vmatpush1.msra.mxu0 0.0
        %1240 = vmatprep.subr.mxu0 0.0
        %1241 = vmatpush1.msra.mxu0 0.0
        %1242 = vmatprep.subr.mxu0 0.0
        %1243 = vmatpush1.msra.mxu0 0.0
        %1244 = vmatprep.subr.mxu0 0.0
        %1245 = vmatpush1.msra.mxu0 0.0
        %1246 = vmatprep.subr.mxu0 0.0
        %1247 = vmatpush1.msra.mxu0 0.0
        %1248 = vmatprep.subr.mxu0 0.0
        %1249 = vmatpush1.msra.mxu0 0.0
        %1250 = vmatprep.subr.mxu0 0.0
        %1251 = vmatpush1.msra.mxu0 0.0
        %1252 = vmatprep.subr.mxu0 0.0
        %1253 = vmatpush1.msra.mxu0 0.0
        %1254 = vmatprep.subr.mxu0 0.0
        %1255 = vmatpush1.msra.mxu0 0.0
        %1256 = vmatprep.subr.mxu0 0.0
        %1257 = vmatpush1.msra.mxu0 0.0
        %1258 = vmatprep.subr.mxu0 0.0
        %1259 = vmatpush1.msra.mxu0 0.0
        %1260 = vmatprep.subr.mxu0 0.0
        %1261 = vmatpush1.msra.mxu0 0.0
        %1262 = vmatprep.subr.mxu0 0.0
        %1263 = vmatpush1.msra.mxu0 0.0
        %1264 = vmatprep.subr.mxu0 0.0
        %1265 = vmatpush1.msra.mxu0 0.0
        %1266 = vmatprep.subr.mxu0 0.0
        %1267 = vmatpush1.msra.mxu0 0.0
        %1268 = vmatprep.subr.mxu0 0.0
        %1269 = vmatpush1.msra.mxu0 0.0
        %1270 = vmatprep.subr.mxu0 0.0
        %1271 = vmatpush1.msra.mxu0 0.0
        %1272 = vmatprep.mubr.f32.mxu0 0.0
        %1273 = vmatmul.mubr.f32.gmra.mrb[0].mxu0 %v1203
        %v1274 = vpop.f32.mrb[0].mxu0
        %v1275 = vadd.f32 %v1199, %v1274
        %v1276 = vpop.f32.mrb[0].mxu0
        %1277 = vmatprep.mubr.f32.mxu0 0.0
        %1278 = vmatmul.mubr.f32.gmra.mrb[0].mxu0 %v1206
        %v1279 = vpop.f32.mrb[0].mxu0
        %v1280 = vadd.f32 %v1199, %v1279
        %v1281 = vpop.f32.mrb[0].mxu0
        %1282 = vdwg.mxu0
        %v1285 = vadd.f32 %v1275, %v731
        %v1286 = vadd.f32 %v1280, %v733
        %v1287 = vsel %vm380, %v1285, 0.0
        %1288 = vadd.xlane.f32.xlu0 %v1287
        %v1289 = vpop.xlane.xlu0 %1288
        %v1290 = vsel %vm380, %v1286, 0.0
        %1291 = vadd.xlane.f32.xlu0 %v1290
        %v1292 = vpop.xlane.xlu0 %1291
        %v1293 = vrcp.pop 32.0
        %v1294 = vmul.f32 %v1289, %v1293
        %v1295 = vmul.f32 %v1292, %v1293
        %v1296 = vsub.f32 %v1285, %v1294
        %v1297 = vsub.f32 %v1286, %v1295
        %v1298 = vmul.f32 %v1296, %v1296
        %v1299 = vmul.f32 %v1297, %v1297
        %v1300 = vsel %vm380, %v1298, 0.0
        %1301 = vadd.xlane.f32.xlu0 %v1300
        %v1302 = vpop.xlane.xlu0 %1301
        %v1303 = vsel %vm380, %v1299, 0.0
        %1304 = vadd.xlane.f32.xlu0 %v1303
        %v1305 = vpop.xlane.xlu0 %1304
        %v1306 = vmul.f32 %v1302, %v1293
        %v1307 = vmul.f32 %v1305, %v1293
        %v1308 = vadd.f32 %v1306, 1e-05
        %v1309 = vadd.f32 %v1307, 1e-05
        %v1310 = vrsqrt.pop %v1308
        %v1311 = vrsqrt.pop %v1309
        %v1312 = vmul.f32 %v1296, %v1310
        %v1313 = vmul.f32 %v1297, %v1311
        %v1314 = vld [vmem:[%s5] sm:$0x1]
        %v1316 = vlaneseq
        %v1317 = vshrl.u32 %v1316, 7
        %v1318 = vsub.s32 0, %v1317
        %v1319 = vrot.slane %v1314, %v1318
        %v1321 = vmul.f32 %v1312, %v1319
        %v1322 = vmul.f32 %v1313, %v1319
        %v1323 = vld [vmem:[%s6] sm:$0x1]
        %v1325 = vlaneseq
        %v1326 = vshrl.u32 %v1325, 7
        %v1327 = vsub.s32 0, %v1326
        %v1328 = vrot.slane %v1323, %v1327
        %v1330 = vadd.f32 %v1321, %v1328
        %v1331 = vadd.f32 %v1322, %v1328
        %1332 = vst.msk [vmem:[%s341] sm:$0xff] %vm380, %v1330
        %1333 = vst.msk [vmem:[%s341 + $0x8] sm:$0xff] %vm380, %v1331
        %s1334 = sand.u32 %s218, 1
        %s1335 = scalar_lea.sflag [#allocation4], %s1334
        %s1336 = sand.u32 %s218, 1
        %s1337 = smul.addr %s1336, 16
        %s1338 = scalar_lea.vmem [#allocation5], %s1337
        // Predicated region
        $region53: #{tpu_custom_call.1} parent=47 // pred_check
          %p1339 = pneg %p228
        $region54: #{tpu_custom_call.1} parent=47 // pred_check_branch
          %1341 = sbr.rel (%p1339) target = $region56
        $region55: #{tpu_custom_call.1} parent=47 // pred_region
          %s1342 = smul.u32 2, %s28
          %s1344 = ssub.s32 256, 256
          %1345 = vsyncadd %s1335, %s1344
          %s1346 = smul.addr %s27, 2
          %s1347 = sadd.s32 %s1342, %s1346
          %s1348 = smul.addr %s1347, 128
          %s1349 = scalar_lea.hbm %s7, %s1348
          %s1350 = sshll.u32 %s1338, 4
          %s1351 = int_to_ptr.vmem [resolvable:$true] %s1350
          %1356 = dma.vmem_to_hbm [thread:$0]  %s1351, 256, %s1349, %s1335, 128, 128, 8
        $region56: #{tpu_custom_call.1} parent=47 // pred_fallthru
          _
      $region48: #{tpu_custom_call.1} parent=5 // pred_fallthru
        _
      %p1357 = scmp.le.s32.totalorder 2, %s17
      // Predicated region
      $region57: #{tpu_custom_call.1} parent=5 // pred_check
        %p1358 = pneg %p1357
      $region58: #{tpu_custom_call.1} parent=5 // pred_check_branch
        %1360 = sbr.rel (%p1358) target = $region60
      $region59: #{tpu_custom_call.1} parent=5 // pred_region
        %s1361 = ssub.s32 %s17, 2
        // Predicated region
        $region61: #{tpu_custom_call.1} parent=59 // pred_check
          %p1362 = pneg %p234
        $region62: #{tpu_custom_call.1} parent=59 // pred_check_branch
          %1364 = sbr.rel (%p1362) target = $region64
        $region63: #{tpu_custom_call.1} parent=59 // pred_region
          %s1365 = sand.u32 %s219, 1
          %s1366 = scalar_lea.sflag [#allocation4], %s1365
          %s1367 = sand.u32 %s219, 1
          %s1368 = smul.addr %s1367, 16
          %s1369 = scalar_lea.vmem [#allocation5], %s1368
          %1370 = dma.done %s1366, 256
        $region64: #{tpu_custom_call.1} parent=59 // pred_fallthru
          _
      $region60: #{tpu_custom_call.1} parent=5 // pred_fallthru
        _
    $region6: #{tpu_custom_call.1} parent=1 // loop_footer
      %s21 = sadd.s32 1, %s17
    $region7: #{tpu_custom_call.1} parent=1 // loop_footer_branch
      %16 = sbr.rel target = $region3
    $region8: #{tpu_custom_call.1} parent=1 // loop_exit
      _
    %1371 = vsyncpa [#allocation3], 1
    %s1372 = scalar_lea.sflag [#allocation3], 1
    %1373 = vsyncpa %s1372, 1
    %1374 = vsyncpa [#allocation4], 1
    %s1375 = scalar_lea.sflag [#allocation4], 1
    %1376 = vsyncpa %s1375, 1

</llo_original>
